<compile_context>
chip_gen: v7x
topology: tpu7x:2x2x1
jax: 0.10.0
libtpu: 0.0.40
codegen_flags: <defaults>
</compile_context>

<pallas_src>
import jax
import jax.numpy as jnp
from jax import lax
from jax.experimental import pallas as pl
from jax.experimental.pallas import tpu as pltpu

# ----------------- "config" of CnnRnnModel1Channel (model_status=0) ----------
N = 2                 # batch
IN_C = 4              # config['in_c']
L = 16                # input sequence length
K, STRIDE, PAD = 3, 1, 1
C1, C2 = 8, 16        # two conv blocks: Conv1d -> BatchNorm1d -> ReLU, dropout=0
H = 32                # config['rnn']['dim']
RNN_LAYERS = 1
BIDIR = True
FC_IN = H * 2 * RNN_LAYERS if BIDIR else H * RNN_LAYERS
FC_OUT = 5            # config['fc_out']
BN_EPS = 1e-5
F32 = jnp.float32
H3 = 3 * H            # per-direction fused gate width (r|z|n)
X_ROWS = N * L        # time-major rows of the im2col'd input (row = t*N + n)

# ------- fused slab layout: one f32 array (SLAB_ROWS, 96), big blocks 8-row aligned
_SLAB_LAYOUT = (
    ("x", X_ROWS),                    # im2col'd input (built per call)
    ("w1", K * IN_C),                 # conv1 im2col weight (12, C1)
    ("g1", 1), ("t1", 1),             # folded BN1 scale / shift (+conv bias)
    ("g2", 1), ("t2", 1),             # folded BN2 scale / shift (+conv bias)
    ("w2", K * C1),                   # conv2 im2col weight (24, C2)
    ("wih_f", C2), ("wih_b", C2),     # GRU input projections (C2, 3H)
    ("bi_f", 1), ("bi_b", 1),         # input-side gate bias (r,z incl. hidden bias)
    ("bh_f", 1), ("bh_b", 1),         # hidden-side bias (only n slot nonzero)
    ("bfc", 1),                       # fc bias (FC_OUT lanes)
    ("pad", 3),                       # row padding -> big blocks 8-row aligned
    ("whh_f", H), ("whh_b", H),       # GRU hidden projections (H, 3H)
    ("wfc", FC_IN),                   # fc weight (FC_IN, FC_OUT)
)
OFF = {}
_r = 0
for _name, _rows in _SLAB_LAYOUT:
    OFF[_name] = _r
    _r += _rows
SLAB_ROWS = _r                         # 240
P_COLS = H3                            # 96


# ------------------------------- Pallas kernel -------------------------------
def crnn_kernel(s_ref, o_ref):
    # ---- conv block 1: im2col matmul + folded BN + ReLU ----
    x1 = s_ref[OFF['x']:OFF['x'] + X_ROWS, 0:K * IN_C]          # (N*L, K*IN_C)
    w1 = s_ref[OFF['w1']:OFF['w1'] + K * IN_C, 0:C1]            # (12, C1)
    g1 = s_ref[OFF['g1']:OFF['g1'] + 1, 0:C1]
    t1 = s_ref[OFF['t1']:OFF['t1'] + 1, 0:C1]
    a1 = jnp.maximum(jnp.dot(x1, w1, preferred_element_type=F32) * g1 + t1, 0.0)

    # ---- conv block 2: in-kernel im2col (rows are time-major: row = t*N + n),
    #      shifting by one timestep == shifting by N rows; boundary taps = 0 ----
    zrow = jnp.zeros((N, C1), F32)
    a1_up = jnp.concatenate([zrow, a1[:(L - 1) * N, :]], axis=0)   # tap t-1
    a1_dn = jnp.concatenate([a1[N:, :], zrow], axis=0)             # tap t+1
    x2 = jnp.concatenate([a1_up, a1, a1_dn], axis=-1)              # (N*L, K*C1)
    w2 = s_ref[OFF['w2']:OFF['w2'] + K * C1, 0:C2]
    g2 = s_ref[OFF['g2']:OFF['g2'] + 1, 0:C2]
    t2 = s_ref[OFF['t2']:OFF['t2'] + 1, 0:C2]
    a2 = jnp.maximum(jnp.dot(x2, w2, preferred_element_type=F32) * g2 + t2, 0.0)
    # NOTE: conv dropout=0 in config and eval-mode Dropout is identity.

    # ---- GRU input projections (all 3 gates), hoisted out of the time loop ----
    wih_f = s_ref[OFF['wih_f']:OFF['wih_f'] + C2, :]               # (C2, 3H)
    wih_b = s_ref[OFF['wih_b']:OFF['wih_b'] + C2, :]
    bi_f = s_ref[OFF['bi_f']:OFF['bi_f'] + 1, :]
    bi_b = s_ref[OFF['bi_b']:OFF['bi_b'] + 1, :]
    gi_f = jnp.dot(a2, wih_f, preferred_element_type=F32) + bi_f   # (N*L, 3H)
    gi_b = jnp.dot(a2, wih_b, preferred_element_type=F32) + bi_b   # (N*L, 3H)

    whh_f = s_ref[OFF['whh_f']:OFF['whh_f'] + H, :]                # (H, 3H)
    whh_b = s_ref[OFF['whh_b']:OFF['whh_b'] + H, :]
    # Pre-broadcast hidden-side biases once (avoids L per-step broadcast ops).
    bh_f = jnp.broadcast_to(s_ref[OFF['bh_f']:OFF['bh_f'] + 1, :], (N, H3))
    bh_b = jnp.broadcast_to(s_ref[OFF['bh_b']:OFF['bh_b'] + 1, :], (N, H3))

    def gru_step(h, gi_t, whh, bh):
        # PyTorch GRU, gate order (r, z, n):
        #   r = sig(Wir x + bir + Whr h + bhr)   z = sig(Wiz x + biz + Whz h + bhz)
        #   n = tanh(Win x + bin + r * (Whn h + bhn));  h' = (1-z)*n + z*h
        gh = jnp.dot(h, whh, preferred_element_type=F32) + bh      # (N, 3H)
        rz = jax.nn.sigmoid(gi_t[:, :2 * H] + gh[:, :2 * H])
        r, z = rz[:, :H], rz[:, H:]
        n = jnp.tanh(gi_t[:, 2 * H:] + r * gh[:, 2 * H:])
        return (1.0 - z) * n + z * h

    h_f = jnp.zeros((N, H), F32)
    h_b = jnp.zeros((N, H), F32)
    for t in range(L):                 # static unroll, one matmul per dir/step
        tb = L - 1 - t
        h_f = gru_step(h_f, gi_f[t * N:(t + 1) * N, :], whh_f, bh_f)
        h_b = gru_step(h_b, gi_b[tb * N:(tb + 1) * N, :], whh_b, bh_b)

    # ---- fc on concat([h_f, h_b]) done as two dots with the split fc weight ----
    wfc_f = s_ref[OFF['wfc']:OFF['wfc'] + H, 0:FC_OUT]
    wfc_b = s_ref[OFF['wfc'] + H:OFF['wfc'] + 2 * H, 0:FC_OUT]
    bfc = s_ref[OFF['bfc']:OFF['bfc'] + 1, 0:FC_OUT]
    o_ref[...] = (jnp.dot(h_f, wfc_f, preferred_element_type=F32)
                  + jnp.dot(h_b, wfc_b, preferred_element_type=F32) + bfc)


# ------------------------------ parameter setup ------------------------------
def init_params(key):
    ks = iter(jax.random.split(key, 32))

    def nrm(shape, s=0.2):
        return (s * jax.random.normal(next(ks), shape)).astype(F32)

    p = {}
    # conv block 1 (torch shapes): Conv1d(IN_C -> C1, k=3), BatchNorm1d(C1)
    p['w1'], p['cb1'] = nrm((C1, IN_C, K)), nrm((C1,), 0.1)
    p['g1'] = (1.0 + 0.1 * jax.random.normal(next(ks), (C1,))).astype(F32)
    p['beta1'], p['m1'] = nrm((C1,), 0.1), nrm((C1,), 0.1)
    p['v1'] = (0.5 + jax.random.uniform(next(ks), (C1,))).astype(F32)
    # conv block 2: Conv1d(C1 -> C2, k=3), BatchNorm1d(C2)
    p['w2'], p['cb2'] = nrm((C2, C1, K)), nrm((C2,), 0.1)
    p['g2'] = (1.0 + 0.1 * jax.random.normal(next(ks), (C2,))).astype(F32)
    p['beta2'], p['m2'] = nrm((C2,), 0.1), nrm((C2,), 0.1)
    p['v2'] = (0.5 + jax.random.uniform(next(ks), (C2,))).astype(F32)
    # GRU (torch shapes), forward / backward directions, gate order (r, z, n)
    for d in ('f', 'b'):
        p[f'wih_{d}'] = nrm((3 * H, C2))
        p[f'whh_{d}'] = nrm((3 * H, H))
        p[f'bih_{d}'] = nrm((3 * H,), 0.1)
        p[f'bhh_{d}'] = nrm((3 * H,), 0.1)
    # final Linear(FC_IN -> FC_OUT)
    p['fw'], p['fb'] = nrm((FC_OUT, FC_IN)), nrm((FC_OUT,), 0.1)
    return p


def pack_params(p):
    """Pack all parameters into one (SLAB_ROWS - X_ROWS, 96) f32 slab. Run once."""
    # --- fold eval-mode BN (and the conv bias) into scale/shift ---
    def fold_bn(g, beta, m, v, cb):
        scale = g / jnp.sqrt(v + BN_EPS)
        return scale, beta + (cb - m) * scale

    g1, t1 = fold_bn(p['g1'], p['beta1'], p['m1'], p['v1'], p['cb1'])
    g2, t2 = fold_bn(p['g2'], p['beta2'], p['m2'], p['v2'], p['cb2'])

    # --- GRU weights: transpose to (in, 3H); fold r/z hidden biases into the
    #     input-side bias, keep the n hidden bias on the hidden side ---
    def gru_dir(d):
        wih, whh = p[f'wih_{d}'], p[f'whh_{d}']
        bih, bhh = p[f'bih_{d}'], p[f'bhh_{d}']
        bi = jnp.concatenate([bih[:2 * H] + bhh[:2 * H], bih[2 * H:]])
        bh = jnp.concatenate([jnp.zeros((2 * H,), F32), bhh[2 * H:]])
        return wih.T, whh.T, bi, bh

    wih_f, whh_f, bi_f, bh_f = gru_dir('f')
    wih_b, whh_b, bi_b, bh_b = gru_dir('b')

    pieces = {
        'w1': jnp.transpose(p['w1'], (2, 1, 0)).reshape(K * IN_C, C1),
        'g1': g1[None, :], 't1': t1[None, :],
        'g2': g2[None, :], 't2': t2[None, :],
        'w2': jnp.transpose(p['w2'], (2, 1, 0)).reshape(K * C1, C2),
        'wih_f': wih_f, 'wih_b': wih_b,
        'bi_f': bi_f[None, :], 'bi_b': bi_b[None, :],
        'bh_f': bh_f[None, :], 'bh_b': bh_b[None, :],
        'bfc': p['fb'][None, :],
        'pad': jnp.zeros((3, P_COLS), F32),
        'whh_f': whh_f, 'whh_b': whh_b,
        'wfc': p['fw'].T,                 # (FC_IN, FC_OUT), rows [h_f | h_b]
    }
    rows = []
    for name, nrows in _SLAB_LAYOUT:
        if name == 'x':
            continue                       # input rows are prepended per call
        a = pieces[name].astype(F32)
        assert a.shape[0] == nrows, name
        a = jnp.pad(a, ((0, 0), (0, P_COLS - a.shape[1])))
        rows.append(a)
    slab = jnp.concatenate(rows, axis=0)   # (SLAB_ROWS - X_ROWS, 96)
    assert slab.shape == (SLAB_ROWS - X_ROWS, P_COLS)
    return slab


def _im2col_x(x_ncl):
    # im2col of the padded input, time-major rows (row = t*N + n)
    x_nlc = jnp.transpose(x_ncl, (0, 2, 1))                      # (N, L, IN_C)
    xp = jnp.pad(x_nlc, ((0, 0), (PAD, PAD), (0, 0)))
    taps = [xp[:, kk:kk + L, :] for kk in range(K)]
    x1 = jnp.concatenate(taps, axis=-1)                          # (N, L, K*IN_C)
    x_cols = jnp.transpose(x1, (1, 0, 2)).reshape(L * N, K * IN_C)
    return jnp.pad(x_cols, ((0, 0), (0, P_COLS - K * IN_C)))     # (N*L, 96)


@jax.jit
def crnn_forward(x_ncl, param_slab):
    slab = jnp.concatenate([_im2col_x(x_ncl).astype(F32), param_slab], axis=0)
    return pl.pallas_call(
        crnn_kernel,
        out_shape=jax.ShapeDtypeStruct((N, FC_OUT), F32),
        in_specs=[pl.BlockSpec(memory_space=pltpu.MemorySpace.VMEM)],
        out_specs=pl.BlockSpec(memory_space=pltpu.MemorySpace.VMEM),
    )(slab)


# ----------------------------- pure-JAX reference ----------------------------
def reference_forward(x_ncl, p):
    def conv_block(h, w, b, g, beta, m, v):
        y = lax.conv_general_dilated(h, w, window_strides=(STRIDE,),
                                     padding=((PAD, PAD),),
                                     dimension_numbers=('NCH', 'OIH', 'NCH'))
        y = y + b[None, :, None]
        scale = g / jnp.sqrt(v + BN_EPS)
        y = y * scale[None, :, None] + (beta - m * scale)[None, :, None]
        return jnp.maximum(y, 0.0)

    h = conv_block(x_ncl, p['w1'], p['cb1'], p['g1'], p['beta1'], p['m1'], p['v1'])
    h = conv_block(h, p['w2'], p['cb2'], p['g2'], p['beta2'], p['m2'], p['v2'])
    seq = jnp.transpose(h, (0, 2, 1))                       # (N, L, C2)

    def gru_dir(d, reverse):
        wih, whh = p[f'wih_{d}'], p[f'whh_{d}']
        bih, bhh = p[f'bih_{d}'], p[f'bhh_{d}']
        hh = jnp.zeros((N, H), F32)
        order = range(L - 1, -1, -1) if reverse else range(L)
        for t in order:
            x_t = seq[:, t, :]
            gi = x_t @ wih.T + bih
            gh = hh @ whh.T + bhh
            r = jax.nn.sigmoid(gi[:, :H] + gh[:, :H])
            z = jax.nn.sigmoid(gi[:, H:2 * H] + gh[:, H:2 * H])
            n = jnp.tanh(gi[:, 2 * H:] + r * gh[:, 2 * H:])
            hh = (1.0 - z) * n + z * hh
        return hh

    h_cat = jnp.concatenate([gru_dir('f', False), gru_dir('b', True)], axis=-1)
    return h_cat @ p['fw'].T + p['fb']                      # (N, FC_OUT)


# ------------------------------------ main ------------------------------------
if __name__ == "__main__":
    key = jax.random.PRNGKey(0)
    k_x, k_p = jax.random.split(key)
    x = jax.random.normal(k_x, (N, IN_C, L), dtype=F32)     # PyTorch NCL input
    params = init_params(k_p)
    param_slab = jax.block_until_ready(pack_params(params))  # packed once

    out = jax.block_until_ready(crnn_forward(x, param_slab))
    ref = jax.block_until_ready(reference_forward(x, params))

    assert out.shape == (N, FC_OUT)
    assert bool(jnp.all(jnp.isfinite(out)))
    assert bool(jnp.allclose(out, ref, rtol=2e-2, atol=2e-2)), (out, ref)
    print("KERNEL_OK")
</pallas_src>

<mosaic_0001>
module attributes {stable_mosaic.version = 11 : i64} {
  func.func @crnn_kernel(%arg0: memref<240x96xf32, #tpu.memory_space<vmem>>, %arg1: memref<2x5xf32, #tpu.memory_space<vmem>>) attributes {dimension_semantics = [], scalar_prefetch = 0 : i64, scratch_operands = 0 : i64, tpu.core_type = #tpu.core_type<tc>} {
    %c0 = arith.constant 0 : index
    %c0_0 = arith.constant 0 : index
    %0 = vector.load %arg0[%c0, %c0_0] : memref<240x96xf32, #tpu.memory_space<vmem>>, vector<32x12xf32>
    %c32 = arith.constant 32 : index
    %c0_1 = arith.constant 0 : index
    %1 = vector.load %arg0[%c32, %c0_1] : memref<240x96xf32, #tpu.memory_space<vmem>>, vector<12x8xf32>
    %c44 = arith.constant 44 : index
    %c0_2 = arith.constant 0 : index
    %2 = vector.load %arg0[%c44, %c0_2] : memref<240x96xf32, #tpu.memory_space<vmem>>, vector<1x8xf32>
    %c45 = arith.constant 45 : index
    %c0_3 = arith.constant 0 : index
    %3 = vector.load %arg0[%c45, %c0_3] : memref<240x96xf32, #tpu.memory_space<vmem>>, vector<1x8xf32>
    %cst = arith.constant dense<0.000000e+00> : vector<32x8xf32>
    %4 = tpu.matmul %0, %1, %cst {dimension_numbers = #tpu.dot_dimension_numbers<[1], [0], [0], [1], [0, 0, 1, 1], [], []>} : vector<32x12xf32>, vector<12x8xf32>, vector<32x8xf32> -> vector<32x8xf32>
    %5 = vector.broadcast %2 : vector<1x8xf32> to vector<32x8xf32>
    %6 = arith.mulf %4, %5 : vector<32x8xf32>
    %7 = vector.broadcast %3 : vector<1x8xf32> to vector<32x8xf32>
    %8 = arith.addf %6, %7 : vector<32x8xf32>
    %cst_4 = arith.constant 0.000000e+00 : f32
    %9 = vector.broadcast %cst_4 : f32 to vector<32x8xf32>
    %10 = arith.maximumf %8, %9 : vector<32x8xf32>
    %cst_5 = arith.constant 0.000000e+00 : f32
    %11 = vector.broadcast %cst_5 : f32 to vector<2x8xf32>
    %12 = vector.extract_strided_slice %10 {offsets = [0, 0], sizes = [30, 8], strides = [1, 1]} : vector<32x8xf32> to vector<30x8xf32>
    %13 = tpu.concatenate %11, %12 in 0 : vector<2x8xf32>, vector<30x8xf32> -> vector<32x8xf32>
    %14 = vector.extract_strided_slice %10 {offsets = [2, 0], sizes = [30, 8], strides = [1, 1]} : vector<32x8xf32> to vector<30x8xf32>
    %15 = tpu.concatenate %14, %11 in 0 : vector<30x8xf32>, vector<2x8xf32> -> vector<32x8xf32>
    %16 = tpu.concatenate %13, %10, %15 in 1 : vector<32x8xf32>, vector<32x8xf32>, vector<32x8xf32> -> vector<32x24xf32>
    %c48 = arith.constant 48 : index
    %c0_6 = arith.constant 0 : index
    %17 = vector.load %arg0[%c48, %c0_6] : memref<240x96xf32, #tpu.memory_space<vmem>>, vector<24x16xf32>
    %c46 = arith.constant 46 : index
    %c0_7 = arith.constant 0 : index
    %18 = vector.load %arg0[%c46, %c0_7] : memref<240x96xf32, #tpu.memory_space<vmem>>, vector<1x16xf32>
    %c47 = arith.constant 47 : index
    %c0_8 = arith.constant 0 : index
    %19 = vector.load %arg0[%c47, %c0_8] : memref<240x96xf32, #tpu.memory_space<vmem>>, vector<1x16xf32>
    %cst_9 = arith.constant dense<0.000000e+00> : vector<32x16xf32>
    %20 = tpu.matmul %16, %17, %cst_9 {dimension_numbers = #tpu.dot_dimension_numbers<[1], [0], [0], [1], [0, 0, 1, 1], [], []>} : vector<32x24xf32>, vector<24x16xf32>, vector<32x16xf32> -> vector<32x16xf32>
    %21 = vector.broadcast %18 : vector<1x16xf32> to vector<32x16xf32>
    %22 = arith.mulf %20, %21 : vector<32x16xf32>
    %23 = vector.broadcast %19 : vector<1x16xf32> to vector<32x16xf32>
    %24 = arith.addf %22, %23 : vector<32x16xf32>
    %cst_10 = arith.constant 0.000000e+00 : f32
    %25 = vector.broadcast %cst_10 : f32 to vector<32x16xf32>
    %26 = arith.maximumf %24, %25 : vector<32x16xf32>
    %c72 = arith.constant 72 : index
    %c0_11 = arith.constant 0 : index
    %27 = vector.load %arg0[%c72, %c0_11] : memref<240x96xf32, #tpu.memory_space<vmem>>, vector<16x96xf32>
    %c88 = arith.constant 88 : index
    %c0_12 = arith.constant 0 : index
    %28 = vector.load %arg0[%c88, %c0_12] : memref<240x96xf32, #tpu.memory_space<vmem>>, vector<16x96xf32>
    %c104 = arith.constant 104 : index
    %c0_13 = arith.constant 0 : index
    %29 = vector.load %arg0[%c104, %c0_13] : memref<240x96xf32, #tpu.memory_space<vmem>>, vector<1x96xf32>
    %c105 = arith.constant 105 : index
    %c0_14 = arith.constant 0 : index
    %30 = vector.load %arg0[%c105, %c0_14] : memref<240x96xf32, #tpu.memory_space<vmem>>, vector<1x96xf32>
    %cst_15 = arith.constant dense<0.000000e+00> : vector<32x96xf32>
    %31 = tpu.matmul %26, %27, %cst_15 {dimension_numbers = #tpu.dot_dimension_numbers<[1], [0], [0], [1], [0, 0, 1, 1], [], []>} : vector<32x16xf32>, vector<16x96xf32>, vector<32x96xf32> -> vector<32x96xf32>
    %32 = vector.broadcast %29 : vector<1x96xf32> to vector<32x96xf32>
    %33 = arith.addf %31, %32 : vector<32x96xf32>
    %cst_16 = arith.constant dense<0.000000e+00> : vector<32x96xf32>
    %34 = tpu.matmul %26, %28, %cst_16 {dimension_numbers = #tpu.dot_dimension_numbers<[1], [0], [0], [1], [0, 0, 1, 1], [], []>} : vector<32x16xf32>, vector<16x96xf32>, vector<32x96xf32> -> vector<32x96xf32>
    %35 = vector.broadcast %30 : vector<1x96xf32> to vector<32x96xf32>
    %36 = arith.addf %34, %35 : vector<32x96xf32>
    %c112 = arith.constant 112 : index
    %c0_17 = arith.constant 0 : index
    %37 = vector.load %arg0[%c112, %c0_17] : memref<240x96xf32, #tpu.memory_space<vmem>>, vector<32x96xf32>
    %c144 = arith.constant 144 : index
    %c0_18 = arith.constant 0 : index
    %38 = vector.load %arg0[%c144, %c0_18] : memref<240x96xf32, #tpu.memory_space<vmem>>, vector<32x96xf32>
    %c106 = arith.constant 106 : index
    %c0_19 = arith.constant 0 : index
    %39 = vector.load %arg0[%c106, %c0_19] : memref<240x96xf32, #tpu.memory_space<vmem>>, vector<1x96xf32>
    %40 = vector.shape_cast %39 : vector<1x96xf32> to vector<1x96xf32>
    %41 = vector.broadcast %40 : vector<1x96xf32> to vector<2x96xf32>
    %c107 = arith.constant 107 : index
    %c0_20 = arith.constant 0 : index
    %42 = vector.load %arg0[%c107, %c0_20] : memref<240x96xf32, #tpu.memory_space<vmem>>, vector<1x96xf32>
    %43 = vector.shape_cast %42 : vector<1x96xf32> to vector<1x96xf32>
    %44 = vector.broadcast %43 : vector<1x96xf32> to vector<2x96xf32>
    %cst_21 = arith.constant 0.000000e+00 : f32
    %45 = vector.broadcast %cst_21 : f32 to vector<2x32xf32>
    %cst_22 = arith.constant 0.000000e+00 : f32
    %46 = vector.broadcast %cst_22 : f32 to vector<2x32xf32>
    %47 = vector.extract_strided_slice %33 {offsets = [0, 0], sizes = [2, 96], strides = [1, 1]} : vector<32x96xf32> to vector<2x96xf32>
    %cst_23 = arith.constant dense<0.000000e+00> : vector<2x96xf32>
    %48 = tpu.matmul %45, %37, %cst_23 {dimension_numbers = #tpu.dot_dimension_numbers<[1], [0], [0], [1], [0, 0, 1, 1], [], []>} : vector<2x32xf32>, vector<32x96xf32>, vector<2x96xf32> -> vector<2x96xf32>
    %49 = arith.addf %48, %41 : vector<2x96xf32>
    %50 = vector.extract_strided_slice %47 {offsets = [0, 0], sizes = [2, 64], strides = [1, 1]} : vector<2x96xf32> to vector<2x64xf32>
    %51 = vector.extract_strided_slice %49 {offsets = [0, 0], sizes = [2, 64], strides = [1, 1]} : vector<2x96xf32> to vector<2x64xf32>
    %52 = arith.addf %50, %51 : vector<2x64xf32>
    %53 = arith.negf %52 : vector<2x64xf32>
    %54 = math.exp %53 : vector<2x64xf32>
    %cst_24 = arith.constant 1.000000e+00 : f32
    %55 = vector.broadcast %cst_24 : f32 to vector<2x64xf32>
    %56 = arith.addf %55, %54 : vector<2x64xf32>
    %57 = arith.divf %55, %56 : vector<2x64xf32>
    %58 = vector.extract_strided_slice %57 {offsets = [0, 0], sizes = [2, 32], strides = [1, 1]} : vector<2x64xf32> to vector<2x32xf32>
    %59 = vector.extract_strided_slice %57 {offsets = [0, 32], sizes = [2, 32], strides = [1, 1]} : vector<2x64xf32> to vector<2x32xf32>
    %60 = vector.extract_strided_slice %47 {offsets = [0, 64], sizes = [2, 32], strides = [1, 1]} : vector<2x96xf32> to vector<2x32xf32>
    %61 = vector.extract_strided_slice %49 {offsets = [0, 64], sizes = [2, 32], strides = [1, 1]} : vector<2x96xf32> to vector<2x32xf32>
    %62 = arith.mulf %58, %61 : vector<2x32xf32>
    %63 = arith.addf %60, %62 : vector<2x32xf32>
    %64 = math.tanh %63 : vector<2x32xf32>
    %cst_25 = arith.constant 1.000000e+00 : f32
    %65 = vector.broadcast %cst_25 : f32 to vector<2x32xf32>
    %66 = arith.subf %65, %59 : vector<2x32xf32>
    %67 = arith.mulf %66, %64 : vector<2x32xf32>
    %68 = arith.mulf %59, %45 : vector<2x32xf32>
    %69 = arith.addf %67, %68 : vector<2x32xf32>
    %70 = vector.extract_strided_slice %36 {offsets = [30, 0], sizes = [2, 96], strides = [1, 1]} : vector<32x96xf32> to vector<2x96xf32>
    %cst_26 = arith.constant dense<0.000000e+00> : vector<2x96xf32>
    %71 = tpu.matmul %46, %38, %cst_26 {dimension_numbers = #tpu.dot_dimension_numbers<[1], [0], [0], [1], [0, 0, 1, 1], [], []>} : vector<2x32xf32>, vector<32x96xf32>, vector<2x96xf32> -> vector<2x96xf32>
    %72 = arith.addf %71, %44 : vector<2x96xf32>
    %73 = vector.extract_strided_slice %70 {offsets = [0, 0], sizes = [2, 64], strides = [1, 1]} : vector<2x96xf32> to vector<2x64xf32>
    %74 = vector.extract_strided_slice %72 {offsets = [0, 0], sizes = [2, 64], strides = [1, 1]} : vector<2x96xf32> to vector<2x64xf32>
    %75 = arith.addf %73, %74 : vector<2x64xf32>
    %76 = arith.negf %75 : vector<2x64xf32>
    %77 = math.exp %76 : vector<2x64xf32>
    %cst_27 = arith.constant 1.000000e+00 : f32
    %78 = vector.broadcast %cst_27 : f32 to vector<2x64xf32>
    %79 = arith.addf %78, %77 : vector<2x64xf32>
    %80 = arith.divf %78, %79 : vector<2x64xf32>
    %81 = vector.extract_strided_slice %80 {offsets = [0, 0], sizes = [2, 32], strides = [1, 1]} : vector<2x64xf32> to vector<2x32xf32>
    %82 = vector.extract_strided_slice %80 {offsets = [0, 32], sizes = [2, 32], strides = [1, 1]} : vector<2x64xf32> to vector<2x32xf32>
    %83 = vector.extract_strided_slice %70 {offsets = [0, 64], sizes = [2, 32], strides = [1, 1]} : vector<2x96xf32> to vector<2x32xf32>
    %84 = vector.extract_strided_slice %72 {offsets = [0, 64], sizes = [2, 32], strides = [1, 1]} : vector<2x96xf32> to vector<2x32xf32>
    %85 = arith.mulf %81, %84 : vector<2x32xf32>
    %86 = arith.addf %83, %85 : vector<2x32xf32>
    %87 = math.tanh %86 : vector<2x32xf32>
    %cst_28 = arith.constant 1.000000e+00 : f32
    %88 = vector.broadcast %cst_28 : f32 to vector<2x32xf32>
    %89 = arith.subf %88, %82 : vector<2x32xf32>
    %90 = arith.mulf %89, %87 : vector<2x32xf32>
    %91 = arith.mulf %82, %46 : vector<2x32xf32>
    %92 = arith.addf %90, %91 : vector<2x32xf32>
    %93 = vector.extract_strided_slice %33 {offsets = [2, 0], sizes = [2, 96], strides = [1, 1]} : vector<32x96xf32> to vector<2x96xf32>
    %cst_29 = arith.constant dense<0.000000e+00> : vector<2x96xf32>
    %94 = tpu.matmul %69, %37, %cst_29 {dimension_numbers = #tpu.dot_dimension_numbers<[1], [0], [0], [1], [0, 0, 1, 1], [], []>} : vector<2x32xf32>, vector<32x96xf32>, vector<2x96xf32> -> vector<2x96xf32>
    %95 = arith.addf %94, %41 : vector<2x96xf32>
    %96 = vector.extract_strided_slice %93 {offsets = [0, 0], sizes = [2, 64], strides = [1, 1]} : vector<2x96xf32> to vector<2x64xf32>
    %97 = vector.extract_strided_slice %95 {offsets = [0, 0], sizes = [2, 64], strides = [1, 1]} : vector<2x96xf32> to vector<2x64xf32>
    %98 = arith.addf %96, %97 : vector<2x64xf32>
    %99 = arith.negf %98 : vector<2x64xf32>
    %100 = math.exp %99 : vector<2x64xf32>
    %cst_30 = arith.constant 1.000000e+00 : f32
    %101 = vector.broadcast %cst_30 : f32 to vector<2x64xf32>
    %102 = arith.addf %101, %100 : vector<2x64xf32>
    %103 = arith.divf %101, %102 : vector<2x64xf32>
    %104 = vector.extract_strided_slice %103 {offsets = [0, 0], sizes = [2, 32], strides = [1, 1]} : vector<2x64xf32> to vector<2x32xf32>
    %105 = vector.extract_strided_slice %103 {offsets = [0, 32], sizes = [2, 32], strides = [1, 1]} : vector<2x64xf32> to vector<2x32xf32>
    %106 = vector.extract_strided_slice %93 {offsets = [0, 64], sizes = [2, 32], strides = [1, 1]} : vector<2x96xf32> to vector<2x32xf32>
    %107 = vector.extract_strided_slice %95 {offsets = [0, 64], sizes = [2, 32], strides = [1, 1]} : vector<2x96xf32> to vector<2x32xf32>
    %108 = arith.mulf %104, %107 : vector<2x32xf32>
    %109 = arith.addf %106, %108 : vector<2x32xf32>
    %110 = math.tanh %109 : vector<2x32xf32>
    %cst_31 = arith.constant 1.000000e+00 : f32
    %111 = vector.broadcast %cst_31 : f32 to vector<2x32xf32>
    %112 = arith.subf %111, %105 : vector<2x32xf32>
    %113 = arith.mulf %112, %110 : vector<2x32xf32>
    %114 = arith.mulf %105, %69 : vector<2x32xf32>
    %115 = arith.addf %113, %114 : vector<2x32xf32>
    %116 = vector.extract_strided_slice %36 {offsets = [28, 0], sizes = [2, 96], strides = [1, 1]} : vector<32x96xf32> to vector<2x96xf32>
    %cst_32 = arith.constant dense<0.000000e+00> : vector<2x96xf32>
    %117 = tpu.matmul %92, %38, %cst_32 {dimension_numbers = #tpu.dot_dimension_numbers<[1], [0], [0], [1], [0, 0, 1, 1], [], []>} : vector<2x32xf32>, vector<32x96xf32>, vector<2x96xf32> -> vector<2x96xf32>
    %118 = arith.addf %117, %44 : vector<2x96xf32>
    %119 = vector.extract_strided_slice %116 {offsets = [0, 0], sizes = [2, 64], strides = [1, 1]} : vector<2x96xf32> to vector<2x64xf32>
    %120 = vector.extract_strided_slice %118 {offsets = [0, 0], sizes = [2, 64], strides = [1, 1]} : vector<2x96xf32> to vector<2x64xf32>
    %121 = arith.addf %119, %120 : vector<2x64xf32>
    %122 = arith.negf %121 : vector<2x64xf32>
    %123 = math.exp %122 : vector<2x64xf32>
    %cst_33 = arith.constant 1.000000e+00 : f32
    %124 = vector.broadcast %cst_33 : f32 to vector<2x64xf32>
    %125 = arith.addf %124, %123 : vector<2x64xf32>
    %126 = arith.divf %124, %125 : vector<2x64xf32>
    %127 = vector.extract_strided_slice %126 {offsets = [0, 0], sizes = [2, 32], strides = [1, 1]} : vector<2x64xf32> to vector<2x32xf32>
    %128 = vector.extract_strided_slice %126 {offsets = [0, 32], sizes = [2, 32], strides = [1, 1]} : vector<2x64xf32> to vector<2x32xf32>
    %129 = vector.extract_strided_slice %116 {offsets = [0, 64], sizes = [2, 32], strides = [1, 1]} : vector<2x96xf32> to vector<2x32xf32>
    %130 = vector.extract_strided_slice %118 {offsets = [0, 64], sizes = [2, 32], strides = [1, 1]} : vector<2x96xf32> to vector<2x32xf32>
    %131 = arith.mulf %127, %130 : vector<2x32xf32>
    %132 = arith.addf %129, %131 : vector<2x32xf32>
    %133 = math.tanh %132 : vector<2x32xf32>
    %cst_34 = arith.constant 1.000000e+00 : f32
    %134 = vector.broadcast %cst_34 : f32 to vector<2x32xf32>
    %135 = arith.subf %134, %128 : vector<2x32xf32>
    %136 = arith.mulf %135, %133 : vector<2x32xf32>
    %137 = arith.mulf %128, %92 : vector<2x32xf32>
    %138 = arith.addf %136, %137 : vector<2x32xf32>
    %139 = vector.extract_strided_slice %33 {offsets = [4, 0], sizes = [2, 96], strides = [1, 1]} : vector<32x96xf32> to vector<2x96xf32>
    %cst_35 = arith.constant dense<0.000000e+00> : vector<2x96xf32>
    %140 = tpu.matmul %115, %37, %cst_35 {dimension_numbers = #tpu.dot_dimension_numbers<[1], [0], [0], [1], [0, 0, 1, 1], [], []>} : vector<2x32xf32>, vector<32x96xf32>, vector<2x96xf32> -> vector<2x96xf32>
    %141 = arith.addf %140, %41 : vector<2x96xf32>
    %142 = vector.extract_strided_slice %139 {offsets = [0, 0], sizes = [2, 64], strides = [1, 1]} : vector<2x96xf32> to vector<2x64xf32>
    %143 = vector.extract_strided_slice %141 {offsets = [0, 0], sizes = [2, 64], strides = [1, 1]} : vector<2x96xf32> to vector<2x64xf32>
    %144 = arith.addf %142, %143 : vector<2x64xf32>
    %145 = arith.negf %144 : vector<2x64xf32>
    %146 = math.exp %145 : vector<2x64xf32>
    %cst_36 = arith.constant 1.000000e+00 : f32
    %147 = vector.broadcast %cst_36 : f32 to vector<2x64xf32>
    %148 = arith.addf %147, %146 : vector<2x64xf32>
    %149 = arith.divf %147, %148 : vector<2x64xf32>
    %150 = vector.extract_strided_slice %149 {offsets = [0, 0], sizes = [2, 32], strides = [1, 1]} : vector<2x64xf32> to vector<2x32xf32>
    %151 = vector.extract_strided_slice %149 {offsets = [0, 32], sizes = [2, 32], strides = [1, 1]} : vector<2x64xf32> to vector<2x32xf32>
    %152 = vector.extract_strided_slice %139 {offsets = [0, 64], sizes = [2, 32], strides = [1, 1]} : vector<2x96xf32> to vector<2x32xf32>
    %153 = vector.extract_strided_slice %141 {offsets = [0, 64], sizes = [2, 32], strides = [1, 1]} : vector<2x96xf32> to vector<2x32xf32>
    %154 = arith.mulf %150, %153 : vector<2x32xf32>
    %155 = arith.addf %152, %154 : vector<2x32xf32>
    %156 = math.tanh %155 : vector<2x32xf32>
    %cst_37 = arith.constant 1.000000e+00 : f32
    %157 = vector.broadcast %cst_37 : f32 to vector<2x32xf32>
    %158 = arith.subf %157, %151 : vector<2x32xf32>
    %159 = arith.mulf %158, %156 : vector<2x32xf32>
    %160 = arith.mulf %151, %115 : vector<2x32xf32>
    %161 = arith.addf %159, %160 : vector<2x32xf32>
    %162 = vector.extract_strided_slice %36 {offsets = [26, 0], sizes = [2, 96], strides = [1, 1]} : vector<32x96xf32> to vector<2x96xf32>
    %cst_38 = arith.constant dense<0.000000e+00> : vector<2x96xf32>
    %163 = tpu.matmul %138, %38, %cst_38 {dimension_numbers = #tpu.dot_dimension_numbers<[1], [0], [0], [1], [0, 0, 1, 1], [], []>} : vector<2x32xf32>, vector<32x96xf32>, vector<2x96xf32> -> vector<2x96xf32>
    %164 = arith.addf %163, %44 : vector<2x96xf32>
    %165 = vector.extract_strided_slice %162 {offsets = [0, 0], sizes = [2, 64], strides = [1, 1]} : vector<2x96xf32> to vector<2x64xf32>
    %166 = vector.extract_strided_slice %164 {offsets = [0, 0], sizes = [2, 64], strides = [1, 1]} : vector<2x96xf32> to vector<2x64xf32>
    %167 = arith.addf %165, %166 : vector<2x64xf32>
    %168 = arith.negf %167 : vector<2x64xf32>
    %169 = math.exp %168 : vector<2x64xf32>
    %cst_39 = arith.constant 1.000000e+00 : f32
    %170 = vector.broadcast %cst_39 : f32 to vector<2x64xf32>
    %171 = arith.addf %170, %169 : vector<2x64xf32>
    %172 = arith.divf %170, %171 : vector<2x64xf32>
    %173 = vector.extract_strided_slice %172 {offsets = [0, 0], sizes = [2, 32], strides = [1, 1]} : vector<2x64xf32> to vector<2x32xf32>
    %174 = vector.extract_strided_slice %172 {offsets = [0, 32], sizes = [2, 32], strides = [1, 1]} : vector<2x64xf32> to vector<2x32xf32>
    %175 = vector.extract_strided_slice %162 {offsets = [0, 64], sizes = [2, 32], strides = [1, 1]} : vector<2x96xf32> to vector<2x32xf32>
    %176 = vector.extract_strided_slice %164 {offsets = [0, 64], sizes = [2, 32], strides = [1, 1]} : vector<2x96xf32> to vector<2x32xf32>
    %177 = arith.mulf %173, %176 : vector<2x32xf32>
    %178 = arith.addf %175, %177 : vector<2x32xf32>
    %179 = math.tanh %178 : vector<2x32xf32>
    %cst_40 = arith.constant 1.000000e+00 : f32
    %180 = vector.broadcast %cst_40 : f32 to vector<2x32xf32>
    %181 = arith.subf %180, %174 : vector<2x32xf32>
    %182 = arith.mulf %181, %179 : vector<2x32xf32>
    %183 = arith.mulf %174, %138 : vector<2x32xf32>
    %184 = arith.addf %182, %183 : vector<2x32xf32>
    %185 = vector.extract_strided_slice %33 {offsets = [6, 0], sizes = [2, 96], strides = [1, 1]} : vector<32x96xf32> to vector<2x96xf32>
    %cst_41 = arith.constant dense<0.000000e+00> : vector<2x96xf32>
    %186 = tpu.matmul %161, %37, %cst_41 {dimension_numbers = #tpu.dot_dimension_numbers<[1], [0], [0], [1], [0, 0, 1, 1], [], []>} : vector<2x32xf32>, vector<32x96xf32>, vector<2x96xf32> -> vector<2x96xf32>
    %187 = arith.addf %186, %41 : vector<2x96xf32>
    %188 = vector.extract_strided_slice %185 {offsets = [0, 0], sizes = [2, 64], strides = [1, 1]} : vector<2x96xf32> to vector<2x64xf32>
    %189 = vector.extract_strided_slice %187 {offsets = [0, 0], sizes = [2, 64], strides = [1, 1]} : vector<2x96xf32> to vector<2x64xf32>
    %190 = arith.addf %188, %189 : vector<2x64xf32>
    %191 = arith.negf %190 : vector<2x64xf32>
    %192 = math.exp %191 : vector<2x64xf32>
    %cst_42 = arith.constant 1.000000e+00 : f32
    %193 = vector.broadcast %cst_42 : f32 to vector<2x64xf32>
    %194 = arith.addf %193, %192 : vector<2x64xf32>
    %195 = arith.divf %193, %194 : vector<2x64xf32>
    %196 = vector.extract_strided_slice %195 {offsets = [0, 0], sizes = [2, 32], strides = [1, 1]} : vector<2x64xf32> to vector<2x32xf32>
    %197 = vector.extract_strided_slice %195 {offsets = [0, 32], sizes = [2, 32], strides = [1, 1]} : vector<2x64xf32> to vector<2x32xf32>
    %198 = vector.extract_strided_slice %185 {offsets = [0, 64], sizes = [2, 32], strides = [1, 1]} : vector<2x96xf32> to vector<2x32xf32>
    %199 = vector.extract_strided_slice %187 {offsets = [0, 64], sizes = [2, 32], strides = [1, 1]} : vector<2x96xf32> to vector<2x32xf32>
    %200 = arith.mulf %196, %199 : vector<2x32xf32>
    %201 = arith.addf %198, %200 : vector<2x32xf32>
    %202 = math.tanh %201 : vector<2x32xf32>
    %cst_43 = arith.constant 1.000000e+00 : f32
    %203 = vector.broadcast %cst_43 : f32 to vector<2x32xf32>
    %204 = arith.subf %203, %197 : vector<2x32xf32>
    %205 = arith.mulf %204, %202 : vector<2x32xf32>
    %206 = arith.mulf %197, %161 : vector<2x32xf32>
    %207 = arith.addf %205, %206 : vector<2x32xf32>
    %208 = vector.extract_strided_slice %36 {offsets = [24, 0], sizes = [2, 96], strides = [1, 1]} : vector<32x96xf32> to vector<2x96xf32>
    %cst_44 = arith.constant dense<0.000000e+00> : vector<2x96xf32>
    %209 = tpu.matmul %184, %38, %cst_44 {dimension_numbers = #tpu.dot_dimension_numbers<[1], [0], [0], [1], [0, 0, 1, 1], [], []>} : vector<2x32xf32>, vector<32x96xf32>, vector<2x96xf32> -> vector<2x96xf32>
    %210 = arith.addf %209, %44 : vector<2x96xf32>
    %211 = vector.extract_strided_slice %208 {offsets = [0, 0], sizes = [2, 64], strides = [1, 1]} : vector<2x96xf32> to vector<2x64xf32>
    %212 = vector.extract_strided_slice %210 {offsets = [0, 0], sizes = [2, 64], strides = [1, 1]} : vector<2x96xf32> to vector<2x64xf32>
    %213 = arith.addf %211, %212 : vector<2x64xf32>
    %214 = arith.negf %213 : vector<2x64xf32>
    %215 = math.exp %214 : vector<2x64xf32>
    %cst_45 = arith.constant 1.000000e+00 : f32
    %216 = vector.broadcast %cst_45 : f32 to vector<2x64xf32>
    %217 = arith.addf %216, %215 : vector<2x64xf32>
    %218 = arith.divf %216, %217 : vector<2x64xf32>
    %219 = vector.extract_strided_slice %218 {offsets = [0, 0], sizes = [2, 32], strides = [1, 1]} : vector<2x64xf32> to vector<2x32xf32>
    %220 = vector.extract_strided_slice %218 {offsets = [0, 32], sizes = [2, 32], strides = [1, 1]} : vector<2x64xf32> to vector<2x32xf32>
    %221 = vector.extract_strided_slice %208 {offsets = [0, 64], sizes = [2, 32], strides = [1, 1]} : vector<2x96xf32> to vector<2x32xf32>
    %222 = vector.extract_strided_slice %210 {offsets = [0, 64], sizes = [2, 32], strides = [1, 1]} : vector<2x96xf32> to vector<2x32xf32>
    %223 = arith.mulf %219, %222 : vector<2x32xf32>
    %224 = arith.addf %221, %223 : vector<2x32xf32>
    %225 = math.tanh %224 : vector<2x32xf32>
    %cst_46 = arith.constant 1.000000e+00 : f32
    %226 = vector.broadcast %cst_46 : f32 to vector<2x32xf32>
    %227 = arith.subf %226, %220 : vector<2x32xf32>
    %228 = arith.mulf %227, %225 : vector<2x32xf32>
    %229 = arith.mulf %220, %184 : vector<2x32xf32>
    %230 = arith.addf %228, %229 : vector<2x32xf32>
    %231 = vector.extract_strided_slice %33 {offsets = [8, 0], sizes = [2, 96], strides = [1, 1]} : vector<32x96xf32> to vector<2x96xf32>
    %cst_47 = arith.constant dense<0.000000e+00> : vector<2x96xf32>
    %232 = tpu.matmul %207, %37, %cst_47 {dimension_numbers = #tpu.dot_dimension_numbers<[1], [0], [0], [1], [0, 0, 1, 1], [], []>} : vector<2x32xf32>, vector<32x96xf32>, vector<2x96xf32> -> vector<2x96xf32>
    %233 = arith.addf %232, %41 : vector<2x96xf32>
    %234 = vector.extract_strided_slice %231 {offsets = [0, 0], sizes = [2, 64], strides = [1, 1]} : vector<2x96xf32> to vector<2x64xf32>
    %235 = vector.extract_strided_slice %233 {offsets = [0, 0], sizes = [2, 64], strides = [1, 1]} : vector<2x96xf32> to vector<2x64xf32>
    %236 = arith.addf %234, %235 : vector<2x64xf32>
    %237 = arith.negf %236 : vector<2x64xf32>
    %238 = math.exp %237 : vector<2x64xf32>
    %cst_48 = arith.constant 1.000000e+00 : f32
    %239 = vector.broadcast %cst_48 : f32 to vector<2x64xf32>
    %240 = arith.addf %239, %238 : vector<2x64xf32>
    %241 = arith.divf %239, %240 : vector<2x64xf32>
    %242 = vector.extract_strided_slice %241 {offsets = [0, 0], sizes = [2, 32], strides = [1, 1]} : vector<2x64xf32> to vector<2x32xf32>
    %243 = vector.extract_strided_slice %241 {offsets = [0, 32], sizes = [2, 32], strides = [1, 1]} : vector<2x64xf32> to vector<2x32xf32>
    %244 = vector.extract_strided_slice %231 {offsets = [0, 64], sizes = [2, 32], strides = [1, 1]} : vector<2x96xf32> to vector<2x32xf32>
    %245 = vector.extract_strided_slice %233 {offsets = [0, 64], sizes = [2, 32], strides = [1, 1]} : vector<2x96xf32> to vector<2x32xf32>
    %246 = arith.mulf %242, %245 : vector<2x32xf32>
    %247 = arith.addf %244, %246 : vector<2x32xf32>
    %248 = math.tanh %247 : vector<2x32xf32>
    %cst_49 = arith.constant 1.000000e+00 : f32
    %249 = vector.broadcast %cst_49 : f32 to vector<2x32xf32>
    %250 = arith.subf %249, %243 : vector<2x32xf32>
    %251 = arith.mulf %250, %248 : vector<2x32xf32>
    %252 = arith.mulf %243, %207 : vector<2x32xf32>
    %253 = arith.addf %251, %252 : vector<2x32xf32>
    %254 = vector.extract_strided_slice %36 {offsets = [22, 0], sizes = [2, 96], strides = [1, 1]} : vector<32x96xf32> to vector<2x96xf32>
    %cst_50 = arith.constant dense<0.000000e+00> : vector<2x96xf32>
    %255 = tpu.matmul %230, %38, %cst_50 {dimension_numbers = #tpu.dot_dimension_numbers<[1], [0], [0], [1], [0, 0, 1, 1], [], []>} : vector<2x32xf32>, vector<32x96xf32>, vector<2x96xf32> -> vector<2x96xf32>
    %256 = arith.addf %255, %44 : vector<2x96xf32>
    %257 = vector.extract_strided_slice %254 {offsets = [0, 0], sizes = [2, 64], strides = [1, 1]} : vector<2x96xf32> to vector<2x64xf32>
    %258 = vector.extract_strided_slice %256 {offsets = [0, 0], sizes = [2, 64], strides = [1, 1]} : vector<2x96xf32> to vector<2x64xf32>
    %259 = arith.addf %257, %258 : vector<2x64xf32>
    %260 = arith.negf %259 : vector<2x64xf32>
    %261 = math.exp %260 : vector<2x64xf32>
    %cst_51 = arith.constant 1.000000e+00 : f32
    %262 = vector.broadcast %cst_51 : f32 to vector<2x64xf32>
    %263 = arith.addf %262, %261 : vector<2x64xf32>
    %264 = arith.divf %262, %263 : vector<2x64xf32>
    %265 = vector.extract_strided_slice %264 {offsets = [0, 0], sizes = [2, 32], strides = [1, 1]} : vector<2x64xf32> to vector<2x32xf32>
    %266 = vector.extract_strided_slice %264 {offsets = [0, 32], sizes = [2, 32], strides = [1, 1]} : vector<2x64xf32> to vector<2x32xf32>
    %267 = vector.extract_strided_slice %254 {offsets = [0, 64], sizes = [2, 32], strides = [1, 1]} : vector<2x96xf32> to vector<2x32xf32>
    %268 = vector.extract_strided_slice %256 {offsets = [0, 64], sizes = [2, 32], strides = [1, 1]} : vector<2x96xf32> to vector<2x32xf32>
    %269 = arith.mulf %265, %268 : vector<2x32xf32>
    %270 = arith.addf %267, %269 : vector<2x32xf32>
    %271 = math.tanh %270 : vector<2x32xf32>
    %cst_52 = arith.constant 1.000000e+00 : f32
    %272 = vector.broadcast %cst_52 : f32 to vector<2x32xf32>
    %273 = arith.subf %272, %266 : vector<2x32xf32>
    %274 = arith.mulf %273, %271 : vector<2x32xf32>
    %275 = arith.mulf %266, %230 : vector<2x32xf32>
    %276 = arith.addf %274, %275 : vector<2x32xf32>
    %277 = vector.extract_strided_slice %33 {offsets = [10, 0], sizes = [2, 96], strides = [1, 1]} : vector<32x96xf32> to vector<2x96xf32>
    %cst_53 = arith.constant dense<0.000000e+00> : vector<2x96xf32>
    %278 = tpu.matmul %253, %37, %cst_53 {dimension_numbers = #tpu.dot_dimension_numbers<[1], [0], [0], [1], [0, 0, 1, 1], [], []>} : vector<2x32xf32>, vector<32x96xf32>, vector<2x96xf32> -> vector<2x96xf32>
    %279 = arith.addf %278, %41 : vector<2x96xf32>
    %280 = vector.extract_strided_slice %277 {offsets = [0, 0], sizes = [2, 64], strides = [1, 1]} : vector<2x96xf32> to vector<2x64xf32>
    %281 = vector.extract_strided_slice %279 {offsets = [0, 0], sizes = [2, 64], strides = [1, 1]} : vector<2x96xf32> to vector<2x64xf32>
    %282 = arith.addf %280, %281 : vector<2x64xf32>
    %283 = arith.negf %282 : vector<2x64xf32>
    %284 = math.exp %283 : vector<2x64xf32>
    %cst_54 = arith.constant 1.000000e+00 : f32
    %285 = vector.broadcast %cst_54 : f32 to vector<2x64xf32>
    %286 = arith.addf %285, %284 : vector<2x64xf32>
    %287 = arith.divf %285, %286 : vector<2x64xf32>
    %288 = vector.extract_strided_slice %287 {offsets = [0, 0], sizes = [2, 32], strides = [1, 1]} : vector<2x64xf32> to vector<2x32xf32>
    %289 = vector.extract_strided_slice %287 {offsets = [0, 32], sizes = [2, 32], strides = [1, 1]} : vector<2x64xf32> to vector<2x32xf32>
    %290 = vector.extract_strided_slice %277 {offsets = [0, 64], sizes = [2, 32], strides = [1, 1]} : vector<2x96xf32> to vector<2x32xf32>
    %291 = vector.extract_strided_slice %279 {offsets = [0, 64], sizes = [2, 32], strides = [1, 1]} : vector<2x96xf32> to vector<2x32xf32>
    %292 = arith.mulf %288, %291 : vector<2x32xf32>
    %293 = arith.addf %290, %292 : vector<2x32xf32>
    %294 = math.tanh %293 : vector<2x32xf32>
    %cst_55 = arith.constant 1.000000e+00 : f32
    %295 = vector.broadcast %cst_55 : f32 to vector<2x32xf32>
    %296 = arith.subf %295, %289 : vector<2x32xf32>
    %297 = arith.mulf %296, %294 : vector<2x32xf32>
    %298 = arith.mulf %289, %253 : vector<2x32xf32>
    %299 = arith.addf %297, %298 : vector<2x32xf32>
    %300 = vector.extract_strided_slice %36 {offsets = [20, 0], sizes = [2, 96], strides = [1, 1]} : vector<32x96xf32> to vector<2x96xf32>
    %cst_56 = arith.constant dense<0.000000e+00> : vector<2x96xf32>
    %301 = tpu.matmul %276, %38, %cst_56 {dimension_numbers = #tpu.dot_dimension_numbers<[1], [0], [0], [1], [0, 0, 1, 1], [], []>} : vector<2x32xf32>, vector<32x96xf32>, vector<2x96xf32> -> vector<2x96xf32>
    %302 = arith.addf %301, %44 : vector<2x96xf32>
    %303 = vector.extract_strided_slice %300 {offsets = [0, 0], sizes = [2, 64], strides = [1, 1]} : vector<2x96xf32> to vector<2x64xf32>
    %304 = vector.extract_strided_slice %302 {offsets = [0, 0], sizes = [2, 64], strides = [1, 1]} : vector<2x96xf32> to vector<2x64xf32>
    %305 = arith.addf %303, %304 : vector<2x64xf32>
    %306 = arith.negf %305 : vector<2x64xf32>
    %307 = math.exp %306 : vector<2x64xf32>
    %cst_57 = arith.constant 1.000000e+00 : f32
    %308 = vector.broadcast %cst_57 : f32 to vector<2x64xf32>
    %309 = arith.addf %308, %307 : vector<2x64xf32>
    %310 = arith.divf %308, %309 : vector<2x64xf32>
    %311 = vector.extract_strided_slice %310 {offsets = [0, 0], sizes = [2, 32], strides = [1, 1]} : vector<2x64xf32> to vector<2x32xf32>
    %312 = vector.extract_strided_slice %310 {offsets = [0, 32], sizes = [2, 32], strides = [1, 1]} : vector<2x64xf32> to vector<2x32xf32>
    %313 = vector.extract_strided_slice %300 {offsets = [0, 64], sizes = [2, 32], strides = [1, 1]} : vector<2x96xf32> to vector<2x32xf32>
    %314 = vector.extract_strided_slice %302 {offsets = [0, 64], sizes = [2, 32], strides = [1, 1]} : vector<2x96xf32> to vector<2x32xf32>
    %315 = arith.mulf %311, %314 : vector<2x32xf32>
    %316 = arith.addf %313, %315 : vector<2x32xf32>
    %317 = math.tanh %316 : vector<2x32xf32>
    %cst_58 = arith.constant 1.000000e+00 : f32
    %318 = vector.broadcast %cst_58 : f32 to vector<2x32xf32>
    %319 = arith.subf %318, %312 : vector<2x32xf32>
    %320 = arith.mulf %319, %317 : vector<2x32xf32>
    %321 = arith.mulf %312, %276 : vector<2x32xf32>
    %322 = arith.addf %320, %321 : vector<2x32xf32>
    %323 = vector.extract_strided_slice %33 {offsets = [12, 0], sizes = [2, 96], strides = [1, 1]} : vector<32x96xf32> to vector<2x96xf32>
    %cst_59 = arith.constant dense<0.000000e+00> : vector<2x96xf32>
    %324 = tpu.matmul %299, %37, %cst_59 {dimension_numbers = #tpu.dot_dimension_numbers<[1], [0], [0], [1], [0, 0, 1, 1], [], []>} : vector<2x32xf32>, vector<32x96xf32>, vector<2x96xf32> -> vector<2x96xf32>
    %325 = arith.addf %324, %41 : vector<2x96xf32>
    %326 = vector.extract_strided_slice %323 {offsets = [0, 0], sizes = [2, 64], strides = [1, 1]} : vector<2x96xf32> to vector<2x64xf32>
    %327 = vector.extract_strided_slice %325 {offsets = [0, 0], sizes = [2, 64], strides = [1, 1]} : vector<2x96xf32> to vector<2x64xf32>
    %328 = arith.addf %326, %327 : vector<2x64xf32>
    %329 = arith.negf %328 : vector<2x64xf32>
    %330 = math.exp %329 : vector<2x64xf32>
    %cst_60 = arith.constant 1.000000e+00 : f32
    %331 = vector.broadcast %cst_60 : f32 to vector<2x64xf32>
    %332 = arith.addf %331, %330 : vector<2x64xf32>
    %333 = arith.divf %331, %332 : vector<2x64xf32>
    %334 = vector.extract_strided_slice %333 {offsets = [0, 0], sizes = [2, 32], strides = [1, 1]} : vector<2x64xf32> to vector<2x32xf32>
    %335 = vector.extract_strided_slice %333 {offsets = [0, 32], sizes = [2, 32], strides = [1, 1]} : vector<2x64xf32> to vector<2x32xf32>
    %336 = vector.extract_strided_slice %323 {offsets = [0, 64], sizes = [2, 32], strides = [1, 1]} : vector<2x96xf32> to vector<2x32xf32>
    %337 = vector.extract_strided_slice %325 {offsets = [0, 64], sizes = [2, 32], strides = [1, 1]} : vector<2x96xf32> to vector<2x32xf32>
    %338 = arith.mulf %334, %337 : vector<2x32xf32>
    %339 = arith.addf %336, %338 : vector<2x32xf32>
    %340 = math.tanh %339 : vector<2x32xf32>
    %cst_61 = arith.constant 1.000000e+00 : f32
    %341 = vector.broadcast %cst_61 : f32 to vector<2x32xf32>
    %342 = arith.subf %341, %335 : vector<2x32xf32>
    %343 = arith.mulf %342, %340 : vector<2x32xf32>
    %344 = arith.mulf %335, %299 : vector<2x32xf32>
    %345 = arith.addf %343, %344 : vector<2x32xf32>
    %346 = vector.extract_strided_slice %36 {offsets = [18, 0], sizes = [2, 96], strides = [1, 1]} : vector<32x96xf32> to vector<2x96xf32>
    %cst_62 = arith.constant dense<0.000000e+00> : vector<2x96xf32>
    %347 = tpu.matmul %322, %38, %cst_62 {dimension_numbers = #tpu.dot_dimension_numbers<[1], [0], [0], [1], [0, 0, 1, 1], [], []>} : vector<2x32xf32>, vector<32x96xf32>, vector<2x96xf32> -> vector<2x96xf32>
    %348 = arith.addf %347, %44 : vector<2x96xf32>
    %349 = vector.extract_strided_slice %346 {offsets = [0, 0], sizes = [2, 64], strides = [1, 1]} : vector<2x96xf32> to vector<2x64xf32>
    %350 = vector.extract_strided_slice %348 {offsets = [0, 0], sizes = [2, 64], strides = [1, 1]} : vector<2x96xf32> to vector<2x64xf32>
    %351 = arith.addf %349, %350 : vector<2x64xf32>
    %352 = arith.negf %351 : vector<2x64xf32>
    %353 = math.exp %352 : vector<2x64xf32>
    %cst_63 = arith.constant 1.000000e+00 : f32
    %354 = vector.broadcast %cst_63 : f32 to vector<2x64xf32>
    %355 = arith.addf %354, %353 : vector<2x64xf32>
    %356 = arith.divf %354, %355 : vector<2x64xf32>
    %357 = vector.extract_strided_slice %356 {offsets = [0, 0], sizes = [2, 32], strides = [1, 1]} : vector<2x64xf32> to vector<2x32xf32>
    %358 = vector.extract_strided_slice %356 {offsets = [0, 32], sizes = [2, 32], strides = [1, 1]} : vector<2x64xf32> to vector<2x32xf32>
    %359 = vector.extract_strided_slice %346 {offsets = [0, 64], sizes = [2, 32], strides = [1, 1]} : vector<2x96xf32> to vector<2x32xf32>
    %360 = vector.extract_strided_slice %348 {offsets = [0, 64], sizes = [2, 32], strides = [1, 1]} : vector<2x96xf32> to vector<2x32xf32>
    %361 = arith.mulf %357, %360 : vector<2x32xf32>
    %362 = arith.addf %359, %361 : vector<2x32xf32>
    %363 = math.tanh %362 : vector<2x32xf32>
    %cst_64 = arith.constant 1.000000e+00 : f32
    %364 = vector.broadcast %cst_64 : f32 to vector<2x32xf32>
    %365 = arith.subf %364, %358 : vector<2x32xf32>
    %366 = arith.mulf %365, %363 : vector<2x32xf32>
    %367 = arith.mulf %358, %322 : vector<2x32xf32>
    %368 = arith.addf %366, %367 : vector<2x32xf32>
    %369 = vector.extract_strided_slice %33 {offsets = [14, 0], sizes = [2, 96], strides = [1, 1]} : vector<32x96xf32> to vector<2x96xf32>
    %cst_65 = arith.constant dense<0.000000e+00> : vector<2x96xf32>
    %370 = tpu.matmul %345, %37, %cst_65 {dimension_numbers = #tpu.dot_dimension_numbers<[1], [0], [0], [1], [0, 0, 1, 1], [], []>} : vector<2x32xf32>, vector<32x96xf32>, vector<2x96xf32> -> vector<2x96xf32>
    %371 = arith.addf %370, %41 : vector<2x96xf32>
    %372 = vector.extract_strided_slice %369 {offsets = [0, 0], sizes = [2, 64], strides = [1, 1]} : vector<2x96xf32> to vector<2x64xf32>
    %373 = vector.extract_strided_slice %371 {offsets = [0, 0], sizes = [2, 64], strides = [1, 1]} : vector<2x96xf32> to vector<2x64xf32>
    %374 = arith.addf %372, %373 : vector<2x64xf32>
    %375 = arith.negf %374 : vector<2x64xf32>
    %376 = math.exp %375 : vector<2x64xf32>
    %cst_66 = arith.constant 1.000000e+00 : f32
    %377 = vector.broadcast %cst_66 : f32 to vector<2x64xf32>
    %378 = arith.addf %377, %376 : vector<2x64xf32>
    %379 = arith.divf %377, %378 : vector<2x64xf32>
    %380 = vector.extract_strided_slice %379 {offsets = [0, 0], sizes = [2, 32], strides = [1, 1]} : vector<2x64xf32> to vector<2x32xf32>
    %381 = vector.extract_strided_slice %379 {offsets = [0, 32], sizes = [2, 32], strides = [1, 1]} : vector<2x64xf32> to vector<2x32xf32>
    %382 = vector.extract_strided_slice %369 {offsets = [0, 64], sizes = [2, 32], strides = [1, 1]} : vector<2x96xf32> to vector<2x32xf32>
    %383 = vector.extract_strided_slice %371 {offsets = [0, 64], sizes = [2, 32], strides = [1, 1]} : vector<2x96xf32> to vector<2x32xf32>
    %384 = arith.mulf %380, %383 : vector<2x32xf32>
    %385 = arith.addf %382, %384 : vector<2x32xf32>
    %386 = math.tanh %385 : vector<2x32xf32>
    %cst_67 = arith.constant 1.000000e+00 : f32
    %387 = vector.broadcast %cst_67 : f32 to vector<2x32xf32>
    %388 = arith.subf %387, %381 : vector<2x32xf32>
    %389 = arith.mulf %388, %386 : vector<2x32xf32>
    %390 = arith.mulf %381, %345 : vector<2x32xf32>
    %391 = arith.addf %389, %390 : vector<2x32xf32>
    %392 = vector.extract_strided_slice %36 {offsets = [16, 0], sizes = [2, 96], strides = [1, 1]} : vector<32x96xf32> to vector<2x96xf32>
    %cst_68 = arith.constant dense<0.000000e+00> : vector<2x96xf32>
    %393 = tpu.matmul %368, %38, %cst_68 {dimension_numbers = #tpu.dot_dimension_numbers<[1], [0], [0], [1], [0, 0, 1, 1], [], []>} : vector<2x32xf32>, vector<32x96xf32>, vector<2x96xf32> -> vector<2x96xf32>
    %394 = arith.addf %393, %44 : vector<2x96xf32>
    %395 = vector.extract_strided_slice %392 {offsets = [0, 0], sizes = [2, 64], strides = [1, 1]} : vector<2x96xf32> to vector<2x64xf32>
    %396 = vector.extract_strided_slice %394 {offsets = [0, 0], sizes = [2, 64], strides = [1, 1]} : vector<2x96xf32> to vector<2x64xf32>
    %397 = arith.addf %395, %396 : vector<2x64xf32>
    %398 = arith.negf %397 : vector<2x64xf32>
    %399 = math.exp %398 : vector<2x64xf32>
    %cst_69 = arith.constant 1.000000e+00 : f32
    %400 = vector.broadcast %cst_69 : f32 to vector<2x64xf32>
    %401 = arith.addf %400, %399 : vector<2x64xf32>
    %402 = arith.divf %400, %401 : vector<2x64xf32>
    %403 = vector.extract_strided_slice %402 {offsets = [0, 0], sizes = [2, 32], strides = [1, 1]} : vector<2x64xf32> to vector<2x32xf32>
    %404 = vector.extract_strided_slice %402 {offsets = [0, 32], sizes = [2, 32], strides = [1, 1]} : vector<2x64xf32> to vector<2x32xf32>
    %405 = vector.extract_strided_slice %392 {offsets = [0, 64], sizes = [2, 32], strides = [1, 1]} : vector<2x96xf32> to vector<2x32xf32>
    %406 = vector.extract_strided_slice %394 {offsets = [0, 64], sizes = [2, 32], strides = [1, 1]} : vector<2x96xf32> to vector<2x32xf32>
    %407 = arith.mulf %403, %406 : vector<2x32xf32>
    %408 = arith.addf %405, %407 : vector<2x32xf32>
    %409 = math.tanh %408 : vector<2x32xf32>
    %cst_70 = arith.constant 1.000000e+00 : f32
    %410 = vector.broadcast %cst_70 : f32 to vector<2x32xf32>
    %411 = arith.subf %410, %404 : vector<2x32xf32>
    %412 = arith.mulf %411, %409 : vector<2x32xf32>
    %413 = arith.mulf %404, %368 : vector<2x32xf32>
    %414 = arith.addf %412, %413 : vector<2x32xf32>
    %415 = vector.extract_strided_slice %33 {offsets = [16, 0], sizes = [2, 96], strides = [1, 1]} : vector<32x96xf32> to vector<2x96xf32>
    %cst_71 = arith.constant dense<0.000000e+00> : vector<2x96xf32>
    %416 = tpu.matmul %391, %37, %cst_71 {dimension_numbers = #tpu.dot_dimension_numbers<[1], [0], [0], [1], [0, 0, 1, 1], [], []>} : vector<2x32xf32>, vector<32x96xf32>, vector<2x96xf32> -> vector<2x96xf32>
    %417 = arith.addf %416, %41 : vector<2x96xf32>
    %418 = vector.extract_strided_slice %415 {offsets = [0, 0], sizes = [2, 64], strides = [1, 1]} : vector<2x96xf32> to vector<2x64xf32>
    %419 = vector.extract_strided_slice %417 {offsets = [0, 0], sizes = [2, 64], strides = [1, 1]} : vector<2x96xf32> to vector<2x64xf32>
    %420 = arith.addf %418, %419 : vector<2x64xf32>
    %421 = arith.negf %420 : vector<2x64xf32>
    %422 = math.exp %421 : vector<2x64xf32>
    %cst_72 = arith.constant 1.000000e+00 : f32
    %423 = vector.broadcast %cst_72 : f32 to vector<2x64xf32>
    %424 = arith.addf %423, %422 : vector<2x64xf32>
    %425 = arith.divf %423, %424 : vector<2x64xf32>
    %426 = vector.extract_strided_slice %425 {offsets = [0, 0], sizes = [2, 32], strides = [1, 1]} : vector<2x64xf32> to vector<2x32xf32>
    %427 = vector.extract_strided_slice %425 {offsets = [0, 32], sizes = [2, 32], strides = [1, 1]} : vector<2x64xf32> to vector<2x32xf32>
    %428 = vector.extract_strided_slice %415 {offsets = [0, 64], sizes = [2, 32], strides = [1, 1]} : vector<2x96xf32> to vector<2x32xf32>
    %429 = vector.extract_strided_slice %417 {offsets = [0, 64], sizes = [2, 32], strides = [1, 1]} : vector<2x96xf32> to vector<2x32xf32>
    %430 = arith.mulf %426, %429 : vector<2x32xf32>
    %431 = arith.addf %428, %430 : vector<2x32xf32>
    %432 = math.tanh %431 : vector<2x32xf32>
    %cst_73 = arith.constant 1.000000e+00 : f32
    %433 = vector.broadcast %cst_73 : f32 to vector<2x32xf32>
    %434 = arith.subf %433, %427 : vector<2x32xf32>
    %435 = arith.mulf %434, %432 : vector<2x32xf32>
    %436 = arith.mulf %427, %391 : vector<2x32xf32>
    %437 = arith.addf %435, %436 : vector<2x32xf32>
    %438 = vector.extract_strided_slice %36 {offsets = [14, 0], sizes = [2, 96], strides = [1, 1]} : vector<32x96xf32> to vector<2x96xf32>
    %cst_74 = arith.constant dense<0.000000e+00> : vector<2x96xf32>
    %439 = tpu.matmul %414, %38, %cst_74 {dimension_numbers = #tpu.dot_dimension_numbers<[1], [0], [0], [1], [0, 0, 1, 1], [], []>} : vector<2x32xf32>, vector<32x96xf32>, vector<2x96xf32> -> vector<2x96xf32>
    %440 = arith.addf %439, %44 : vector<2x96xf32>
    %441 = vector.extract_strided_slice %438 {offsets = [0, 0], sizes = [2, 64], strides = [1, 1]} : vector<2x96xf32> to vector<2x64xf32>
    %442 = vector.extract_strided_slice %440 {offsets = [0, 0], sizes = [2, 64], strides = [1, 1]} : vector<2x96xf32> to vector<2x64xf32>
    %443 = arith.addf %441, %442 : vector<2x64xf32>
    %444 = arith.negf %443 : vector<2x64xf32>
    %445 = math.exp %444 : vector<2x64xf32>
    %cst_75 = arith.constant 1.000000e+00 : f32
    %446 = vector.broadcast %cst_75 : f32 to vector<2x64xf32>
    %447 = arith.addf %446, %445 : vector<2x64xf32>
    %448 = arith.divf %446, %447 : vector<2x64xf32>
    %449 = vector.extract_strided_slice %448 {offsets = [0, 0], sizes = [2, 32], strides = [1, 1]} : vector<2x64xf32> to vector<2x32xf32>
    %450 = vector.extract_strided_slice %448 {offsets = [0, 32], sizes = [2, 32], strides = [1, 1]} : vector<2x64xf32> to vector<2x32xf32>
    %451 = vector.extract_strided_slice %438 {offsets = [0, 64], sizes = [2, 32], strides = [1, 1]} : vector<2x96xf32> to vector<2x32xf32>
    %452 = vector.extract_strided_slice %440 {offsets = [0, 64], sizes = [2, 32], strides = [1, 1]} : vector<2x96xf32> to vector<2x32xf32>
    %453 = arith.mulf %449, %452 : vector<2x32xf32>
    %454 = arith.addf %451, %453 : vector<2x32xf32>
    %455 = math.tanh %454 : vector<2x32xf32>
    %cst_76 = arith.constant 1.000000e+00 : f32
    %456 = vector.broadcast %cst_76 : f32 to vector<2x32xf32>
    %457 = arith.subf %456, %450 : vector<2x32xf32>
    %458 = arith.mulf %457, %455 : vector<2x32xf32>
    %459 = arith.mulf %450, %414 : vector<2x32xf32>
    %460 = arith.addf %458, %459 : vector<2x32xf32>
    %461 = vector.extract_strided_slice %33 {offsets = [18, 0], sizes = [2, 96], strides = [1, 1]} : vector<32x96xf32> to vector<2x96xf32>
    %cst_77 = arith.constant dense<0.000000e+00> : vector<2x96xf32>
    %462 = tpu.matmul %437, %37, %cst_77 {dimension_numbers = #tpu.dot_dimension_numbers<[1], [0], [0], [1], [0, 0, 1, 1], [], []>} : vector<2x32xf32>, vector<32x96xf32>, vector<2x96xf32> -> vector<2x96xf32>
    %463 = arith.addf %462, %41 : vector<2x96xf32>
    %464 = vector.extract_strided_slice %461 {offsets = [0, 0], sizes = [2, 64], strides = [1, 1]} : vector<2x96xf32> to vector<2x64xf32>
    %465 = vector.extract_strided_slice %463 {offsets = [0, 0], sizes = [2, 64], strides = [1, 1]} : vector<2x96xf32> to vector<2x64xf32>
    %466 = arith.addf %464, %465 : vector<2x64xf32>
    %467 = arith.negf %466 : vector<2x64xf32>
    %468 = math.exp %467 : vector<2x64xf32>
    %cst_78 = arith.constant 1.000000e+00 : f32
    %469 = vector.broadcast %cst_78 : f32 to vector<2x64xf32>
    %470 = arith.addf %469, %468 : vector<2x64xf32>
    %471 = arith.divf %469, %470 : vector<2x64xf32>
    %472 = vector.extract_strided_slice %471 {offsets = [0, 0], sizes = [2, 32], strides = [1, 1]} : vector<2x64xf32> to vector<2x32xf32>
    %473 = vector.extract_strided_slice %471 {offsets = [0, 32], sizes = [2, 32], strides = [1, 1]} : vector<2x64xf32> to vector<2x32xf32>
    %474 = vector.extract_strided_slice %461 {offsets = [0, 64], sizes = [2, 32], strides = [1, 1]} : vector<2x96xf32> to vector<2x32xf32>
    %475 = vector.extract_strided_slice %463 {offsets = [0, 64], sizes = [2, 32], strides = [1, 1]} : vector<2x96xf32> to vector<2x32xf32>
    %476 = arith.mulf %472, %475 : vector<2x32xf32>
    %477 = arith.addf %474, %476 : vector<2x32xf32>
    %478 = math.tanh %477 : vector<2x32xf32>
    %cst_79 = arith.constant 1.000000e+00 : f32
    %479 = vector.broadcast %cst_79 : f32 to vector<2x32xf32>
    %480 = arith.subf %479, %473 : vector<2x32xf32>
    %481 = arith.mulf %480, %478 : vector<2x32xf32>
    %482 = arith.mulf %473, %437 : vector<2x32xf32>
    %483 = arith.addf %481, %482 : vector<2x32xf32>
    %484 = vector.extract_strided_slice %36 {offsets = [12, 0], sizes = [2, 96], strides = [1, 1]} : vector<32x96xf32> to vector<2x96xf32>
    %cst_80 = arith.constant dense<0.000000e+00> : vector<2x96xf32>
    %485 = tpu.matmul %460, %38, %cst_80 {dimension_numbers = #tpu.dot_dimension_numbers<[1], [0], [0], [1], [0, 0, 1, 1], [], []>} : vector<2x32xf32>, vector<32x96xf32>, vector<2x96xf32> -> vector<2x96xf32>
    %486 = arith.addf %485, %44 : vector<2x96xf32>
    %487 = vector.extract_strided_slice %484 {offsets = [0, 0], sizes = [2, 64], strides = [1, 1]} : vector<2x96xf32> to vector<2x64xf32>
    %488 = vector.extract_strided_slice %486 {offsets = [0, 0], sizes = [2, 64], strides = [1, 1]} : vector<2x96xf32> to vector<2x64xf32>
    %489 = arith.addf %487, %488 : vector<2x64xf32>
    %490 = arith.negf %489 : vector<2x64xf32>
    %491 = math.exp %490 : vector<2x64xf32>
    %cst_81 = arith.constant 1.000000e+00 : f32
    %492 = vector.broadcast %cst_81 : f32 to vector<2x64xf32>
    %493 = arith.addf %492, %491 : vector<2x64xf32>
    %494 = arith.divf %492, %493 : vector<2x64xf32>
    %495 = vector.extract_strided_slice %494 {offsets = [0, 0], sizes = [2, 32], strides = [1, 1]} : vector<2x64xf32> to vector<2x32xf32>
    %496 = vector.extract_strided_slice %494 {offsets = [0, 32], sizes = [2, 32], strides = [1, 1]} : vector<2x64xf32> to vector<2x32xf32>
    %497 = vector.extract_strided_slice %484 {offsets = [0, 64], sizes = [2, 32], strides = [1, 1]} : vector<2x96xf32> to vector<2x32xf32>
    %498 = vector.extract_strided_slice %486 {offsets = [0, 64], sizes = [2, 32], strides = [1, 1]} : vector<2x96xf32> to vector<2x32xf32>
    %499 = arith.mulf %495, %498 : vector<2x32xf32>
    %500 = arith.addf %497, %499 : vector<2x32xf32>
    %501 = math.tanh %500 : vector<2x32xf32>
    %cst_82 = arith.constant 1.000000e+00 : f32
    %502 = vector.broadcast %cst_82 : f32 to vector<2x32xf32>
    %503 = arith.subf %502, %496 : vector<2x32xf32>
    %504 = arith.mulf %503, %501 : vector<2x32xf32>
    %505 = arith.mulf %496, %460 : vector<2x32xf32>
    %506 = arith.addf %504, %505 : vector<2x32xf32>
    %507 = vector.extract_strided_slice %33 {offsets = [20, 0], sizes = [2, 96], strides = [1, 1]} : vector<32x96xf32> to vector<2x96xf32>
    %cst_83 = arith.constant dense<0.000000e+00> : vector<2x96xf32>
    %508 = tpu.matmul %483, %37, %cst_83 {dimension_numbers = #tpu.dot_dimension_numbers<[1], [0], [0], [1], [0, 0, 1, 1], [], []>} : vector<2x32xf32>, vector<32x96xf32>, vector<2x96xf32> -> vector<2x96xf32>
    %509 = arith.addf %508, %41 : vector<2x96xf32>
    %510 = vector.extract_strided_slice %507 {offsets = [0, 0], sizes = [2, 64], strides = [1, 1]} : vector<2x96xf32> to vector<2x64xf32>
    %511 = vector.extract_strided_slice %509 {offsets = [0, 0], sizes = [2, 64], strides = [1, 1]} : vector<2x96xf32> to vector<2x64xf32>
    %512 = arith.addf %510, %511 : vector<2x64xf32>
    %513 = arith.negf %512 : vector<2x64xf32>
    %514 = math.exp %513 : vector<2x64xf32>
    %cst_84 = arith.constant 1.000000e+00 : f32
    %515 = vector.broadcast %cst_84 : f32 to vector<2x64xf32>
    %516 = arith.addf %515, %514 : vector<2x64xf32>
    %517 = arith.divf %515, %516 : vector<2x64xf32>
    %518 = vector.extract_strided_slice %517 {offsets = [0, 0], sizes = [2, 32], strides = [1, 1]} : vector<2x64xf32> to vector<2x32xf32>
    %519 = vector.extract_strided_slice %517 {offsets = [0, 32], sizes = [2, 32], strides = [1, 1]} : vector<2x64xf32> to vector<2x32xf32>
    %520 = vector.extract_strided_slice %507 {offsets = [0, 64], sizes = [2, 32], strides = [1, 1]} : vector<2x96xf32> to vector<2x32xf32>
    %521 = vector.extract_strided_slice %509 {offsets = [0, 64], sizes = [2, 32], strides = [1, 1]} : vector<2x96xf32> to vector<2x32xf32>
    %522 = arith.mulf %518, %521 : vector<2x32xf32>
    %523 = arith.addf %520, %522 : vector<2x32xf32>
    %524 = math.tanh %523 : vector<2x32xf32>
    %cst_85 = arith.constant 1.000000e+00 : f32
    %525 = vector.broadcast %cst_85 : f32 to vector<2x32xf32>
    %526 = arith.subf %525, %519 : vector<2x32xf32>
    %527 = arith.mulf %526, %524 : vector<2x32xf32>
    %528 = arith.mulf %519, %483 : vector<2x32xf32>
    %529 = arith.addf %527, %528 : vector<2x32xf32>
    %530 = vector.extract_strided_slice %36 {offsets = [10, 0], sizes = [2, 96], strides = [1, 1]} : vector<32x96xf32> to vector<2x96xf32>
    %cst_86 = arith.constant dense<0.000000e+00> : vector<2x96xf32>
    %531 = tpu.matmul %506, %38, %cst_86 {dimension_numbers = #tpu.dot_dimension_numbers<[1], [0], [0], [1], [0, 0, 1, 1], [], []>} : vector<2x32xf32>, vector<32x96xf32>, vector<2x96xf32> -> vector<2x96xf32>
    %532 = arith.addf %531, %44 : vector<2x96xf32>
    %533 = vector.extract_strided_slice %530 {offsets = [0, 0], sizes = [2, 64], strides = [1, 1]} : vector<2x96xf32> to vector<2x64xf32>
    %534 = vector.extract_strided_slice %532 {offsets = [0, 0], sizes = [2, 64], strides = [1, 1]} : vector<2x96xf32> to vector<2x64xf32>
    %535 = arith.addf %533, %534 : vector<2x64xf32>
    %536 = arith.negf %535 : vector<2x64xf32>
    %537 = math.exp %536 : vector<2x64xf32>
    %cst_87 = arith.constant 1.000000e+00 : f32
    %538 = vector.broadcast %cst_87 : f32 to vector<2x64xf32>
    %539 = arith.addf %538, %537 : vector<2x64xf32>
    %540 = arith.divf %538, %539 : vector<2x64xf32>
    %541 = vector.extract_strided_slice %540 {offsets = [0, 0], sizes = [2, 32], strides = [1, 1]} : vector<2x64xf32> to vector<2x32xf32>
    %542 = vector.extract_strided_slice %540 {offsets = [0, 32], sizes = [2, 32], strides = [1, 1]} : vector<2x64xf32> to vector<2x32xf32>
    %543 = vector.extract_strided_slice %530 {offsets = [0, 64], sizes = [2, 32], strides = [1, 1]} : vector<2x96xf32> to vector<2x32xf32>
    %544 = vector.extract_strided_slice %532 {offsets = [0, 64], sizes = [2, 32], strides = [1, 1]} : vector<2x96xf32> to vector<2x32xf32>
    %545 = arith.mulf %541, %544 : vector<2x32xf32>
    %546 = arith.addf %543, %545 : vector<2x32xf32>
    %547 = math.tanh %546 : vector<2x32xf32>
    %cst_88 = arith.constant 1.000000e+00 : f32
    %548 = vector.broadcast %cst_88 : f32 to vector<2x32xf32>
    %549 = arith.subf %548, %542 : vector<2x32xf32>
    %550 = arith.mulf %549, %547 : vector<2x32xf32>
    %551 = arith.mulf %542, %506 : vector<2x32xf32>
    %552 = arith.addf %550, %551 : vector<2x32xf32>
    %553 = vector.extract_strided_slice %33 {offsets = [22, 0], sizes = [2, 96], strides = [1, 1]} : vector<32x96xf32> to vector<2x96xf32>
    %cst_89 = arith.constant dense<0.000000e+00> : vector<2x96xf32>
    %554 = tpu.matmul %529, %37, %cst_89 {dimension_numbers = #tpu.dot_dimension_numbers<[1], [0], [0], [1], [0, 0, 1, 1], [], []>} : vector<2x32xf32>, vector<32x96xf32>, vector<2x96xf32> -> vector<2x96xf32>
    %555 = arith.addf %554, %41 : vector<2x96xf32>
    %556 = vector.extract_strided_slice %553 {offsets = [0, 0], sizes = [2, 64], strides = [1, 1]} : vector<2x96xf32> to vector<2x64xf32>
    %557 = vector.extract_strided_slice %555 {offsets = [0, 0], sizes = [2, 64], strides = [1, 1]} : vector<2x96xf32> to vector<2x64xf32>
    %558 = arith.addf %556, %557 : vector<2x64xf32>
    %559 = arith.negf %558 : vector<2x64xf32>
    %560 = math.exp %559 : vector<2x64xf32>
    %cst_90 = arith.constant 1.000000e+00 : f32
    %561 = vector.broadcast %cst_90 : f32 to vector<2x64xf32>
    %562 = arith.addf %561, %560 : vector<2x64xf32>
    %563 = arith.divf %561, %562 : vector<2x64xf32>
    %564 = vector.extract_strided_slice %563 {offsets = [0, 0], sizes = [2, 32], strides = [1, 1]} : vector<2x64xf32> to vector<2x32xf32>
    %565 = vector.extract_strided_slice %563 {offsets = [0, 32], sizes = [2, 32], strides = [1, 1]} : vector<2x64xf32> to vector<2x32xf32>
    %566 = vector.extract_strided_slice %553 {offsets = [0, 64], sizes = [2, 32], strides = [1, 1]} : vector<2x96xf32> to vector<2x32xf32>
    %567 = vector.extract_strided_slice %555 {offsets = [0, 64], sizes = [2, 32], strides = [1, 1]} : vector<2x96xf32> to vector<2x32xf32>
    %568 = arith.mulf %564, %567 : vector<2x32xf32>
    %569 = arith.addf %566, %568 : vector<2x32xf32>
    %570 = math.tanh %569 : vector<2x32xf32>
    %cst_91 = arith.constant 1.000000e+00 : f32
    %571 = vector.broadcast %cst_91 : f32 to vector<2x32xf32>
    %572 = arith.subf %571, %565 : vector<2x32xf32>
    %573 = arith.mulf %572, %570 : vector<2x32xf32>
    %574 = arith.mulf %565, %529 : vector<2x32xf32>
    %575 = arith.addf %573, %574 : vector<2x32xf32>
    %576 = vector.extract_strided_slice %36 {offsets = [8, 0], sizes = [2, 96], strides = [1, 1]} : vector<32x96xf32> to vector<2x96xf32>
    %cst_92 = arith.constant dense<0.000000e+00> : vector<2x96xf32>
    %577 = tpu.matmul %552, %38, %cst_92 {dimension_numbers = #tpu.dot_dimension_numbers<[1], [0], [0], [1], [0, 0, 1, 1], [], []>} : vector<2x32xf32>, vector<32x96xf32>, vector<2x96xf32> -> vector<2x96xf32>
    %578 = arith.addf %577, %44 : vector<2x96xf32>
    %579 = vector.extract_strided_slice %576 {offsets = [0, 0], sizes = [2, 64], strides = [1, 1]} : vector<2x96xf32> to vector<2x64xf32>
    %580 = vector.extract_strided_slice %578 {offsets = [0, 0], sizes = [2, 64], strides = [1, 1]} : vector<2x96xf32> to vector<2x64xf32>
    %581 = arith.addf %579, %580 : vector<2x64xf32>
    %582 = arith.negf %581 : vector<2x64xf32>
    %583 = math.exp %582 : vector<2x64xf32>
    %cst_93 = arith.constant 1.000000e+00 : f32
    %584 = vector.broadcast %cst_93 : f32 to vector<2x64xf32>
    %585 = arith.addf %584, %583 : vector<2x64xf32>
    %586 = arith.divf %584, %585 : vector<2x64xf32>
    %587 = vector.extract_strided_slice %586 {offsets = [0, 0], sizes = [2, 32], strides = [1, 1]} : vector<2x64xf32> to vector<2x32xf32>
    %588 = vector.extract_strided_slice %586 {offsets = [0, 32], sizes = [2, 32], strides = [1, 1]} : vector<2x64xf32> to vector<2x32xf32>
    %589 = vector.extract_strided_slice %576 {offsets = [0, 64], sizes = [2, 32], strides = [1, 1]} : vector<2x96xf32> to vector<2x32xf32>
    %590 = vector.extract_strided_slice %578 {offsets = [0, 64], sizes = [2, 32], strides = [1, 1]} : vector<2x96xf32> to vector<2x32xf32>
    %591 = arith.mulf %587, %590 : vector<2x32xf32>
    %592 = arith.addf %589, %591 : vector<2x32xf32>
    %593 = math.tanh %592 : vector<2x32xf32>
    %cst_94 = arith.constant 1.000000e+00 : f32
    %594 = vector.broadcast %cst_94 : f32 to vector<2x32xf32>
    %595 = arith.subf %594, %588 : vector<2x32xf32>
    %596 = arith.mulf %595, %593 : vector<2x32xf32>
    %597 = arith.mulf %588, %552 : vector<2x32xf32>
    %598 = arith.addf %596, %597 : vector<2x32xf32>
    %599 = vector.extract_strided_slice %33 {offsets = [24, 0], sizes = [2, 96], strides = [1, 1]} : vector<32x96xf32> to vector<2x96xf32>
    %cst_95 = arith.constant dense<0.000000e+00> : vector<2x96xf32>
    %600 = tpu.matmul %575, %37, %cst_95 {dimension_numbers = #tpu.dot_dimension_numbers<[1], [0], [0], [1], [0, 0, 1, 1], [], []>} : vector<2x32xf32>, vector<32x96xf32>, vector<2x96xf32> -> vector<2x96xf32>
    %601 = arith.addf %600, %41 : vector<2x96xf32>
    %602 = vector.extract_strided_slice %599 {offsets = [0, 0], sizes = [2, 64], strides = [1, 1]} : vector<2x96xf32> to vector<2x64xf32>
    %603 = vector.extract_strided_slice %601 {offsets = [0, 0], sizes = [2, 64], strides = [1, 1]} : vector<2x96xf32> to vector<2x64xf32>
    %604 = arith.addf %602, %603 : vector<2x64xf32>
    %605 = arith.negf %604 : vector<2x64xf32>
    %606 = math.exp %605 : vector<2x64xf32>
    %cst_96 = arith.constant 1.000000e+00 : f32
    %607 = vector.broadcast %cst_96 : f32 to vector<2x64xf32>
    %608 = arith.addf %607, %606 : vector<2x64xf32>
    %609 = arith.divf %607, %608 : vector<2x64xf32>
    %610 = vector.extract_strided_slice %609 {offsets = [0, 0], sizes = [2, 32], strides = [1, 1]} : vector<2x64xf32> to vector<2x32xf32>
    %611 = vector.extract_strided_slice %609 {offsets = [0, 32], sizes = [2, 32], strides = [1, 1]} : vector<2x64xf32> to vector<2x32xf32>
    %612 = vector.extract_strided_slice %599 {offsets = [0, 64], sizes = [2, 32], strides = [1, 1]} : vector<2x96xf32> to vector<2x32xf32>
    %613 = vector.extract_strided_slice %601 {offsets = [0, 64], sizes = [2, 32], strides = [1, 1]} : vector<2x96xf32> to vector<2x32xf32>
    %614 = arith.mulf %610, %613 : vector<2x32xf32>
    %615 = arith.addf %612, %614 : vector<2x32xf32>
    %616 = math.tanh %615 : vector<2x32xf32>
    %cst_97 = arith.constant 1.000000e+00 : f32
    %617 = vector.broadcast %cst_97 : f32 to vector<2x32xf32>
    %618 = arith.subf %617, %611 : vector<2x32xf32>
    %619 = arith.mulf %618, %616 : vector<2x32xf32>
    %620 = arith.mulf %611, %575 : vector<2x32xf32>
    %621 = arith.addf %619, %620 : vector<2x32xf32>
    %622 = vector.extract_strided_slice %36 {offsets = [6, 0], sizes = [2, 96], strides = [1, 1]} : vector<32x96xf32> to vector<2x96xf32>
    %cst_98 = arith.constant dense<0.000000e+00> : vector<2x96xf32>
    %623 = tpu.matmul %598, %38, %cst_98 {dimension_numbers = #tpu.dot_dimension_numbers<[1], [0], [0], [1], [0, 0, 1, 1], [], []>} : vector<2x32xf32>, vector<32x96xf32>, vector<2x96xf32> -> vector<2x96xf32>
    %624 = arith.addf %623, %44 : vector<2x96xf32>
    %625 = vector.extract_strided_slice %622 {offsets = [0, 0], sizes = [2, 64], strides = [1, 1]} : vector<2x96xf32> to vector<2x64xf32>
    %626 = vector.extract_strided_slice %624 {offsets = [0, 0], sizes = [2, 64], strides = [1, 1]} : vector<2x96xf32> to vector<2x64xf32>
    %627 = arith.addf %625, %626 : vector<2x64xf32>
    %628 = arith.negf %627 : vector<2x64xf32>
    %629 = math.exp %628 : vector<2x64xf32>
    %cst_99 = arith.constant 1.000000e+00 : f32
    %630 = vector.broadcast %cst_99 : f32 to vector<2x64xf32>
    %631 = arith.addf %630, %629 : vector<2x64xf32>
    %632 = arith.divf %630, %631 : vector<2x64xf32>
    %633 = vector.extract_strided_slice %632 {offsets = [0, 0], sizes = [2, 32], strides = [1, 1]} : vector<2x64xf32> to vector<2x32xf32>
    %634 = vector.extract_strided_slice %632 {offsets = [0, 32], sizes = [2, 32], strides = [1, 1]} : vector<2x64xf32> to vector<2x32xf32>
    %635 = vector.extract_strided_slice %622 {offsets = [0, 64], sizes = [2, 32], strides = [1, 1]} : vector<2x96xf32> to vector<2x32xf32>
    %636 = vector.extract_strided_slice %624 {offsets = [0, 64], sizes = [2, 32], strides = [1, 1]} : vector<2x96xf32> to vector<2x32xf32>
    %637 = arith.mulf %633, %636 : vector<2x32xf32>
    %638 = arith.addf %635, %637 : vector<2x32xf32>
    %639 = math.tanh %638 : vector<2x32xf32>
    %cst_100 = arith.constant 1.000000e+00 : f32
    %640 = vector.broadcast %cst_100 : f32 to vector<2x32xf32>
    %641 = arith.subf %640, %634 : vector<2x32xf32>
    %642 = arith.mulf %641, %639 : vector<2x32xf32>
    %643 = arith.mulf %634, %598 : vector<2x32xf32>
    %644 = arith.addf %642, %643 : vector<2x32xf32>
    %645 = vector.extract_strided_slice %33 {offsets = [26, 0], sizes = [2, 96], strides = [1, 1]} : vector<32x96xf32> to vector<2x96xf32>
    %cst_101 = arith.constant dense<0.000000e+00> : vector<2x96xf32>
    %646 = tpu.matmul %621, %37, %cst_101 {dimension_numbers = #tpu.dot_dimension_numbers<[1], [0], [0], [1], [0, 0, 1, 1], [], []>} : vector<2x32xf32>, vector<32x96xf32>, vector<2x96xf32> -> vector<2x96xf32>
    %647 = arith.addf %646, %41 : vector<2x96xf32>
    %648 = vector.extract_strided_slice %645 {offsets = [0, 0], sizes = [2, 64], strides = [1, 1]} : vector<2x96xf32> to vector<2x64xf32>
    %649 = vector.extract_strided_slice %647 {offsets = [0, 0], sizes = [2, 64], strides = [1, 1]} : vector<2x96xf32> to vector<2x64xf32>
    %650 = arith.addf %648, %649 : vector<2x64xf32>
    %651 = arith.negf %650 : vector<2x64xf32>
    %652 = math.exp %651 : vector<2x64xf32>
    %cst_102 = arith.constant 1.000000e+00 : f32
    %653 = vector.broadcast %cst_102 : f32 to vector<2x64xf32>
    %654 = arith.addf %653, %652 : vector<2x64xf32>
    %655 = arith.divf %653, %654 : vector<2x64xf32>
    %656 = vector.extract_strided_slice %655 {offsets = [0, 0], sizes = [2, 32], strides = [1, 1]} : vector<2x64xf32> to vector<2x32xf32>
    %657 = vector.extract_strided_slice %655 {offsets = [0, 32], sizes = [2, 32], strides = [1, 1]} : vector<2x64xf32> to vector<2x32xf32>
    %658 = vector.extract_strided_slice %645 {offsets = [0, 64], sizes = [2, 32], strides = [1, 1]} : vector<2x96xf32> to vector<2x32xf32>
    %659 = vector.extract_strided_slice %647 {offsets = [0, 64], sizes = [2, 32], strides = [1, 1]} : vector<2x96xf32> to vector<2x32xf32>
    %660 = arith.mulf %656, %659 : vector<2x32xf32>
    %661 = arith.addf %658, %660 : vector<2x32xf32>
    %662 = math.tanh %661 : vector<2x32xf32>
    %cst_103 = arith.constant 1.000000e+00 : f32
    %663 = vector.broadcast %cst_103 : f32 to vector<2x32xf32>
    %664 = arith.subf %663, %657 : vector<2x32xf32>
    %665 = arith.mulf %664, %662 : vector<2x32xf32>
    %666 = arith.mulf %657, %621 : vector<2x32xf32>
    %667 = arith.addf %665, %666 : vector<2x32xf32>
    %668 = vector.extract_strided_slice %36 {offsets = [4, 0], sizes = [2, 96], strides = [1, 1]} : vector<32x96xf32> to vector<2x96xf32>
    %cst_104 = arith.constant dense<0.000000e+00> : vector<2x96xf32>
    %669 = tpu.matmul %644, %38, %cst_104 {dimension_numbers = #tpu.dot_dimension_numbers<[1], [0], [0], [1], [0, 0, 1, 1], [], []>} : vector<2x32xf32>, vector<32x96xf32>, vector<2x96xf32> -> vector<2x96xf32>
    %670 = arith.addf %669, %44 : vector<2x96xf32>
    %671 = vector.extract_strided_slice %668 {offsets = [0, 0], sizes = [2, 64], strides = [1, 1]} : vector<2x96xf32> to vector<2x64xf32>
    %672 = vector.extract_strided_slice %670 {offsets = [0, 0], sizes = [2, 64], strides = [1, 1]} : vector<2x96xf32> to vector<2x64xf32>
    %673 = arith.addf %671, %672 : vector<2x64xf32>
    %674 = arith.negf %673 : vector<2x64xf32>
    %675 = math.exp %674 : vector<2x64xf32>
    %cst_105 = arith.constant 1.000000e+00 : f32
    %676 = vector.broadcast %cst_105 : f32 to vector<2x64xf32>
    %677 = arith.addf %676, %675 : vector<2x64xf32>
    %678 = arith.divf %676, %677 : vector<2x64xf32>
    %679 = vector.extract_strided_slice %678 {offsets = [0, 0], sizes = [2, 32], strides = [1, 1]} : vector<2x64xf32> to vector<2x32xf32>
    %680 = vector.extract_strided_slice %678 {offsets = [0, 32], sizes = [2, 32], strides = [1, 1]} : vector<2x64xf32> to vector<2x32xf32>
    %681 = vector.extract_strided_slice %668 {offsets = [0, 64], sizes = [2, 32], strides = [1, 1]} : vector<2x96xf32> to vector<2x32xf32>
    %682 = vector.extract_strided_slice %670 {offsets = [0, 64], sizes = [2, 32], strides = [1, 1]} : vector<2x96xf32> to vector<2x32xf32>
    %683 = arith.mulf %679, %682 : vector<2x32xf32>
    %684 = arith.addf %681, %683 : vector<2x32xf32>
    %685 = math.tanh %684 : vector<2x32xf32>
    %cst_106 = arith.constant 1.000000e+00 : f32
    %686 = vector.broadcast %cst_106 : f32 to vector<2x32xf32>
    %687 = arith.subf %686, %680 : vector<2x32xf32>
    %688 = arith.mulf %687, %685 : vector<2x32xf32>
    %689 = arith.mulf %680, %644 : vector<2x32xf32>
    %690 = arith.addf %688, %689 : vector<2x32xf32>
    %691 = vector.extract_strided_slice %33 {offsets = [28, 0], sizes = [2, 96], strides = [1, 1]} : vector<32x96xf32> to vector<2x96xf32>
    %cst_107 = arith.constant dense<0.000000e+00> : vector<2x96xf32>
    %692 = tpu.matmul %667, %37, %cst_107 {dimension_numbers = #tpu.dot_dimension_numbers<[1], [0], [0], [1], [0, 0, 1, 1], [], []>} : vector<2x32xf32>, vector<32x96xf32>, vector<2x96xf32> -> vector<2x96xf32>
    %693 = arith.addf %692, %41 : vector<2x96xf32>
    %694 = vector.extract_strided_slice %691 {offsets = [0, 0], sizes = [2, 64], strides = [1, 1]} : vector<2x96xf32> to vector<2x64xf32>
    %695 = vector.extract_strided_slice %693 {offsets = [0, 0], sizes = [2, 64], strides = [1, 1]} : vector<2x96xf32> to vector<2x64xf32>
    %696 = arith.addf %694, %695 : vector<2x64xf32>
    %697 = arith.negf %696 : vector<2x64xf32>
    %698 = math.exp %697 : vector<2x64xf32>
    %cst_108 = arith.constant 1.000000e+00 : f32
    %699 = vector.broadcast %cst_108 : f32 to vector<2x64xf32>
    %700 = arith.addf %699, %698 : vector<2x64xf32>
    %701 = arith.divf %699, %700 : vector<2x64xf32>
    %702 = vector.extract_strided_slice %701 {offsets = [0, 0], sizes = [2, 32], strides = [1, 1]} : vector<2x64xf32> to vector<2x32xf32>
    %703 = vector.extract_strided_slice %701 {offsets = [0, 32], sizes = [2, 32], strides = [1, 1]} : vector<2x64xf32> to vector<2x32xf32>
    %704 = vector.extract_strided_slice %691 {offsets = [0, 64], sizes = [2, 32], strides = [1, 1]} : vector<2x96xf32> to vector<2x32xf32>
    %705 = vector.extract_strided_slice %693 {offsets = [0, 64], sizes = [2, 32], strides = [1, 1]} : vector<2x96xf32> to vector<2x32xf32>
    %706 = arith.mulf %702, %705 : vector<2x32xf32>
    %707 = arith.addf %704, %706 : vector<2x32xf32>
    %708 = math.tanh %707 : vector<2x32xf32>
    %cst_109 = arith.constant 1.000000e+00 : f32
    %709 = vector.broadcast %cst_109 : f32 to vector<2x32xf32>
    %710 = arith.subf %709, %703 : vector<2x32xf32>
    %711 = arith.mulf %710, %708 : vector<2x32xf32>
    %712 = arith.mulf %703, %667 : vector<2x32xf32>
    %713 = arith.addf %711, %712 : vector<2x32xf32>
    %714 = vector.extract_strided_slice %36 {offsets = [2, 0], sizes = [2, 96], strides = [1, 1]} : vector<32x96xf32> to vector<2x96xf32>
    %cst_110 = arith.constant dense<0.000000e+00> : vector<2x96xf32>
    %715 = tpu.matmul %690, %38, %cst_110 {dimension_numbers = #tpu.dot_dimension_numbers<[1], [0], [0], [1], [0, 0, 1, 1], [], []>} : vector<2x32xf32>, vector<32x96xf32>, vector<2x96xf32> -> vector<2x96xf32>
    %716 = arith.addf %715, %44 : vector<2x96xf32>
    %717 = vector.extract_strided_slice %714 {offsets = [0, 0], sizes = [2, 64], strides = [1, 1]} : vector<2x96xf32> to vector<2x64xf32>
    %718 = vector.extract_strided_slice %716 {offsets = [0, 0], sizes = [2, 64], strides = [1, 1]} : vector<2x96xf32> to vector<2x64xf32>
    %719 = arith.addf %717, %718 : vector<2x64xf32>
    %720 = arith.negf %719 : vector<2x64xf32>
    %721 = math.exp %720 : vector<2x64xf32>
    %cst_111 = arith.constant 1.000000e+00 : f32
    %722 = vector.broadcast %cst_111 : f32 to vector<2x64xf32>
    %723 = arith.addf %722, %721 : vector<2x64xf32>
    %724 = arith.divf %722, %723 : vector<2x64xf32>
    %725 = vector.extract_strided_slice %724 {offsets = [0, 0], sizes = [2, 32], strides = [1, 1]} : vector<2x64xf32> to vector<2x32xf32>
    %726 = vector.extract_strided_slice %724 {offsets = [0, 32], sizes = [2, 32], strides = [1, 1]} : vector<2x64xf32> to vector<2x32xf32>
    %727 = vector.extract_strided_slice %714 {offsets = [0, 64], sizes = [2, 32], strides = [1, 1]} : vector<2x96xf32> to vector<2x32xf32>
    %728 = vector.extract_strided_slice %716 {offsets = [0, 64], sizes = [2, 32], strides = [1, 1]} : vector<2x96xf32> to vector<2x32xf32>
    %729 = arith.mulf %725, %728 : vector<2x32xf32>
    %730 = arith.addf %727, %729 : vector<2x32xf32>
    %731 = math.tanh %730 : vector<2x32xf32>
    %cst_112 = arith.constant 1.000000e+00 : f32
    %732 = vector.broadcast %cst_112 : f32 to vector<2x32xf32>
    %733 = arith.subf %732, %726 : vector<2x32xf32>
    %734 = arith.mulf %733, %731 : vector<2x32xf32>
    %735 = arith.mulf %726, %690 : vector<2x32xf32>
    %736 = arith.addf %734, %735 : vector<2x32xf32>
    %737 = vector.extract_strided_slice %33 {offsets = [30, 0], sizes = [2, 96], strides = [1, 1]} : vector<32x96xf32> to vector<2x96xf32>
    %cst_113 = arith.constant dense<0.000000e+00> : vector<2x96xf32>
    %738 = tpu.matmul %713, %37, %cst_113 {dimension_numbers = #tpu.dot_dimension_numbers<[1], [0], [0], [1], [0, 0, 1, 1], [], []>} : vector<2x32xf32>, vector<32x96xf32>, vector<2x96xf32> -> vector<2x96xf32>
    %739 = arith.addf %738, %41 : vector<2x96xf32>
    %740 = vector.extract_strided_slice %737 {offsets = [0, 0], sizes = [2, 64], strides = [1, 1]} : vector<2x96xf32> to vector<2x64xf32>
    %741 = vector.extract_strided_slice %739 {offsets = [0, 0], sizes = [2, 64], strides = [1, 1]} : vector<2x96xf32> to vector<2x64xf32>
    %742 = arith.addf %740, %741 : vector<2x64xf32>
    %743 = arith.negf %742 : vector<2x64xf32>
    %744 = math.exp %743 : vector<2x64xf32>
    %cst_114 = arith.constant 1.000000e+00 : f32
    %745 = vector.broadcast %cst_114 : f32 to vector<2x64xf32>
    %746 = arith.addf %745, %744 : vector<2x64xf32>
    %747 = arith.divf %745, %746 : vector<2x64xf32>
    %748 = vector.extract_strided_slice %747 {offsets = [0, 0], sizes = [2, 32], strides = [1, 1]} : vector<2x64xf32> to vector<2x32xf32>
    %749 = vector.extract_strided_slice %747 {offsets = [0, 32], sizes = [2, 32], strides = [1, 1]} : vector<2x64xf32> to vector<2x32xf32>
    %750 = vector.extract_strided_slice %737 {offsets = [0, 64], sizes = [2, 32], strides = [1, 1]} : vector<2x96xf32> to vector<2x32xf32>
    %751 = vector.extract_strided_slice %739 {offsets = [0, 64], sizes = [2, 32], strides = [1, 1]} : vector<2x96xf32> to vector<2x32xf32>
    %752 = arith.mulf %748, %751 : vector<2x32xf32>
    %753 = arith.addf %750, %752 : vector<2x32xf32>
    %754 = math.tanh %753 : vector<2x32xf32>
    %cst_115 = arith.constant 1.000000e+00 : f32
    %755 = vector.broadcast %cst_115 : f32 to vector<2x32xf32>
    %756 = arith.subf %755, %749 : vector<2x32xf32>
    %757 = arith.mulf %756, %754 : vector<2x32xf32>
    %758 = arith.mulf %749, %713 : vector<2x32xf32>
    %759 = arith.addf %757, %758 : vector<2x32xf32>
    %760 = vector.extract_strided_slice %36 {offsets = [0, 0], sizes = [2, 96], strides = [1, 1]} : vector<32x96xf32> to vector<2x96xf32>
    %cst_116 = arith.constant dense<0.000000e+00> : vector<2x96xf32>
    %761 = tpu.matmul %736, %38, %cst_116 {dimension_numbers = #tpu.dot_dimension_numbers<[1], [0], [0], [1], [0, 0, 1, 1], [], []>} : vector<2x32xf32>, vector<32x96xf32>, vector<2x96xf32> -> vector<2x96xf32>
    %762 = arith.addf %761, %44 : vector<2x96xf32>
    %763 = vector.extract_strided_slice %760 {offsets = [0, 0], sizes = [2, 64], strides = [1, 1]} : vector<2x96xf32> to vector<2x64xf32>
    %764 = vector.extract_strided_slice %762 {offsets = [0, 0], sizes = [2, 64], strides = [1, 1]} : vector<2x96xf32> to vector<2x64xf32>
    %765 = arith.addf %763, %764 : vector<2x64xf32>
    %766 = arith.negf %765 : vector<2x64xf32>
    %767 = math.exp %766 : vector<2x64xf32>
    %cst_117 = arith.constant 1.000000e+00 : f32
    %768 = vector.broadcast %cst_117 : f32 to vector<2x64xf32>
    %769 = arith.addf %768, %767 : vector<2x64xf32>
    %770 = arith.divf %768, %769 : vector<2x64xf32>
    %771 = vector.extract_strided_slice %770 {offsets = [0, 0], sizes = [2, 32], strides = [1, 1]} : vector<2x64xf32> to vector<2x32xf32>
    %772 = vector.extract_strided_slice %770 {offsets = [0, 32], sizes = [2, 32], strides = [1, 1]} : vector<2x64xf32> to vector<2x32xf32>
    %773 = vector.extract_strided_slice %760 {offsets = [0, 64], sizes = [2, 32], strides = [1, 1]} : vector<2x96xf32> to vector<2x32xf32>
    %774 = vector.extract_strided_slice %762 {offsets = [0, 64], sizes = [2, 32], strides = [1, 1]} : vector<2x96xf32> to vector<2x32xf32>
    %775 = arith.mulf %771, %774 : vector<2x32xf32>
    %776 = arith.addf %773, %775 : vector<2x32xf32>
    %777 = math.tanh %776 : vector<2x32xf32>
    %cst_118 = arith.constant 1.000000e+00 : f32
    %778 = vector.broadcast %cst_118 : f32 to vector<2x32xf32>
    %779 = arith.subf %778, %772 : vector<2x32xf32>
    %780 = arith.mulf %779, %777 : vector<2x32xf32>
    %781 = arith.mulf %772, %736 : vector<2x32xf32>
    %782 = arith.addf %780, %781 : vector<2x32xf32>
    %c176 = arith.constant 176 : index
    %c0_119 = arith.constant 0 : index
    %783 = vector.load %arg0[%c176, %c0_119] : memref<240x96xf32, #tpu.memory_space<vmem>>, vector<32x5xf32>
    %c208 = arith.constant 208 : index
    %c0_120 = arith.constant 0 : index
    %784 = vector.load %arg0[%c208, %c0_120] : memref<240x96xf32, #tpu.memory_space<vmem>>, vector<32x5xf32>
    %c108 = arith.constant 108 : index
    %c0_121 = arith.constant 0 : index
    %785 = vector.load %arg0[%c108, %c0_121] : memref<240x96xf32, #tpu.memory_space<vmem>>, vector<1x5xf32>
    %cst_122 = arith.constant dense<0.000000e+00> : vector<2x5xf32>
    %786 = tpu.matmul %759, %783, %cst_122 {dimension_numbers = #tpu.dot_dimension_numbers<[1], [0], [0], [1], [0, 0, 1, 1], [], []>} : vector<2x32xf32>, vector<32x5xf32>, vector<2x5xf32> -> vector<2x5xf32>
    %cst_123 = arith.constant dense<0.000000e+00> : vector<2x5xf32>
    %787 = tpu.matmul %782, %784, %cst_123 {dimension_numbers = #tpu.dot_dimension_numbers<[1], [0], [0], [1], [0, 0, 1, 1], [], []>} : vector<2x32xf32>, vector<32x5xf32>, vector<2x5xf32> -> vector<2x5xf32>
    %788 = arith.addf %786, %787 : vector<2x5xf32>
    %789 = vector.broadcast %785 : vector<1x5xf32> to vector<2x5xf32>
    %790 = arith.addf %788, %789 : vector<2x5xf32>
    %c0_124 = arith.constant 0 : index
    %c0_125 = arith.constant 0 : index
    %791 = vector.load %arg1[%c0_124, %c0_125] : memref<2x5xf32, #tpu.memory_space<vmem>>, vector<2x5xf32>
    tpu.vector_store %arg1[%c0_124, %c0_125], %790 {strides = array<i32>} : memref<2x5xf32, #tpu.memory_space<vmem>>, vector<2x5xf32>,
    return
  }
}

</mosaic_0001>

<llo_original>
// kernel: crnn_forward.1
$region0: #{crnn_forward.1}
  #allocation0 [shape = 'u32[]', space=smem, size = 0x4, offset = 0x4, fixed_abs, tag = 'smem constant byte address 0x4 - core index']
  #allocation1 [shape = 'u32[144,128]{1,0:T(1,128)}', space=vmem, size = 0x12000, scoped, tag = 'internal scratch']
  %s0 = inlined_call_operand.vmem [shape: f32[240,96], index: 0, kind: input, shape index: {}]
  %s1 = inlined_call_operand.hbm [shape: f32[2,5], index: 1, kind: output, shape index: {}]
  %s2 = sld [smem:[#allocation0]]
  $region14: #{crnn_forward.1} parent=0
    _
  %s4 = ssub.s32 1, %s2
  %s5 = scalar_select 0, %s4, %s2
  $region1: #{crnn_forward.1} parent=0
    #allocation2 [shape = 'u8[1024]{0}', space=vmem, size = 0x400, scoped, tag = 'output window, operand 0, single buffered']
    #allocation3 [shape = 's32[1]{0}', space=sflag, size = 0x4, scoped, tag = 'scoped memory for crnn_forward.1']
    %6 = vsyncpa [#allocation3], 0
    // Predicated region
    $region2: #{crnn_forward.1} parent=1 // pred_check
      _
    $region3: #{crnn_forward.1} parent=1 // pred_check_branch
      %8 = sbr.rel (0) target = $region5
    $region4: #{crnn_forward.1} parent=1 // pred_region
      _
    $region5: #{crnn_forward.1} parent=1 // pred_fallthru
      _
    %v9 = vld [vmem:[%s0] sm:$0xff]
    %v10 = vld [vmem:[%s0 + $0x8] sm:$0xff]
    %v11 = vld [vmem:[%s0 + $0x10] sm:$0xff]
    %v12 = vld [vmem:[%s0 + $0x18] sm:$0xff]
    %v13 = vld [vmem:[%s0 + $0x20] sm:$0xff]
    %v14 = vld [vmem:[%s0 + $0x28] sm:$0xf]
    %v15 = vld [vmem:[%s0 + $0x2c] sm:$0x1]
    %v16 = vld [vmem:[%s0 + $0x2d] sm:$0x1]
    %vm17 = vcmask 97280
    %v19 = vsel %vm17, %v9, 0
    %v22 = vsel %vm17, %v10, 0
    %v25 = vsel %vm17, %v11, 0
    %v28 = vsel %vm17, %v12, 0
    %vm30 = vcmask 1043456
    %v32 = vsel %vm30, %v14, 0
    %34 = vmatprep.subr.mxu0 0.0
    %35 = vmatpush1.msra.mxu0 %v13
    %36 = vmatprep.subr.mxu0 0.0
    %37 = vmatpush1.msra.mxu0 %v32
    %38 = vmatprep.subr.mxu0 0.0
    %39 = vmatpush1.msra.mxu0 0.0
    %40 = vmatprep.subr.mxu0 0.0
    %41 = vmatpush1.msra.mxu0 0.0
    %42 = vmatprep.subr.mxu0 0.0
    %43 = vmatpush1.msra.mxu0 0.0
    %44 = vmatprep.subr.mxu0 0.0
    %45 = vmatpush1.msra.mxu0 0.0
    %46 = vmatprep.subr.mxu0 0.0
    %47 = vmatpush1.msra.mxu0 0.0
    %48 = vmatprep.subr.mxu0 0.0
    %49 = vmatpush1.msra.mxu0 0.0
    %50 = vmatprep.subr.mxu0 0.0
    %51 = vmatpush1.msra.mxu0 0.0
    %52 = vmatprep.subr.mxu0 0.0
    %53 = vmatpush1.msra.mxu0 0.0
    %54 = vmatprep.subr.mxu0 0.0
    %55 = vmatpush1.msra.mxu0 0.0
    %56 = vmatprep.subr.mxu0 0.0
    %57 = vmatpush1.msra.mxu0 0.0
    %58 = vmatprep.subr.mxu0 0.0
    %59 = vmatpush1.msra.mxu0 0.0
    %60 = vmatprep.subr.mxu0 0.0
    %61 = vmatpush1.msra.mxu0 0.0
    %62 = vmatprep.subr.mxu0 0.0
    %63 = vmatpush1.msra.mxu0 0.0
    %64 = vmatprep.subr.mxu0 0.0
    %65 = vmatpush1.msra.mxu0 0.0
    %66 = vmatprep.subr.mxu0 0.0
    %67 = vmatpush1.msra.mxu0 0.0
    %68 = vmatprep.subr.mxu0 0.0
    %69 = vmatpush1.msra.mxu0 0.0
    %70 = vmatprep.subr.mxu0 0.0
    %71 = vmatpush1.msra.mxu0 0.0
    %72 = vmatprep.subr.mxu0 0.0
    %73 = vmatpush1.msra.mxu0 0.0
    %74 = vmatprep.subr.mxu0 0.0
    %75 = vmatpush1.msra.mxu0 0.0
    %76 = vmatprep.subr.mxu0 0.0
    %77 = vmatpush1.msra.mxu0 0.0
    %78 = vmatprep.subr.mxu0 0.0
    %79 = vmatpush1.msra.mxu0 0.0
    %80 = vmatprep.subr.mxu0 0.0
    %81 = vmatpush1.msra.mxu0 0.0
    %82 = vmatprep.subr.mxu0 0.0
    %83 = vmatpush1.msra.mxu0 0.0
    %84 = vmatprep.subr.mxu0 0.0
    %85 = vmatpush1.msra.mxu0 0.0
    %86 = vmatprep.subr.mxu0 0.0
    %87 = vmatpush1.msra.mxu0 0.0
    %88 = vmatprep.subr.mxu0 0.0
    %89 = vmatpush1.msra.mxu0 0.0
    %90 = vmatprep.subr.mxu0 0.0
    %91 = vmatpush1.msra.mxu0 0.0
    %92 = vmatprep.subr.mxu0 0.0
    %93 = vmatpush1.msra.mxu0 0.0
    %94 = vmatprep.subr.mxu0 0.0
    %95 = vmatpush1.msra.mxu0 0.0
    %96 = vmatprep.subr.mxu0 0.0
    %97 = vmatpush1.msra.mxu0 0.0
    %98 = vmatprep.mubr.f32.mxu0 0.0
    %99 = vmatmul.mubr.f32.gmra.mrb[0].mxu0 %v19
    %v100 = vpop.f32.mrb[0].mxu0
    %v101 = vadd.f32 0.0, %v100
    %v102 = vpop.f32.mrb[0].mxu0
    %103 = vmatprep.mubr.f32.mxu0 0.0
    %104 = vmatmul.mubr.f32.gmra.mrb[0].mxu0 %v22
    %v105 = vpop.f32.mrb[0].mxu0
    %v106 = vadd.f32 0.0, %v105
    %v107 = vpop.f32.mrb[0].mxu0
    %108 = vmatprep.mubr.f32.mxu0 0.0
    %109 = vmatmul.mubr.f32.gmra.mrb[0].mxu0 %v25
    %v110 = vpop.f32.mrb[0].mxu0
    %v111 = vadd.f32 0.0, %v110
    %v112 = vpop.f32.mrb[0].mxu0
    %113 = vmatprep.mubr.f32.mxu0 0.0
    %114 = vmatmul.mubr.f32.gmra.mrb[0].mxu0 %v28
    %v115 = vpop.f32.mrb[0].mxu0
    %v116 = vadd.f32 0.0, %v115
    %v117 = vpop.f32.mrb[0].mxu0
    %118 = vdwg.mxu0
    %v119 = vlaneseq
    %v120 = vshrl.u32 %v119, 7
    %v121 = vsub.s32 0, %v120
    %v122 = vrot.slane %v15, %v121
    %v123 = vmul.f32 %v101, %v122
    %v124 = vmul.f32 %v106, %v122
    %v125 = vmul.f32 %v111, %v122
    %v126 = vmul.f32 %v116, %v122
    %v127 = vlaneseq
    %v128 = vshrl.u32 %v127, 7
    %v129 = vsub.s32 0, %v128
    %v130 = vrot.slane %v16, %v129
    %v131 = vadd.f32 %v123, %v130
    %v132 = vadd.f32 %v124, %v130
    %v133 = vadd.f32 %v125, %v130
    %v134 = vadd.f32 %v126, %v130
    %v135 = vmax.f32 %v131, 0.0
    %v136 = vmax.f32 %v132, 0.0
    %v137 = vmax.f32 %v133, 0.0
    %v138 = vmax.f32 %v134, 0.0
    %vm143 = vcmask 1041408
    %v144 = vrot.slane %v135, 6
    %v145 = vrot.slane %v136, 6
    %v146 = vsel %vm143, %v144, %v145
    %v147 = vrot.slane %v137, 6
    %v148 = vsel %vm143, %v145, %v147
    %v149 = vrot.slane %v138, 6
    %v150 = vsel %vm143, %v147, %v149
    %v155 = vsel %vm143, 0.0, %v144
    %vm156 = vcmask 1045504
    %v157 = vrot.slane %v135, 2
    %v158 = vrot.slane %v136, 2
    %v159 = vsel %vm156, %v157, %v158
    %v160 = vrot.slane %v137, 2
    %v161 = vsel %vm156, %v158, %v160
    %v162 = vrot.slane %v138, 2
    %v163 = vsel %vm156, %v160, %v162
    %v165 = vsel %vm156, %v162, 0.0
    %166 = vrot.lane.b32.xlu0 %v135, 8
    %v167 = vpop.permute.xlu0 %166
    %168 = vrot.lane.b32.xlu0 %v136, 8
    %v169 = vpop.permute.xlu0 %168
    %170 = vrot.lane.b32.xlu0 %v137, 8
    %v171 = vpop.permute.xlu0 %170
    %172 = vrot.lane.b32.xlu0 %v138, 8
    %v173 = vpop.permute.xlu0 %172
    %179 = vrot.lane.b32.xlu0 %v159, 16
    %v180 = vpop.permute.xlu0 %179
    %181 = vrot.lane.b32.xlu0 %v161, 16
    %v182 = vpop.permute.xlu0 %181
    %183 = vrot.lane.b32.xlu0 %v163, 16
    %v184 = vpop.permute.xlu0 %183
    %185 = vrot.lane.b32.xlu0 %v165, 16
    %v186 = vpop.permute.xlu0 %185
    %vm191 = vcmask 64512
    %v192 = vsel %vm191, %v155, %v167
    %v193 = vsel %vm191, %v146, %v169
    %v194 = vsel %vm191, %v148, %v171
    %v195 = vsel %vm191, %v150, %v173
    %vm196 = vcmask 130048
    %v197 = vsel %vm196, %v192, %v180
    %v198 = vsel %vm196, %v193, %v182
    %v199 = vsel %vm196, %v194, %v184
    %v200 = vsel %vm196, %v195, %v186
    %v201 = vld [vmem:[%s0 + $0x30] sm:$0xff]
    %v202 = vld [vmem:[%s0 + $0x38] sm:$0xff]
    %v203 = vld [vmem:[%s0 + $0x40] sm:$0xff]
    %v204 = vld [vmem:[%s0 + $0x2e] sm:$0x1]
    %v205 = vld [vmem:[%s0 + $0x2f] sm:$0x1]
    %vm206 = vcmask 195584
    %v208 = vsel %vm206, %v197, 0
    %v211 = vsel %vm206, %v198, 0
    %v214 = vsel %vm206, %v199, 0
    %v217 = vsel %vm206, %v200, 0
    %219 = vmatprep.subr.mxu0 0.0
    %220 = vmatpush1.msra.mxu0 %v201
    %221 = vmatprep.subr.mxu0 0.0
    %222 = vmatpush1.msra.mxu0 %v202
    %223 = vmatprep.subr.mxu0 0.0
    %224 = vmatpush1.msra.mxu0 %v203
    %225 = vmatprep.subr.mxu0 0.0
    %226 = vmatpush1.msra.mxu0 0.0
    %227 = vmatprep.subr.mxu0 0.0
    %228 = vmatpush1.msra.mxu0 0.0
    %229 = vmatprep.subr.mxu0 0.0
    %230 = vmatpush1.msra.mxu0 0.0
    %231 = vmatprep.subr.mxu0 0.0
    %232 = vmatpush1.msra.mxu0 0.0
    %233 = vmatprep.subr.mxu0 0.0
    %234 = vmatpush1.msra.mxu0 0.0
    %235 = vmatprep.subr.mxu0 0.0
    %236 = vmatpush1.msra.mxu0 0.0
    %237 = vmatprep.subr.mxu0 0.0
    %238 = vmatpush1.msra.mxu0 0.0
    %239 = vmatprep.subr.mxu0 0.0
    %240 = vmatpush1.msra.mxu0 0.0
    %241 = vmatprep.subr.mxu0 0.0
    %242 = vmatpush1.msra.mxu0 0.0
    %243 = vmatprep.subr.mxu0 0.0
    %244 = vmatpush1.msra.mxu0 0.0
    %245 = vmatprep.subr.mxu0 0.0
    %246 = vmatpush1.msra.mxu0 0.0
    %247 = vmatprep.subr.mxu0 0.0
    %248 = vmatpush1.msra.mxu0 0.0
    %249 = vmatprep.subr.mxu0 0.0
    %250 = vmatpush1.msra.mxu0 0.0
    %251 = vmatprep.subr.mxu0 0.0
    %252 = vmatpush1.msra.mxu0 0.0
    %253 = vmatprep.subr.mxu0 0.0
    %254 = vmatpush1.msra.mxu0 0.0
    %255 = vmatprep.subr.mxu0 0.0
    %256 = vmatpush1.msra.mxu0 0.0
    %257 = vmatprep.subr.mxu0 0.0
    %258 = vmatpush1.msra.mxu0 0.0
    %259 = vmatprep.subr.mxu0 0.0
    %260 = vmatpush1.msra.mxu0 0.0
    %261 = vmatprep.subr.mxu0 0.0
    %262 = vmatpush1.msra.mxu0 0.0
    %263 = vmatprep.subr.mxu0 0.0
    %264 = vmatpush1.msra.mxu0 0.0
    %265 = vmatprep.subr.mxu0 0.0
    %266 = vmatpush1.msra.mxu0 0.0
    %267 = vmatprep.subr.mxu0 0.0
    %268 = vmatpush1.msra.mxu0 0.0
    %269 = vmatprep.subr.mxu0 0.0
    %270 = vmatpush1.msra.mxu0 0.0
    %271 = vmatprep.subr.mxu0 0.0
    %272 = vmatpush1.msra.mxu0 0.0
    %273 = vmatprep.subr.mxu0 0.0
    %274 = vmatpush1.msra.mxu0 0.0
    %275 = vmatprep.subr.mxu0 0.0
    %276 = vmatpush1.msra.mxu0 0.0
    %277 = vmatprep.subr.mxu0 0.0
    %278 = vmatpush1.msra.mxu0 0.0
    %279 = vmatprep.subr.mxu0 0.0
    %280 = vmatpush1.msra.mxu0 0.0
    %281 = vmatprep.subr.mxu0 0.0
    %282 = vmatpush1.msra.mxu0 0.0
    %283 = vmatprep.mubr.f32.mxu0 0.0
    %284 = vmatmul.mubr.f32.gmra.mrb[0].mxu0 %v208
    %v285 = vpop.f32.mrb[0].mxu0
    %v286 = vadd.f32 0.0, %v285
    %v287 = vpop.f32.mrb[0].mxu0
    %288 = vmatprep.mubr.f32.mxu0 0.0
    %289 = vmatmul.mubr.f32.gmra.mrb[0].mxu0 %v211
    %v290 = vpop.f32.mrb[0].mxu0
    %v291 = vadd.f32 0.0, %v290
    %v292 = vpop.f32.mrb[0].mxu0
    %293 = vmatprep.mubr.f32.mxu0 0.0
    %294 = vmatmul.mubr.f32.gmra.mrb[0].mxu0 %v214
    %v295 = vpop.f32.mrb[0].mxu0
    %v296 = vadd.f32 0.0, %v295
    %v297 = vpop.f32.mrb[0].mxu0
    %298 = vmatprep.mubr.f32.mxu0 0.0
    %299 = vmatmul.mubr.f32.gmra.mrb[0].mxu0 %v217
    %v300 = vpop.f32.mrb[0].mxu0
    %v301 = vadd.f32 0.0, %v300
    %v302 = vpop.f32.mrb[0].mxu0
    %303 = vdwg.mxu0
    %v304 = vlaneseq
    %v305 = vshrl.u32 %v304, 7
    %v306 = vsub.s32 0, %v305
    %v307 = vrot.slane %v204, %v306
    %v308 = vmul.f32 %v286, %v307
    %v309 = vmul.f32 %v291, %v307
    %v310 = vmul.f32 %v296, %v307
    %v311 = vmul.f32 %v301, %v307
    %v312 = vlaneseq
    %v313 = vshrl.u32 %v312, 7
    %v314 = vsub.s32 0, %v313
    %v315 = vrot.slane %v205, %v314
    %v316 = vadd.f32 %v308, %v315
    %v317 = vadd.f32 %v309, %v315
    %v318 = vadd.f32 %v310, %v315
    %v319 = vadd.f32 %v311, %v315
    %v320 = vmax.f32 %v316, 0.0
    %v321 = vmax.f32 %v317, 0.0
    %v322 = vmax.f32 %v318, 0.0
    %v323 = vmax.f32 %v319, 0.0
    %v324 = vld [vmem:[%s0 + $0x48] sm:$0xff]
    %v325 = vld [vmem:[%s0 + $0x50] sm:$0xff]
    %v326 = vld [vmem:[%s0 + $0x58] sm:$0xff]
    %v327 = vld [vmem:[%s0 + $0x60] sm:$0xff]
    %v328 = vld [vmem:[%s0 + $0x68] sm:$0x1]
    %v329 = vld [vmem:[%s0 + $0x69] sm:$0x1]
    %v330 = vlaneseq
    %v331 = vshrl.u32 %v330, 7
    %v332 = vsub.s32 0, %v331
    %v333 = vrot.slane %v328, %v332
    %v335 = vsel %vm196, %v320, 0
    %v338 = vsel %vm196, %v321, 0
    %v341 = vsel %vm196, %v322, 0
    %v344 = vsel %vm196, %v323, 0
    %346 = vmatprep.subr.mxu0 0.0
    %347 = vmatpush1.msra.mxu0 %v324
    %348 = vmatprep.subr.mxu0 0.0
    %349 = vmatpush1.msra.mxu0 %v325
    %350 = vmatprep.subr.mxu0 0.0
    %351 = vmatpush1.msra.mxu0 0.0
    %352 = vmatprep.subr.mxu0 0.0
    %353 = vmatpush1.msra.mxu0 0.0
    %354 = vmatprep.subr.mxu0 0.0
    %355 = vmatpush1.msra.mxu0 0.0
    %356 = vmatprep.subr.mxu0 0.0
    %357 = vmatpush1.msra.mxu0 0.0
    %358 = vmatprep.subr.mxu0 0.0
    %359 = vmatpush1.msra.mxu0 0.0
    %360 = vmatprep.subr.mxu0 0.0
    %361 = vmatpush1.msra.mxu0 0.0
    %362 = vmatprep.subr.mxu0 0.0
    %363 = vmatpush1.msra.mxu0 0.0
    %364 = vmatprep.subr.mxu0 0.0
    %365 = vmatpush1.msra.mxu0 0.0
    %366 = vmatprep.subr.mxu0 0.0
    %367 = vmatpush1.msra.mxu0 0.0
    %368 = vmatprep.subr.mxu0 0.0
    %369 = vmatpush1.msra.mxu0 0.0
    %370 = vmatprep.subr.mxu0 0.0
    %371 = vmatpush1.msra.mxu0 0.0
    %372 = vmatprep.subr.mxu0 0.0
    %373 = vmatpush1.msra.mxu0 0.0
    %374 = vmatprep.subr.mxu0 0.0
    %375 = vmatpush1.msra.mxu0 0.0
    %376 = vmatprep.subr.mxu0 0.0
    %377 = vmatpush1.msra.mxu0 0.0
    %378 = vmatprep.subr.mxu0 0.0
    %379 = vmatpush1.msra.mxu0 0.0
    %380 = vmatprep.subr.mxu0 0.0
    %381 = vmatpush1.msra.mxu0 0.0
    %382 = vmatprep.subr.mxu0 0.0
    %383 = vmatpush1.msra.mxu0 0.0
    %384 = vmatprep.subr.mxu0 0.0
    %385 = vmatpush1.msra.mxu0 0.0
    %386 = vmatprep.subr.mxu0 0.0
    %387 = vmatpush1.msra.mxu0 0.0
    %388 = vmatprep.subr.mxu0 0.0
    %389 = vmatpush1.msra.mxu0 0.0
    %390 = vmatprep.subr.mxu0 0.0
    %391 = vmatpush1.msra.mxu0 0.0
    %392 = vmatprep.subr.mxu0 0.0
    %393 = vmatpush1.msra.mxu0 0.0
    %394 = vmatprep.subr.mxu0 0.0
    %395 = vmatpush1.msra.mxu0 0.0
    %396 = vmatprep.subr.mxu0 0.0
    %397 = vmatpush1.msra.mxu0 0.0
    %398 = vmatprep.subr.mxu0 0.0
    %399 = vmatpush1.msra.mxu0 0.0
    %400 = vmatprep.subr.mxu0 0.0
    %401 = vmatpush1.msra.mxu0 0.0
    %402 = vmatprep.subr.mxu0 0.0
    %403 = vmatpush1.msra.mxu0 0.0
    %404 = vmatprep.subr.mxu0 0.0
    %405 = vmatpush1.msra.mxu0 0.0
    %406 = vmatprep.subr.mxu0 0.0
    %407 = vmatpush1.msra.mxu0 0.0
    %408 = vmatprep.subr.mxu0 0.0
    %409 = vmatpush1.msra.mxu0 0.0
    %410 = vmatprep.mubr.f32.mxu0 0.0
    %411 = vmatmul.mubr.f32.gmra.mrb[0].mxu0 %v335
    %v412 = vpop.f32.mrb[0].mxu0
    %v413 = vadd.f32 %v333, %v412
    %v414 = vpop.f32.mrb[0].mxu0
    %415 = vmatprep.mubr.f32.mxu0 0.0
    %416 = vmatmul.mubr.f32.gmra.mrb[0].mxu0 %v338
    %v417 = vpop.f32.mrb[0].mxu0
    %v418 = vadd.f32 %v333, %v417
    %v419 = vpop.f32.mrb[0].mxu0
    %420 = vmatprep.mubr.f32.mxu0 0.0
    %421 = vmatmul.mubr.f32.gmra.mrb[0].mxu0 %v341
    %v422 = vpop.f32.mrb[0].mxu0
    %v423 = vadd.f32 %v333, %v422
    %v424 = vpop.f32.mrb[0].mxu0
    %425 = vmatprep.mubr.f32.mxu0 0.0
    %426 = vmatmul.mubr.f32.gmra.mrb[0].mxu0 %v344
    %v427 = vpop.f32.mrb[0].mxu0
    %v428 = vadd.f32 %v333, %v427
    %v429 = vpop.f32.mrb[0].mxu0
    %430 = vdwg.mxu0
    %v431 = vlaneseq
    %v432 = vshrl.u32 %v431, 7
    %v433 = vsub.s32 0, %v432
    %v434 = vrot.slane %v329, %v433
    %435 = vmatprep.subr.mxu0 0.0
    %436 = vmatpush1.msra.mxu0 %v326
    %437 = vmatprep.subr.mxu0 0.0
    %438 = vmatpush1.msra.mxu0 %v327
    %439 = vmatprep.subr.mxu0 0.0
    %440 = vmatpush1.msra.mxu0 0.0
    %441 = vmatprep.subr.mxu0 0.0
    %442 = vmatpush1.msra.mxu0 0.0
    %443 = vmatprep.subr.mxu0 0.0
    %444 = vmatpush1.msra.mxu0 0.0
    %445 = vmatprep.subr.mxu0 0.0
    %446 = vmatpush1.msra.mxu0 0.0
    %447 = vmatprep.subr.mxu0 0.0
    %448 = vmatpush1.msra.mxu0 0.0
    %449 = vmatprep.subr.mxu0 0.0
    %450 = vmatpush1.msra.mxu0 0.0
    %451 = vmatprep.subr.mxu0 0.0
    %452 = vmatpush1.msra.mxu0 0.0
    %453 = vmatprep.subr.mxu0 0.0
    %454 = vmatpush1.msra.mxu0 0.0
    %455 = vmatprep.subr.mxu0 0.0
    %456 = vmatpush1.msra.mxu0 0.0
    %457 = vmatprep.subr.mxu0 0.0
    %458 = vmatpush1.msra.mxu0 0.0
    %459 = vmatprep.subr.mxu0 0.0
    %460 = vmatpush1.msra.mxu0 0.0
    %461 = vmatprep.subr.mxu0 0.0
    %462 = vmatpush1.msra.mxu0 0.0
    %463 = vmatprep.subr.mxu0 0.0
    %464 = vmatpush1.msra.mxu0 0.0
    %465 = vmatprep.subr.mxu0 0.0
    %466 = vmatpush1.msra.mxu0 0.0
    %467 = vmatprep.subr.mxu0 0.0
    %468 = vmatpush1.msra.mxu0 0.0
    %469 = vmatprep.subr.mxu0 0.0
    %470 = vmatpush1.msra.mxu0 0.0
    %471 = vmatprep.subr.mxu0 0.0
    %472 = vmatpush1.msra.mxu0 0.0
    %473 = vmatprep.subr.mxu0 0.0
    %474 = vmatpush1.msra.mxu0 0.0
    %475 = vmatprep.subr.mxu0 0.0
    %476 = vmatpush1.msra.mxu0 0.0
    %477 = vmatprep.subr.mxu0 0.0
    %478 = vmatpush1.msra.mxu0 0.0
    %479 = vmatprep.subr.mxu0 0.0
    %480 = vmatpush1.msra.mxu0 0.0
    %481 = vmatprep.subr.mxu0 0.0
    %482 = vmatpush1.msra.mxu0 0.0
    %483 = vmatprep.subr.mxu0 0.0
    %484 = vmatpush1.msra.mxu0 0.0
    %485 = vmatprep.subr.mxu0 0.0
    %486 = vmatpush1.msra.mxu0 0.0
    %487 = vmatprep.subr.mxu0 0.0
    %488 = vmatpush1.msra.mxu0 0.0
    %489 = vmatprep.subr.mxu0 0.0
    %490 = vmatpush1.msra.mxu0 0.0
    %491 = vmatprep.subr.mxu0 0.0
    %492 = vmatpush1.msra.mxu0 0.0
    %493 = vmatprep.subr.mxu0 0.0
    %494 = vmatpush1.msra.mxu0 0.0
    %495 = vmatprep.subr.mxu0 0.0
    %496 = vmatpush1.msra.mxu0 0.0
    %497 = vmatprep.subr.mxu0 0.0
    %498 = vmatpush1.msra.mxu0 0.0
    %499 = vmatprep.mubr.f32.mxu0 0.0
    %500 = vmatmul.mubr.f32.gmra.mrb[0].mxu0 %v335
    %v501 = vpop.f32.mrb[0].mxu0
    %v502 = vadd.f32 %v434, %v501
    %v503 = vpop.f32.mrb[0].mxu0
    %504 = vmatprep.mubr.f32.mxu0 0.0
    %505 = vmatmul.mubr.f32.gmra.mrb[0].mxu0 %v338
    %v506 = vpop.f32.mrb[0].mxu0
    %v507 = vadd.f32 %v434, %v506
    %v508 = vpop.f32.mrb[0].mxu0
    %509 = vmatprep.mubr.f32.mxu0 0.0
    %510 = vmatmul.mubr.f32.gmra.mrb[0].mxu0 %v341
    %v511 = vpop.f32.mrb[0].mxu0
    %v512 = vadd.f32 %v434, %v511
    %v513 = vpop.f32.mrb[0].mxu0
    %514 = vmatprep.mubr.f32.mxu0 0.0
    %515 = vmatmul.mubr.f32.gmra.mrb[0].mxu0 %v344
    %v516 = vpop.f32.mrb[0].mxu0
    %v517 = vadd.f32 %v434, %v516
    %v518 = vpop.f32.mrb[0].mxu0
    %519 = vdwg.mxu0
    %v520 = vld [vmem:[%s0 + $0x70] sm:$0xff]
    %v521 = vld [vmem:[%s0 + $0x78] sm:$0xff]
    %v522 = vld [vmem:[%s0 + $0x80] sm:$0xff]
    %v523 = vld [vmem:[%s0 + $0x88] sm:$0xff]
    %v524 = vld [vmem:[%s0 + $0x90] sm:$0xff]
    %v525 = vld [vmem:[%s0 + $0x98] sm:$0xff]
    %v526 = vld [vmem:[%s0 + $0xa0] sm:$0xff]
    %v527 = vld [vmem:[%s0 + $0xa8] sm:$0xff]
    %v528 = vld [vmem:[%s0 + $0x6a] sm:$0x1]
    %v529 = vlaneseq
    %v530 = vshrl.u32 %v529, 7
    %v531 = vsub.s32 0, %v530
    %v532 = vrot.slane %v528, %v531
    %v533 = vld [vmem:[%s0 + $0x6b] sm:$0x1]
    %v534 = vlaneseq
    %v535 = vshrl.u32 %v534, 7
    %v536 = vsub.s32 0, %v535
    %v537 = vrot.slane %v533, %v536
    %vm538 = vcmask 261120
    %v540 = vsel %vm538, 0.0, 0
    %542 = vmatprep.subr.mxu0 0.0
    %543 = vmatpush1.msra.mxu0 %v520
    %544 = vmatprep.subr.mxu0 0.0
    %545 = vmatpush1.msra.mxu0 %v521
    %546 = vmatprep.subr.mxu0 0.0
    %547 = vmatpush1.msra.mxu0 %v522
    %548 = vmatprep.subr.mxu0 0.0
    %549 = vmatpush1.msra.mxu0 %v523
    %550 = vmatprep.subr.mxu0 0.0
    %551 = vmatpush1.msra.mxu0 0.0
    %552 = vmatprep.subr.mxu0 0.0
    %553 = vmatpush1.msra.mxu0 0.0
    %554 = vmatprep.subr.mxu0 0.0
    %555 = vmatpush1.msra.mxu0 0.0
    %556 = vmatprep.subr.mxu0 0.0
    %557 = vmatpush1.msra.mxu0 0.0
    %558 = vmatprep.subr.mxu0 0.0
    %559 = vmatpush1.msra.mxu0 0.0
    %560 = vmatprep.subr.mxu0 0.0
    %561 = vmatpush1.msra.mxu0 0.0
    %562 = vmatprep.subr.mxu0 0.0
    %563 = vmatpush1.msra.mxu0 0.0
    %564 = vmatprep.subr.mxu0 0.0
    %565 = vmatpush1.msra.mxu0 0.0
    %566 = vmatprep.subr.mxu0 0.0
    %567 = vmatpush1.msra.mxu0 0.0
    %568 = vmatprep.subr.mxu0 0.0
    %569 = vmatpush1.msra.mxu0 0.0
    %570 = vmatprep.subr.mxu0 0.0
    %571 = vmatpush1.msra.mxu0 0.0
    %572 = vmatprep.subr.mxu0 0.0
    %573 = vmatpush1.msra.mxu0 0.0
    %574 = vmatprep.subr.mxu0 0.0
    %575 = vmatpush1.msra.mxu0 0.0
    %576 = vmatprep.subr.mxu0 0.0
    %577 = vmatpush1.msra.mxu0 0.0
    %578 = vmatprep.subr.mxu0 0.0
    %579 = vmatpush1.msra.mxu0 0.0
    %580 = vmatprep.subr.mxu0 0.0
    %581 = vmatpush1.msra.mxu0 0.0
    %582 = vmatprep.subr.mxu0 0.0
    %583 = vmatpush1.msra.mxu0 0.0
    %584 = vmatprep.subr.mxu0 0.0
    %585 = vmatpush1.msra.mxu0 0.0
    %586 = vmatprep.subr.mxu0 0.0
    %587 = vmatpush1.msra.mxu0 0.0
    %588 = vmatprep.subr.mxu0 0.0
    %589 = vmatpush1.msra.mxu0 0.0
    %590 = vmatprep.subr.mxu0 0.0
    %591 = vmatpush1.msra.mxu0 0.0
    %592 = vmatprep.subr.mxu0 0.0
    %593 = vmatpush1.msra.mxu0 0.0
    %594 = vmatprep.subr.mxu0 0.0
    %595 = vmatpush1.msra.mxu0 0.0
    %596 = vmatprep.subr.mxu0 0.0
    %597 = vmatpush1.msra.mxu0 0.0
    %598 = vmatprep.subr.mxu0 0.0
    %599 = vmatpush1.msra.mxu0 0.0
    %600 = vmatprep.subr.mxu0 0.0
    %601 = vmatpush1.msra.mxu0 0.0
    %602 = vmatprep.subr.mxu0 0.0
    %603 = vmatpush1.msra.mxu0 0.0
    %604 = vmatprep.subr.mxu0 0.0
    %605 = vmatpush1.msra.mxu0 0.0
    %606 = vmatprep.mubr.f32.mxu0 0.0
    %607 = vmatmul.mubr.f32.gmra.mrb[0].mxu0 %v540
    %v608 = vpop.f32.mrb[0].mxu0
    %v609 = vadd.f32 %v532, %v608
    %v610 = vpop.f32.mrb[0].mxu0
    %611 = vdwg.mxu0
    %v612 = vadd.f32 %v413, %v609
    %v613 = vxor.u32 %v612, 2147483648
    %v614 = vmul.f32 %v613, 1.442695
    %v615 = vpow.pop %v614
    %v616 = vadd.f32 %v615, 1.0
    %v617 = vrcp.pop %v616
    %v618 = vmul.f32 1.0, %v617
    %620 = vrot.lane.b32.xlu0 %v609, 64
    %v621 = vpop.permute.xlu0 %620
    %v623 = vmul.f32 %v618, %v621
    %625 = vrot.lane.b32.xlu0 %v623, 64
    %v626 = vpop.permute.xlu0 %625
    %v628 = vadd.f32 %v413, %v626
    %v629 = vtanh.pop %v628
    %v630 = vsub.f32 1.0, %v618
    %632 = vrot.lane.b32.xlu0 %v629, 96
    %v633 = vpop.permute.xlu0 %632
    %v635 = vmul.f32 %v630, %v633
    %v636 = vmul.f32 %v618, 0.0
    %v637 = vadd.f32 %v635, %v636
    %638 = vmatprep.subr.mxu0 0.0
    %639 = vmatpush1.msra.mxu0 %v524
    %640 = vmatprep.subr.mxu0 0.0
    %641 = vmatpush1.msra.mxu0 %v525
    %642 = vmatprep.subr.mxu0 0.0
    %643 = vmatpush1.msra.mxu0 %v526
    %644 = vmatprep.subr.mxu0 0.0
    %645 = vmatpush1.msra.mxu0 %v527
    %646 = vmatprep.subr.mxu0 0.0
    %647 = vmatpush1.msra.mxu0 0.0
    %648 = vmatprep.subr.mxu0 0.0
    %649 = vmatpush1.msra.mxu0 0.0
    %650 = vmatprep.subr.mxu0 0.0
    %651 = vmatpush1.msra.mxu0 0.0
    %652 = vmatprep.subr.mxu0 0.0
    %653 = vmatpush1.msra.mxu0 0.0
    %654 = vmatprep.subr.mxu0 0.0
    %655 = vmatpush1.msra.mxu0 0.0
    %656 = vmatprep.subr.mxu0 0.0
    %657 = vmatpush1.msra.mxu0 0.0
    %658 = vmatprep.subr.mxu0 0.0
    %659 = vmatpush1.msra.mxu0 0.0
    %660 = vmatprep.subr.mxu0 0.0
    %661 = vmatpush1.msra.mxu0 0.0
    %662 = vmatprep.subr.mxu0 0.0
    %663 = vmatpush1.msra.mxu0 0.0
    %664 = vmatprep.subr.mxu0 0.0
    %665 = vmatpush1.msra.mxu0 0.0
    %666 = vmatprep.subr.mxu0 0.0
    %667 = vmatpush1.msra.mxu0 0.0
    %668 = vmatprep.subr.mxu0 0.0
    %669 = vmatpush1.msra.mxu0 0.0
    %670 = vmatprep.subr.mxu0 0.0
    %671 = vmatpush1.msra.mxu0 0.0
    %672 = vmatprep.subr.mxu0 0.0
    %673 = vmatpush1.msra.mxu0 0.0
    %674 = vmatprep.subr.mxu0 0.0
    %675 = vmatpush1.msra.mxu0 0.0
    %676 = vmatprep.subr.mxu0 0.0
    %677 = vmatpush1.msra.mxu0 0.0
    %678 = vmatprep.subr.mxu0 0.0
    %679 = vmatpush1.msra.mxu0 0.0
    %680 = vmatprep.subr.mxu0 0.0
    %681 = vmatpush1.msra.mxu0 0.0
    %682 = vmatprep.subr.mxu0 0.0
    %683 = vmatpush1.msra.mxu0 0.0
    %684 = vmatprep.subr.mxu0 0.0
    %685 = vmatpush1.msra.mxu0 0.0
    %686 = vmatprep.subr.mxu0 0.0
    %687 = vmatpush1.msra.mxu0 0.0
    %688 = vmatprep.subr.mxu0 0.0
    %689 = vmatpush1.msra.mxu0 0.0
    %690 = vmatprep.subr.mxu0 0.0
    %691 = vmatpush1.msra.mxu0 0.0
    %692 = vmatprep.subr.mxu0 0.0
    %693 = vmatpush1.msra.mxu0 0.0
    %694 = vmatprep.subr.mxu0 0.0
    %695 = vmatpush1.msra.mxu0 0.0
    %696 = vmatprep.subr.mxu0 0.0
    %697 = vmatpush1.msra.mxu0 0.0
    %698 = vmatprep.subr.mxu0 0.0
    %699 = vmatpush1.msra.mxu0 0.0
    %700 = vmatprep.subr.mxu0 0.0
    %701 = vmatpush1.msra.mxu0 0.0
    %702 = vmatprep.mubr.f32.mxu0 0.0
    %703 = vmatmul.mubr.f32.gmra.mrb[0].mxu0 %v540
    %v704 = vpop.f32.mrb[0].mxu0
    %v705 = vadd.f32 %v537, %v704
    %v706 = vpop.f32.mrb[0].mxu0
    %707 = vdwg.mxu0
    %v709 = vrot.slane %v705, 2
    %v711 = vadd.f32 %v517, %v709
    %v712 = vxor.u32 %v711, 2147483648
    %v713 = vmul.f32 %v712, 1.442695
    %v714 = vpow.pop %v713
    %v715 = vadd.f32 %v714, 1.0
    %v716 = vrcp.pop %v715
    %v717 = vmul.f32 1.0, %v716
    %718 = vrot.lane.b32.xlu0 %v709, 64
    %v719 = vpop.permute.xlu0 %718
    %v721 = vmul.f32 %v717, %v719
    %723 = vrot.lane.b32.xlu0 %v721, 64
    %v724 = vpop.permute.xlu0 %723
    %v726 = vadd.f32 %v517, %v724
    %v727 = vtanh.pop %v726
    %v728 = vsub.f32 1.0, %v717
    %730 = vrot.lane.b32.xlu0 %v727, 96
    %v731 = vpop.permute.xlu0 %730
    %v733 = vmul.f32 %v728, %v731
    %v734 = vmul.f32 %v717, 0.0
    %v735 = vadd.f32 %v733, %v734
    %737 = vrot.lane.b32.xlu0 %v637, 96
    %v738 = vpop.permute.xlu0 %737
    %v739 = vsel %vm538, %v738, 0
    %741 = vmatprep.subr.mxu0 0.0
    %742 = vmatpush1.msra.mxu0 %v520
    %743 = vmatprep.subr.mxu0 0.0
    %744 = vmatpush1.msra.mxu0 %v521
    %745 = vmatprep.subr.mxu0 0.0
    %746 = vmatpush1.msra.mxu0 %v522
    %747 = vmatprep.subr.mxu0 0.0
    %748 = vmatpush1.msra.mxu0 %v523
    %749 = vmatprep.subr.mxu0 0.0
    %750 = vmatpush1.msra.mxu0 0.0
    %751 = vmatprep.subr.mxu0 0.0
    %752 = vmatpush1.msra.mxu0 0.0
    %753 = vmatprep.subr.mxu0 0.0
    %754 = vmatpush1.msra.mxu0 0.0
    %755 = vmatprep.subr.mxu0 0.0
    %756 = vmatpush1.msra.mxu0 0.0
    %757 = vmatprep.subr.mxu0 0.0
    %758 = vmatpush1.msra.mxu0 0.0
    %759 = vmatprep.subr.mxu0 0.0
    %760 = vmatpush1.msra.mxu0 0.0
    %761 = vmatprep.subr.mxu0 0.0
    %762 = vmatpush1.msra.mxu0 0.0
    %763 = vmatprep.subr.mxu0 0.0
    %764 = vmatpush1.msra.mxu0 0.0
    %765 = vmatprep.subr.mxu0 0.0
    %766 = vmatpush1.msra.mxu0 0.0
    %767 = vmatprep.subr.mxu0 0.0
    %768 = vmatpush1.msra.mxu0 0.0
    %769 = vmatprep.subr.mxu0 0.0
    %770 = vmatpush1.msra.mxu0 0.0
    %771 = vmatprep.subr.mxu0 0.0
    %772 = vmatpush1.msra.mxu0 0.0
    %773 = vmatprep.subr.mxu0 0.0
    %774 = vmatpush1.msra.mxu0 0.0
    %775 = vmatprep.subr.mxu0 0.0
    %776 = vmatpush1.msra.mxu0 0.0
    %777 = vmatprep.subr.mxu0 0.0
    %778 = vmatpush1.msra.mxu0 0.0
    %779 = vmatprep.subr.mxu0 0.0
    %780 = vmatpush1.msra.mxu0 0.0
    %781 = vmatprep.subr.mxu0 0.0
    %782 = vmatpush1.msra.mxu0 0.0
    %783 = vmatprep.subr.mxu0 0.0
    %784 = vmatpush1.msra.mxu0 0.0
    %785 = vmatprep.subr.mxu0 0.0
    %786 = vmatpush1.msra.mxu0 0.0
    %787 = vmatprep.subr.mxu0 0.0
    %788 = vmatpush1.msra.mxu0 0.0
    %789 = vmatprep.subr.mxu0 0.0
    %790 = vmatpush1.msra.mxu0 0.0
    %791 = vmatprep.subr.mxu0 0.0
    %792 = vmatpush1.msra.mxu0 0.0
    %793 = vmatprep.subr.mxu0 0.0
    %794 = vmatpush1.msra.mxu0 0.0
    %795 = vmatprep.subr.mxu0 0.0
    %796 = vmatpush1.msra.mxu0 0.0
    %797 = vmatprep.subr.mxu0 0.0
    %798 = vmatpush1.msra.mxu0 0.0
    %799 = vmatprep.subr.mxu0 0.0
    %800 = vmatpush1.msra.mxu0 0.0
    %801 = vmatprep.subr.mxu0 0.0
    %802 = vmatpush1.msra.mxu0 0.0
    %803 = vmatprep.subr.mxu0 0.0
    %804 = vmatpush1.msra.mxu0 0.0
    %805 = vmatprep.mubr.f32.mxu0 0.0
    %806 = vmatmul.mubr.f32.gmra.mrb[0].mxu0 %v739
    %v807 = vpop.f32.mrb[0].mxu0
    %v808 = vadd.f32 %v532, %v807
    %v809 = vpop.f32.mrb[0].mxu0
    %810 = vdwg.mxu0
    %v812 = vrot.slane %v808, 6
    %v814 = vadd.f32 %v413, %v812
    %v815 = vxor.u32 %v814, 2147483648
    %v816 = vmul.f32 %v815, 1.442695
    %v817 = vpow.pop %v816
    %v818 = vadd.f32 %v817, 1.0
    %v819 = vrcp.pop %v818
    %v820 = vmul.f32 1.0, %v819
    %821 = vrot.lane.b32.xlu0 %v812, 64
    %v822 = vpop.permute.xlu0 %821
    %v824 = vmul.f32 %v820, %v822
    %826 = vrot.lane.b32.xlu0 %v824, 64
    %v827 = vpop.permute.xlu0 %826
    %v829 = vadd.f32 %v413, %v827
    %v830 = vtanh.pop %v829
    %v831 = vsub.f32 1.0, %v820
    %833 = vrot.lane.b32.xlu0 %v830, 96
    %v834 = vpop.permute.xlu0 %833
    %v836 = vmul.f32 %v831, %v834
    %v837 = vrot.slane %v637, 6
    %v839 = vmul.f32 %v820, %v837
    %v840 = vadd.f32 %v836, %v839
    %v842 = vrot.slane %v735, 6
    %843 = vrot.lane.b32.xlu0 %v842, 96
    %v844 = vpop.permute.xlu0 %843
    %v845 = vsel %vm538, %v844, 0
    %847 = vmatprep.subr.mxu0 0.0
    %848 = vmatpush1.msra.mxu0 %v524
    %849 = vmatprep.subr.mxu0 0.0
    %850 = vmatpush1.msra.mxu0 %v525
    %851 = vmatprep.subr.mxu0 0.0
    %852 = vmatpush1.msra.mxu0 %v526
    %853 = vmatprep.subr.mxu0 0.0
    %854 = vmatpush1.msra.mxu0 %v527
    %855 = vmatprep.subr.mxu0 0.0
    %856 = vmatpush1.msra.mxu0 0.0
    %857 = vmatprep.subr.mxu0 0.0
    %858 = vmatpush1.msra.mxu0 0.0
    %859 = vmatprep.subr.mxu0 0.0
    %860 = vmatpush1.msra.mxu0 0.0
    %861 = vmatprep.subr.mxu0 0.0
    %862 = vmatpush1.msra.mxu0 0.0
    %863 = vmatprep.subr.mxu0 0.0
    %864 = vmatpush1.msra.mxu0 0.0
    %865 = vmatprep.subr.mxu0 0.0
    %866 = vmatpush1.msra.mxu0 0.0
    %867 = vmatprep.subr.mxu0 0.0
    %868 = vmatpush1.msra.mxu0 0.0
    %869 = vmatprep.subr.mxu0 0.0
    %870 = vmatpush1.msra.mxu0 0.0
    %871 = vmatprep.subr.mxu0 0.0
    %872 = vmatpush1.msra.mxu0 0.0
    %873 = vmatprep.subr.mxu0 0.0
    %874 = vmatpush1.msra.mxu0 0.0
    %875 = vmatprep.subr.mxu0 0.0
    %876 = vmatpush1.msra.mxu0 0.0
    %877 = vmatprep.subr.mxu0 0.0
    %878 = vmatpush1.msra.mxu0 0.0
    %879 = vmatprep.subr.mxu0 0.0
    %880 = vmatpush1.msra.mxu0 0.0
    %881 = vmatprep.subr.mxu0 0.0
    %882 = vmatpush1.msra.mxu0 0.0
    %883 = vmatprep.subr.mxu0 0.0
    %884 = vmatpush1.msra.mxu0 0.0
    %885 = vmatprep.subr.mxu0 0.0
    %886 = vmatpush1.msra.mxu0 0.0
    %887 = vmatprep.subr.mxu0 0.0
    %888 = vmatpush1.msra.mxu0 0.0
    %889 = vmatprep.subr.mxu0 0.0
    %890 = vmatpush1.msra.mxu0 0.0
    %891 = vmatprep.subr.mxu0 0.0
    %892 = vmatpush1.msra.mxu0 0.0
    %893 = vmatprep.subr.mxu0 0.0
    %894 = vmatpush1.msra.mxu0 0.0
    %895 = vmatprep.subr.mxu0 0.0
    %896 = vmatpush1.msra.mxu0 0.0
    %897 = vmatprep.subr.mxu0 0.0
    %898 = vmatpush1.msra.mxu0 0.0
    %899 = vmatprep.subr.mxu0 0.0
    %900 = vmatpush1.msra.mxu0 0.0
    %901 = vmatprep.subr.mxu0 0.0
    %902 = vmatpush1.msra.mxu0 0.0
    %903 = vmatprep.subr.mxu0 0.0
    %904 = vmatpush1.msra.mxu0 0.0
    %905 = vmatprep.subr.mxu0 0.0
    %906 = vmatpush1.msra.mxu0 0.0
    %907 = vmatprep.subr.mxu0 0.0
    %908 = vmatpush1.msra.mxu0 0.0
    %909 = vmatprep.subr.mxu0 0.0
    %910 = vmatpush1.msra.mxu0 0.0
    %911 = vmatprep.mubr.f32.mxu0 0.0
    %912 = vmatmul.mubr.f32.gmra.mrb[0].mxu0 %v845
    %v913 = vpop.f32.mrb[0].mxu0
    %v914 = vadd.f32 %v537, %v913
    %v915 = vpop.f32.mrb[0].mxu0
    %916 = vdwg.mxu0
    %v918 = vrot.slane %v914, 4
    %v920 = vadd.f32 %v517, %v918
    %v921 = vxor.u32 %v920, 2147483648
    %v922 = vmul.f32 %v921, 1.442695
    %v923 = vpow.pop %v922
    %v924 = vadd.f32 %v923, 1.0
    %v925 = vrcp.pop %v924
    %v926 = vmul.f32 1.0, %v925
    %927 = vrot.lane.b32.xlu0 %v918, 64
    %v928 = vpop.permute.xlu0 %927
    %v930 = vmul.f32 %v926, %v928
    %932 = vrot.lane.b32.xlu0 %v930, 64
    %v933 = vpop.permute.xlu0 %932
    %v935 = vadd.f32 %v517, %v933
    %v936 = vtanh.pop %v935
    %v937 = vsub.f32 1.0, %v926
    %939 = vrot.lane.b32.xlu0 %v936, 96
    %v940 = vpop.permute.xlu0 %939
    %v942 = vmul.f32 %v937, %v940
    %v943 = vrot.slane %v735, 2
    %v945 = vmul.f32 %v926, %v943
    %v946 = vadd.f32 %v942, %v945
    %v948 = vrot.slane %v840, 2
    %949 = vrot.lane.b32.xlu0 %v948, 96
    %v950 = vpop.permute.xlu0 %949
    %v951 = vsel %vm538, %v950, 0
    %953 = vmatprep.subr.mxu0 0.0
    %954 = vmatpush1.msra.mxu0 %v520
    %955 = vmatprep.subr.mxu0 0.0
    %956 = vmatpush1.msra.mxu0 %v521
    %957 = vmatprep.subr.mxu0 0.0
    %958 = vmatpush1.msra.mxu0 %v522
    %959 = vmatprep.subr.mxu0 0.0
    %960 = vmatpush1.msra.mxu0 %v523
    %961 = vmatprep.subr.mxu0 0.0
    %962 = vmatpush1.msra.mxu0 0.0
    %963 = vmatprep.subr.mxu0 0.0
    %964 = vmatpush1.msra.mxu0 0.0
    %965 = vmatprep.subr.mxu0 0.0
    %966 = vmatpush1.msra.mxu0 0.0
    %967 = vmatprep.subr.mxu0 0.0
    %968 = vmatpush1.msra.mxu0 0.0
    %969 = vmatprep.subr.mxu0 0.0
    %970 = vmatpush1.msra.mxu0 0.0
    %971 = vmatprep.subr.mxu0 0.0
    %972 = vmatpush1.msra.mxu0 0.0
    %973 = vmatprep.subr.mxu0 0.0
    %974 = vmatpush1.msra.mxu0 0.0
    %975 = vmatprep.subr.mxu0 0.0
    %976 = vmatpush1.msra.mxu0 0.0
    %977 = vmatprep.subr.mxu0 0.0
    %978 = vmatpush1.msra.mxu0 0.0
    %979 = vmatprep.subr.mxu0 0.0
    %980 = vmatpush1.msra.mxu0 0.0
    %981 = vmatprep.subr.mxu0 0.0
    %982 = vmatpush1.msra.mxu0 0.0
    %983 = vmatprep.subr.mxu0 0.0
    %984 = vmatpush1.msra.mxu0 0.0
    %985 = vmatprep.subr.mxu0 0.0
    %986 = vmatpush1.msra.mxu0 0.0
    %987 = vmatprep.subr.mxu0 0.0
    %988 = vmatpush1.msra.mxu0 0.0
    %989 = vmatprep.subr.mxu0 0.0
    %990 = vmatpush1.msra.mxu0 0.0
    %991 = vmatprep.subr.mxu0 0.0
    %992 = vmatpush1.msra.mxu0 0.0
    %993 = vmatprep.subr.mxu0 0.0
    %994 = vmatpush1.msra.mxu0 0.0
    %995 = vmatprep.subr.mxu0 0.0
    %996 = vmatpush1.msra.mxu0 0.0
    %997 = vmatprep.subr.mxu0 0.0
    %998 = vmatpush1.msra.mxu0 0.0
    %999 = vmatprep.subr.mxu0 0.0
    %1000 = vmatpush1.msra.mxu0 0.0
    %1001 = vmatprep.subr.mxu0 0.0
    %1002 = vmatpush1.msra.mxu0 0.0
    %1003 = vmatprep.subr.mxu0 0.0
    %1004 = vmatpush1.msra.mxu0 0.0
    %1005 = vmatprep.subr.mxu0 0.0
    %1006 = vmatpush1.msra.mxu0 0.0
    %1007 = vmatprep.subr.mxu0 0.0
    %1008 = vmatpush1.msra.mxu0 0.0
    %1009 = vmatprep.subr.mxu0 0.0
    %1010 = vmatpush1.msra.mxu0 0.0
    %1011 = vmatprep.subr.mxu0 0.0
    %1012 = vmatpush1.msra.mxu0 0.0
    %1013 = vmatprep.subr.mxu0 0.0
    %1014 = vmatpush1.msra.mxu0 0.0
    %1015 = vmatprep.subr.mxu0 0.0
    %1016 = vmatpush1.msra.mxu0 0.0
    %1017 = vmatprep.mubr.f32.mxu0 0.0
    %1018 = vmatmul.mubr.f32.gmra.mrb[0].mxu0 %v951
    %v1019 = vpop.f32.mrb[0].mxu0
    %v1020 = vadd.f32 %v532, %v1019
    %v1021 = vpop.f32.mrb[0].mxu0
    %1022 = vdwg.mxu0
    %v1024 = vrot.slane %v1020, 4
    %v1026 = vadd.f32 %v413, %v1024
    %v1027 = vxor.u32 %v1026, 2147483648
    %v1028 = vmul.f32 %v1027, 1.442695
    %v1029 = vpow.pop %v1028
    %v1030 = vadd.f32 %v1029, 1.0
    %v1031 = vrcp.pop %v1030
    %v1032 = vmul.f32 1.0, %v1031
    %1033 = vrot.lane.b32.xlu0 %v1024, 64
    %v1034 = vpop.permute.xlu0 %1033
    %v1036 = vmul.f32 %v1032, %v1034
    %1038 = vrot.lane.b32.xlu0 %v1036, 64
    %v1039 = vpop.permute.xlu0 %1038
    %v1041 = vadd.f32 %v413, %v1039
    %v1042 = vtanh.pop %v1041
    %v1043 = vsub.f32 1.0, %v1032
    %1045 = vrot.lane.b32.xlu0 %v1042, 96
    %v1046 = vpop.permute.xlu0 %1045
    %v1048 = vmul.f32 %v1043, %v1046
    %v1049 = vrot.slane %v840, 6
    %v1051 = vmul.f32 %v1032, %v1049
    %v1052 = vadd.f32 %v1048, %v1051
    %v1054 = vrot.slane %v946, 4
    %1055 = vrot.lane.b32.xlu0 %v1054, 96
    %v1056 = vpop.permute.xlu0 %1055
    %v1057 = vsel %vm538, %v1056, 0
    %1059 = vmatprep.subr.mxu0 0.0
    %1060 = vmatpush1.msra.mxu0 %v524
    %1061 = vmatprep.subr.mxu0 0.0
    %1062 = vmatpush1.msra.mxu0 %v525
    %1063 = vmatprep.subr.mxu0 0.0
    %1064 = vmatpush1.msra.mxu0 %v526
    %1065 = vmatprep.subr.mxu0 0.0
    %1066 = vmatpush1.msra.mxu0 %v527
    %1067 = vmatprep.subr.mxu0 0.0
    %1068 = vmatpush1.msra.mxu0 0.0
    %1069 = vmatprep.subr.mxu0 0.0
    %1070 = vmatpush1.msra.mxu0 0.0
    %1071 = vmatprep.subr.mxu0 0.0
    %1072 = vmatpush1.msra.mxu0 0.0
    %1073 = vmatprep.subr.mxu0 0.0
    %1074 = vmatpush1.msra.mxu0 0.0
    %1075 = vmatprep.subr.mxu0 0.0
    %1076 = vmatpush1.msra.mxu0 0.0
    %1077 = vmatprep.subr.mxu0 0.0
    %1078 = vmatpush1.msra.mxu0 0.0
    %1079 = vmatprep.subr.mxu0 0.0
    %1080 = vmatpush1.msra.mxu0 0.0
    %1081 = vmatprep.subr.mxu0 0.0
    %1082 = vmatpush1.msra.mxu0 0.0
    %1083 = vmatprep.subr.mxu0 0.0
    %1084 = vmatpush1.msra.mxu0 0.0
    %1085 = vmatprep.subr.mxu0 0.0
    %1086 = vmatpush1.msra.mxu0 0.0
    %1087 = vmatprep.subr.mxu0 0.0
    %1088 = vmatpush1.msra.mxu0 0.0
    %1089 = vmatprep.subr.mxu0 0.0
    %1090 = vmatpush1.msra.mxu0 0.0
    %1091 = vmatprep.subr.mxu0 0.0
    %1092 = vmatpush1.msra.mxu0 0.0
    %1093 = vmatprep.subr.mxu0 0.0
    %1094 = vmatpush1.msra.mxu0 0.0
    %1095 = vmatprep.subr.mxu0 0.0
    %1096 = vmatpush1.msra.mxu0 0.0
    %1097 = vmatprep.subr.mxu0 0.0
    %1098 = vmatpush1.msra.mxu0 0.0
    %1099 = vmatprep.subr.mxu0 0.0
    %1100 = vmatpush1.msra.mxu0 0.0
    %1101 = vmatprep.subr.mxu0 0.0
    %1102 = vmatpush1.msra.mxu0 0.0
    %1103 = vmatprep.subr.mxu0 0.0
    %1104 = vmatpush1.msra.mxu0 0.0
    %1105 = vmatprep.subr.mxu0 0.0
    %1106 = vmatpush1.msra.mxu0 0.0
    %1107 = vmatprep.subr.mxu0 0.0
    %1108 = vmatpush1.msra.mxu0 0.0
    %1109 = vmatprep.subr.mxu0 0.0
    %1110 = vmatpush1.msra.mxu0 0.0
    %1111 = vmatprep.subr.mxu0 0.0
    %1112 = vmatpush1.msra.mxu0 0.0
    %1113 = vmatprep.subr.mxu0 0.0
    %1114 = vmatpush1.msra.mxu0 0.0
    %1115 = vmatprep.subr.mxu0 0.0
    %1116 = vmatpush1.msra.mxu0 0.0
    %1117 = vmatprep.subr.mxu0 0.0
    %1118 = vmatpush1.msra.mxu0 0.0
    %1119 = vmatprep.subr.mxu0 0.0
    %1120 = vmatpush1.msra.mxu0 0.0
    %1121 = vmatprep.subr.mxu0 0.0
    %1122 = vmatpush1.msra.mxu0 0.0
    %1123 = vmatprep.mubr.f32.mxu0 0.0
    %1124 = vmatmul.mubr.f32.gmra.mrb[0].mxu0 %v1057
    %v1125 = vpop.f32.mrb[0].mxu0
    %v1126 = vadd.f32 %v537, %v1125
    %v1127 = vpop.f32.mrb[0].mxu0
    %1128 = vdwg.mxu0
    %v1130 = vrot.slane %v1126, 6
    %v1132 = vadd.f32 %v517, %v1130
    %v1133 = vxor.u32 %v1132, 2147483648
    %v1134 = vmul.f32 %v1133, 1.442695
    %v1135 = vpow.pop %v1134
    %v1136 = vadd.f32 %v1135, 1.0
    %v1137 = vrcp.pop %v1136
    %v1138 = vmul.f32 1.0, %v1137
    %1139 = vrot.lane.b32.xlu0 %v1130, 64
    %v1140 = vpop.permute.xlu0 %1139
    %v1142 = vmul.f32 %v1138, %v1140
    %1144 = vrot.lane.b32.xlu0 %v1142, 64
    %v1145 = vpop.permute.xlu0 %1144
    %v1147 = vadd.f32 %v517, %v1145
    %v1148 = vtanh.pop %v1147
    %v1149 = vsub.f32 1.0, %v1138
    %1151 = vrot.lane.b32.xlu0 %v1148, 96
    %v1152 = vpop.permute.xlu0 %1151
    %v1154 = vmul.f32 %v1149, %v1152
    %v1155 = vrot.slane %v946, 2
    %v1157 = vmul.f32 %v1138, %v1155
    %v1158 = vadd.f32 %v1154, %v1157
    %v1160 = vrot.slane %v1052, 4
    %1161 = vrot.lane.b32.xlu0 %v1160, 96
    %v1162 = vpop.permute.xlu0 %1161
    %v1163 = vsel %vm538, %v1162, 0
    %1165 = vmatprep.subr.mxu0 0.0
    %1166 = vmatpush1.msra.mxu0 %v520
    %1167 = vmatprep.subr.mxu0 0.0
    %1168 = vmatpush1.msra.mxu0 %v521
    %1169 = vmatprep.subr.mxu0 0.0
    %1170 = vmatpush1.msra.mxu0 %v522
    %1171 = vmatprep.subr.mxu0 0.0
    %1172 = vmatpush1.msra.mxu0 %v523
    %1173 = vmatprep.subr.mxu0 0.0
    %1174 = vmatpush1.msra.mxu0 0.0
    %1175 = vmatprep.subr.mxu0 0.0
    %1176 = vmatpush1.msra.mxu0 0.0
    %1177 = vmatprep.subr.mxu0 0.0
    %1178 = vmatpush1.msra.mxu0 0.0
    %1179 = vmatprep.subr.mxu0 0.0
    %1180 = vmatpush1.msra.mxu0 0.0
    %1181 = vmatprep.subr.mxu0 0.0
    %1182 = vmatpush1.msra.mxu0 0.0
    %1183 = vmatprep.subr.mxu0 0.0
    %1184 = vmatpush1.msra.mxu0 0.0
    %1185 = vmatprep.subr.mxu0 0.0
    %1186 = vmatpush1.msra.mxu0 0.0
    %1187 = vmatprep.subr.mxu0 0.0
    %1188 = vmatpush1.msra.mxu0 0.0
    %1189 = vmatprep.subr.mxu0 0.0
    %1190 = vmatpush1.msra.mxu0 0.0
    %1191 = vmatprep.subr.mxu0 0.0
    %1192 = vmatpush1.msra.mxu0 0.0
    %1193 = vmatprep.subr.mxu0 0.0
    %1194 = vmatpush1.msra.mxu0 0.0
    %1195 = vmatprep.subr.mxu0 0.0
    %1196 = vmatpush1.msra.mxu0 0.0
    %1197 = vmatprep.subr.mxu0 0.0
    %1198 = vmatpush1.msra.mxu0 0.0
    %1199 = vmatprep.subr.mxu0 0.0
    %1200 = vmatpush1.msra.mxu0 0.0
    %1201 = vmatprep.subr.mxu0 0.0
    %1202 = vmatpush1.msra.mxu0 0.0
    %1203 = vmatprep.subr.mxu0 0.0
    %1204 = vmatpush1.msra.mxu0 0.0
    %1205 = vmatprep.subr.mxu0 0.0
    %1206 = vmatpush1.msra.mxu0 0.0
    %1207 = vmatprep.subr.mxu0 0.0
    %1208 = vmatpush1.msra.mxu0 0.0
    %1209 = vmatprep.subr.mxu0 0.0
    %1210 = vmatpush1.msra.mxu0 0.0
    %1211 = vmatprep.subr.mxu0 0.0
    %1212 = vmatpush1.msra.mxu0 0.0
    %1213 = vmatprep.subr.mxu0 0.0
    %1214 = vmatpush1.msra.mxu0 0.0
    %1215 = vmatprep.subr.mxu0 0.0
    %1216 = vmatpush1.msra.mxu0 0.0
    %1217 = vmatprep.subr.mxu0 0.0
    %1218 = vmatpush1.msra.mxu0 0.0
    %1219 = vmatprep.subr.mxu0 0.0
    %1220 = vmatpush1.msra.mxu0 0.0
    %1221 = vmatprep.subr.mxu0 0.0
    %1222 = vmatpush1.msra.mxu0 0.0
    %1223 = vmatprep.subr.mxu0 0.0
    %1224 = vmatpush1.msra.mxu0 0.0
    %1225 = vmatprep.subr.mxu0 0.0
    %1226 = vmatpush1.msra.mxu0 0.0
    %1227 = vmatprep.subr.mxu0 0.0
    %1228 = vmatpush1.msra.mxu0 0.0
    %1229 = vmatprep.mubr.f32.mxu0 0.0
    %1230 = vmatmul.mubr.f32.gmra.mrb[0].mxu0 %v1163
    %v1231 = vpop.f32.mrb[0].mxu0
    %v1232 = vadd.f32 %v532, %v1231
    %v1233 = vpop.f32.mrb[0].mxu0
    %1234 = vdwg.mxu0
    %v1236 = vrot.slane %v1232, 2
    %v1238 = vadd.f32 %v413, %v1236
    %v1239 = vxor.u32 %v1238, 2147483648
    %v1240 = vmul.f32 %v1239, 1.442695
    %v1241 = vpow.pop %v1240
    %v1242 = vadd.f32 %v1241, 1.0
    %v1243 = vrcp.pop %v1242
    %v1244 = vmul.f32 1.0, %v1243
    %1245 = vrot.lane.b32.xlu0 %v1236, 64
    %v1246 = vpop.permute.xlu0 %1245
    %v1248 = vmul.f32 %v1244, %v1246
    %1250 = vrot.lane.b32.xlu0 %v1248, 64
    %v1251 = vpop.permute.xlu0 %1250
    %v1253 = vadd.f32 %v413, %v1251
    %v1254 = vtanh.pop %v1253
    %v1255 = vsub.f32 1.0, %v1244
    %1257 = vrot.lane.b32.xlu0 %v1254, 96
    %v1258 = vpop.permute.xlu0 %1257
    %v1260 = vmul.f32 %v1255, %v1258
    %v1261 = vrot.slane %v1052, 6
    %v1263 = vmul.f32 %v1244, %v1261
    %v1264 = vadd.f32 %v1260, %v1263
    %v1266 = vrot.slane %v1158, 2
    %1267 = vrot.lane.b32.xlu0 %v1266, 96
    %v1268 = vpop.permute.xlu0 %1267
    %v1269 = vsel %vm538, %v1268, 0
    %1271 = vmatprep.subr.mxu0 0.0
    %1272 = vmatpush1.msra.mxu0 %v524
    %1273 = vmatprep.subr.mxu0 0.0
    %1274 = vmatpush1.msra.mxu0 %v525
    %1275 = vmatprep.subr.mxu0 0.0
    %1276 = vmatpush1.msra.mxu0 %v526
    %1277 = vmatprep.subr.mxu0 0.0
    %1278 = vmatpush1.msra.mxu0 %v527
    %1279 = vmatprep.subr.mxu0 0.0
    %1280 = vmatpush1.msra.mxu0 0.0
    %1281 = vmatprep.subr.mxu0 0.0
    %1282 = vmatpush1.msra.mxu0 0.0
    %1283 = vmatprep.subr.mxu0 0.0
    %1284 = vmatpush1.msra.mxu0 0.0
    %1285 = vmatprep.subr.mxu0 0.0
    %1286 = vmatpush1.msra.mxu0 0.0
    %1287 = vmatprep.subr.mxu0 0.0
    %1288 = vmatpush1.msra.mxu0 0.0
    %1289 = vmatprep.subr.mxu0 0.0
    %1290 = vmatpush1.msra.mxu0 0.0
    %1291 = vmatprep.subr.mxu0 0.0
    %1292 = vmatpush1.msra.mxu0 0.0
    %1293 = vmatprep.subr.mxu0 0.0
    %1294 = vmatpush1.msra.mxu0 0.0
    %1295 = vmatprep.subr.mxu0 0.0
    %1296 = vmatpush1.msra.mxu0 0.0
    %1297 = vmatprep.subr.mxu0 0.0
    %1298 = vmatpush1.msra.mxu0 0.0
    %1299 = vmatprep.subr.mxu0 0.0
    %1300 = vmatpush1.msra.mxu0 0.0
    %1301 = vmatprep.subr.mxu0 0.0
    %1302 = vmatpush1.msra.mxu0 0.0
    %1303 = vmatprep.subr.mxu0 0.0
    %1304 = vmatpush1.msra.mxu0 0.0
    %1305 = vmatprep.subr.mxu0 0.0
    %1306 = vmatpush1.msra.mxu0 0.0
    %1307 = vmatprep.subr.mxu0 0.0
    %1308 = vmatpush1.msra.mxu0 0.0
    %1309 = vmatprep.subr.mxu0 0.0
    %1310 = vmatpush1.msra.mxu0 0.0
    %1311 = vmatprep.subr.mxu0 0.0
    %1312 = vmatpush1.msra.mxu0 0.0
    %1313 = vmatprep.subr.mxu0 0.0
    %1314 = vmatpush1.msra.mxu0 0.0
    %1315 = vmatprep.subr.mxu0 0.0
    %1316 = vmatpush1.msra.mxu0 0.0
    %1317 = vmatprep.subr.mxu0 0.0
    %1318 = vmatpush1.msra.mxu0 0.0
    %1319 = vmatprep.subr.mxu0 0.0
    %1320 = vmatpush1.msra.mxu0 0.0
    %1321 = vmatprep.subr.mxu0 0.0
    %1322 = vmatpush1.msra.mxu0 0.0
    %1323 = vmatprep.subr.mxu0 0.0
    %1324 = vmatpush1.msra.mxu0 0.0
    %1325 = vmatprep.subr.mxu0 0.0
    %1326 = vmatpush1.msra.mxu0 0.0
    %1327 = vmatprep.subr.mxu0 0.0
    %1328 = vmatpush1.msra.mxu0 0.0
    %1329 = vmatprep.subr.mxu0 0.0
    %1330 = vmatpush1.msra.mxu0 0.0
    %1331 = vmatprep.subr.mxu0 0.0
    %1332 = vmatpush1.msra.mxu0 0.0
    %1333 = vmatprep.subr.mxu0 0.0
    %1334 = vmatpush1.msra.mxu0 0.0
    %1335 = vmatprep.mubr.f32.mxu0 0.0
    %1336 = vmatmul.mubr.f32.gmra.mrb[0].mxu0 %v1269
    %v1337 = vpop.f32.mrb[0].mxu0
    %v1338 = vadd.f32 %v537, %v1337
    %v1339 = vpop.f32.mrb[0].mxu0
    %1340 = vdwg.mxu0
    %v1341 = vadd.f32 %v517, %v1338
    %v1342 = vxor.u32 %v1341, 2147483648
    %v1343 = vmul.f32 %v1342, 1.442695
    %v1344 = vpow.pop %v1343
    %v1345 = vadd.f32 %v1344, 1.0
    %v1346 = vrcp.pop %v1345
    %v1347 = vmul.f32 1.0, %v1346
    %1349 = vrot.lane.b32.xlu0 %v1338, 64
    %v1350 = vpop.permute.xlu0 %1349
    %v1352 = vmul.f32 %v1347, %v1350
    %1354 = vrot.lane.b32.xlu0 %v1352, 64
    %v1355 = vpop.permute.xlu0 %1354
    %v1357 = vadd.f32 %v517, %v1355
    %v1358 = vtanh.pop %v1357
    %v1359 = vsub.f32 1.0, %v1347
    %1361 = vrot.lane.b32.xlu0 %v1358, 96
    %v1362 = vpop.permute.xlu0 %1361
    %v1364 = vmul.f32 %v1359, %v1362
    %v1366 = vmul.f32 %v1347, %v1266
    %v1367 = vadd.f32 %v1364, %v1366
    %v1369 = vrot.slane %v1264, 6
    %1370 = vrot.lane.b32.xlu0 %v1369, 96
    %v1371 = vpop.permute.xlu0 %1370
    %v1372 = vsel %vm538, %v1371, 0
    %1374 = vmatprep.subr.mxu0 0.0
    %1375 = vmatpush1.msra.mxu0 %v520
    %1376 = vmatprep.subr.mxu0 0.0
    %1377 = vmatpush1.msra.mxu0 %v521
    %1378 = vmatprep.subr.mxu0 0.0
    %1379 = vmatpush1.msra.mxu0 %v522
    %1380 = vmatprep.subr.mxu0 0.0
    %1381 = vmatpush1.msra.mxu0 %v523
    %1382 = vmatprep.subr.mxu0 0.0
    %1383 = vmatpush1.msra.mxu0 0.0
    %1384 = vmatprep.subr.mxu0 0.0
    %1385 = vmatpush1.msra.mxu0 0.0
    %1386 = vmatprep.subr.mxu0 0.0
    %1387 = vmatpush1.msra.mxu0 0.0
    %1388 = vmatprep.subr.mxu0 0.0
    %1389 = vmatpush1.msra.mxu0 0.0
    %1390 = vmatprep.subr.mxu0 0.0
    %1391 = vmatpush1.msra.mxu0 0.0
    %1392 = vmatprep.subr.mxu0 0.0
    %1393 = vmatpush1.msra.mxu0 0.0
    %1394 = vmatprep.subr.mxu0 0.0
    %1395 = vmatpush1.msra.mxu0 0.0
    %1396 = vmatprep.subr.mxu0 0.0
    %1397 = vmatpush1.msra.mxu0 0.0
    %1398 = vmatprep.subr.mxu0 0.0
    %1399 = vmatpush1.msra.mxu0 0.0
    %1400 = vmatprep.subr.mxu0 0.0
    %1401 = vmatpush1.msra.mxu0 0.0
    %1402 = vmatprep.subr.mxu0 0.0
    %1403 = vmatpush1.msra.mxu0 0.0
    %1404 = vmatprep.subr.mxu0 0.0
    %1405 = vmatpush1.msra.mxu0 0.0
    %1406 = vmatprep.subr.mxu0 0.0
    %1407 = vmatpush1.msra.mxu0 0.0
    %1408 = vmatprep.subr.mxu0 0.0
    %1409 = vmatpush1.msra.mxu0 0.0
    %1410 = vmatprep.subr.mxu0 0.0
    %1411 = vmatpush1.msra.mxu0 0.0
    %1412 = vmatprep.subr.mxu0 0.0
    %1413 = vmatpush1.msra.mxu0 0.0
    %1414 = vmatprep.subr.mxu0 0.0
    %1415 = vmatpush1.msra.mxu0 0.0
    %1416 = vmatprep.subr.mxu0 0.0
    %1417 = vmatpush1.msra.mxu0 0.0
    %1418 = vmatprep.subr.mxu0 0.0
    %1419 = vmatpush1.msra.mxu0 0.0
    %1420 = vmatprep.subr.mxu0 0.0
    %1421 = vmatpush1.msra.mxu0 0.0
    %1422 = vmatprep.subr.mxu0 0.0
    %1423 = vmatpush1.msra.mxu0 0.0
    %1424 = vmatprep.subr.mxu0 0.0
    %1425 = vmatpush1.msra.mxu0 0.0
    %1426 = vmatprep.subr.mxu0 0.0
    %1427 = vmatpush1.msra.mxu0 0.0
    %1428 = vmatprep.subr.mxu0 0.0
    %1429 = vmatpush1.msra.mxu0 0.0
    %1430 = vmatprep.subr.mxu0 0.0
    %1431 = vmatpush1.msra.mxu0 0.0
    %1432 = vmatprep.subr.mxu0 0.0
    %1433 = vmatpush1.msra.mxu0 0.0
    %1434 = vmatprep.subr.mxu0 0.0
    %1435 = vmatpush1.msra.mxu0 0.0
    %1436 = vmatprep.subr.mxu0 0.0
    %1437 = vmatpush1.msra.mxu0 0.0
    %1438 = vmatprep.mubr.f32.mxu0 0.0
    %1439 = vmatmul.mubr.f32.gmra.mrb[0].mxu0 %v1372
    %v1440 = vpop.f32.mrb[0].mxu0
    %v1441 = vadd.f32 %v532, %v1440
    %v1442 = vpop.f32.mrb[0].mxu0
    %1443 = vdwg.mxu0
    %v1444 = vadd.f32 %v418, %v1441
    %v1445 = vxor.u32 %v1444, 2147483648
    %v1446 = vmul.f32 %v1445, 1.442695
    %v1447 = vpow.pop %v1446
    %v1448 = vadd.f32 %v1447, 1.0
    %v1449 = vrcp.pop %v1448
    %v1450 = vmul.f32 1.0, %v1449
    %1452 = vrot.lane.b32.xlu0 %v1441, 64
    %v1453 = vpop.permute.xlu0 %1452
    %v1455 = vmul.f32 %v1450, %v1453
    %1457 = vrot.lane.b32.xlu0 %v1455, 64
    %v1458 = vpop.permute.xlu0 %1457
    %v1460 = vadd.f32 %v418, %v1458
    %v1461 = vtanh.pop %v1460
    %v1462 = vsub.f32 1.0, %v1450
    %1464 = vrot.lane.b32.xlu0 %v1461, 96
    %v1465 = vpop.permute.xlu0 %1464
    %v1467 = vmul.f32 %v1462, %v1465
    %v1469 = vmul.f32 %v1450, %v1369
    %v1470 = vadd.f32 %v1467, %v1469
    %1472 = vrot.lane.b32.xlu0 %v1367, 96
    %v1473 = vpop.permute.xlu0 %1472
    %v1474 = vsel %vm538, %v1473, 0
    %1476 = vmatprep.subr.mxu0 0.0
    %1477 = vmatpush1.msra.mxu0 %v524
    %1478 = vmatprep.subr.mxu0 0.0
    %1479 = vmatpush1.msra.mxu0 %v525
    %1480 = vmatprep.subr.mxu0 0.0
    %1481 = vmatpush1.msra.mxu0 %v526
    %1482 = vmatprep.subr.mxu0 0.0
    %1483 = vmatpush1.msra.mxu0 %v527
    %1484 = vmatprep.subr.mxu0 0.0
    %1485 = vmatpush1.msra.mxu0 0.0
    %1486 = vmatprep.subr.mxu0 0.0
    %1487 = vmatpush1.msra.mxu0 0.0
    %1488 = vmatprep.subr.mxu0 0.0
    %1489 = vmatpush1.msra.mxu0 0.0
    %1490 = vmatprep.subr.mxu0 0.0
    %1491 = vmatpush1.msra.mxu0 0.0
    %1492 = vmatprep.subr.mxu0 0.0
    %1493 = vmatpush1.msra.mxu0 0.0
    %1494 = vmatprep.subr.mxu0 0.0
    %1495 = vmatpush1.msra.mxu0 0.0
    %1496 = vmatprep.subr.mxu0 0.0
    %1497 = vmatpush1.msra.mxu0 0.0
    %1498 = vmatprep.subr.mxu0 0.0
    %1499 = vmatpush1.msra.mxu0 0.0
    %1500 = vmatprep.subr.mxu0 0.0
    %1501 = vmatpush1.msra.mxu0 0.0
    %1502 = vmatprep.subr.mxu0 0.0
    %1503 = vmatpush1.msra.mxu0 0.0
    %1504 = vmatprep.subr.mxu0 0.0
    %1505 = vmatpush1.msra.mxu0 0.0
    %1506 = vmatprep.subr.mxu0 0.0
    %1507 = vmatpush1.msra.mxu0 0.0
    %1508 = vmatprep.subr.mxu0 0.0
    %1509 = vmatpush1.msra.mxu0 0.0
    %1510 = vmatprep.subr.mxu0 0.0
    %1511 = vmatpush1.msra.mxu0 0.0
    %1512 = vmatprep.subr.mxu0 0.0
    %1513 = vmatpush1.msra.mxu0 0.0
    %1514 = vmatprep.subr.mxu0 0.0
    %1515 = vmatpush1.msra.mxu0 0.0
    %1516 = vmatprep.subr.mxu0 0.0
    %1517 = vmatpush1.msra.mxu0 0.0
    %1518 = vmatprep.subr.mxu0 0.0
    %1519 = vmatpush1.msra.mxu0 0.0
    %1520 = vmatprep.subr.mxu0 0.0
    %1521 = vmatpush1.msra.mxu0 0.0
    %1522 = vmatprep.subr.mxu0 0.0
    %1523 = vmatpush1.msra.mxu0 0.0
    %1524 = vmatprep.subr.mxu0 0.0
    %1525 = vmatpush1.msra.mxu0 0.0
    %1526 = vmatprep.subr.mxu0 0.0
    %1527 = vmatpush1.msra.mxu0 0.0
    %1528 = vmatprep.subr.mxu0 0.0
    %1529 = vmatpush1.msra.mxu0 0.0
    %1530 = vmatprep.subr.mxu0 0.0
    %1531 = vmatpush1.msra.mxu0 0.0
    %1532 = vmatprep.subr.mxu0 0.0
    %1533 = vmatpush1.msra.mxu0 0.0
    %1534 = vmatprep.subr.mxu0 0.0
    %1535 = vmatpush1.msra.mxu0 0.0
    %1536 = vmatprep.subr.mxu0 0.0
    %1537 = vmatpush1.msra.mxu0 0.0
    %1538 = vmatprep.subr.mxu0 0.0
    %1539 = vmatpush1.msra.mxu0 0.0
    %1540 = vmatprep.mubr.f32.mxu0 0.0
    %1541 = vmatmul.mubr.f32.gmra.mrb[0].mxu0 %v1474
    %v1542 = vpop.f32.mrb[0].mxu0
    %v1543 = vadd.f32 %v537, %v1542
    %v1544 = vpop.f32.mrb[0].mxu0
    %1545 = vdwg.mxu0
    %v1547 = vrot.slane %v1543, 2
    %v1549 = vadd.f32 %v512, %v1547
    %v1550 = vxor.u32 %v1549, 2147483648
    %v1551 = vmul.f32 %v1550, 1.442695
    %v1552 = vpow.pop %v1551
    %v1553 = vadd.f32 %v1552, 1.0
    %v1554 = vrcp.pop %v1553
    %v1555 = vmul.f32 1.0, %v1554
    %1556 = vrot.lane.b32.xlu0 %v1547, 64
    %v1557 = vpop.permute.xlu0 %1556
    %v1559 = vmul.f32 %v1555, %v1557
    %1561 = vrot.lane.b32.xlu0 %v1559, 64
    %v1562 = vpop.permute.xlu0 %1561
    %v1564 = vadd.f32 %v512, %v1562
    %v1565 = vtanh.pop %v1564
    %v1566 = vsub.f32 1.0, %v1555
    %1568 = vrot.lane.b32.xlu0 %v1565, 96
    %v1569 = vpop.permute.xlu0 %1568
    %v1571 = vmul.f32 %v1566, %v1569
    %v1572 = vrot.slane %v1367, 2
    %v1574 = vmul.f32 %v1555, %v1572
    %v1575 = vadd.f32 %v1571, %v1574
    %1577 = vrot.lane.b32.xlu0 %v1470, 96
    %v1578 = vpop.permute.xlu0 %1577
    %v1579 = vsel %vm538, %v1578, 0
    %1581 = vmatprep.subr.mxu0 0.0
    %1582 = vmatpush1.msra.mxu0 %v520
    %1583 = vmatprep.subr.mxu0 0.0
    %1584 = vmatpush1.msra.mxu0 %v521
    %1585 = vmatprep.subr.mxu0 0.0
    %1586 = vmatpush1.msra.mxu0 %v522
    %1587 = vmatprep.subr.mxu0 0.0
    %1588 = vmatpush1.msra.mxu0 %v523
    %1589 = vmatprep.subr.mxu0 0.0
    %1590 = vmatpush1.msra.mxu0 0.0
    %1591 = vmatprep.subr.mxu0 0.0
    %1592 = vmatpush1.msra.mxu0 0.0
    %1593 = vmatprep.subr.mxu0 0.0
    %1594 = vmatpush1.msra.mxu0 0.0
    %1595 = vmatprep.subr.mxu0 0.0
    %1596 = vmatpush1.msra.mxu0 0.0
    %1597 = vmatprep.subr.mxu0 0.0
    %1598 = vmatpush1.msra.mxu0 0.0
    %1599 = vmatprep.subr.mxu0 0.0
    %1600 = vmatpush1.msra.mxu0 0.0
    %1601 = vmatprep.subr.mxu0 0.0
    %1602 = vmatpush1.msra.mxu0 0.0
    %1603 = vmatprep.subr.mxu0 0.0
    %1604 = vmatpush1.msra.mxu0 0.0
    %1605 = vmatprep.subr.mxu0 0.0
    %1606 = vmatpush1.msra.mxu0 0.0
    %1607 = vmatprep.subr.mxu0 0.0
    %1608 = vmatpush1.msra.mxu0 0.0
    %1609 = vmatprep.subr.mxu0 0.0
    %1610 = vmatpush1.msra.mxu0 0.0
    %1611 = vmatprep.subr.mxu0 0.0
    %1612 = vmatpush1.msra.mxu0 0.0
    %1613 = vmatprep.subr.mxu0 0.0
    %1614 = vmatpush1.msra.mxu0 0.0
    %1615 = vmatprep.subr.mxu0 0.0
    %1616 = vmatpush1.msra.mxu0 0.0
    %1617 = vmatprep.subr.mxu0 0.0
    %1618 = vmatpush1.msra.mxu0 0.0
    %1619 = vmatprep.subr.mxu0 0.0
    %1620 = vmatpush1.msra.mxu0 0.0
    %1621 = vmatprep.subr.mxu0 0.0
    %1622 = vmatpush1.msra.mxu0 0.0
    %1623 = vmatprep.subr.mxu0 0.0
    %1624 = vmatpush1.msra.mxu0 0.0
    %1625 = vmatprep.subr.mxu0 0.0
    %1626 = vmatpush1.msra.mxu0 0.0
    %1627 = vmatprep.subr.mxu0 0.0
    %1628 = vmatpush1.msra.mxu0 0.0
    %1629 = vmatprep.subr.mxu0 0.0
    %1630 = vmatpush1.msra.mxu0 0.0
    %1631 = vmatprep.subr.mxu0 0.0
    %1632 = vmatpush1.msra.mxu0 0.0
    %1633 = vmatprep.subr.mxu0 0.0
    %1634 = vmatpush1.msra.mxu0 0.0
    %1635 = vmatprep.subr.mxu0 0.0
    %1636 = vmatpush1.msra.mxu0 0.0
    %1637 = vmatprep.subr.mxu0 0.0
    %1638 = vmatpush1.msra.mxu0 0.0
    %1639 = vmatprep.subr.mxu0 0.0
    %1640 = vmatpush1.msra.mxu0 0.0
    %1641 = vmatprep.subr.mxu0 0.0
    %1642 = vmatpush1.msra.mxu0 0.0
    %1643 = vmatprep.subr.mxu0 0.0
    %1644 = vmatpush1.msra.mxu0 0.0
    %1645 = vmatprep.mubr.f32.mxu0 0.0
    %1646 = vmatmul.mubr.f32.gmra.mrb[0].mxu0 %v1579
    %v1647 = vpop.f32.mrb[0].mxu0
    %v1648 = vadd.f32 %v532, %v1647
    %v1649 = vpop.f32.mrb[0].mxu0
    %1650 = vdwg.mxu0
    %v1652 = vrot.slane %v1648, 6
    %v1654 = vadd.f32 %v418, %v1652
    %v1655 = vxor.u32 %v1654, 2147483648
    %v1656 = vmul.f32 %v1655, 1.442695
    %v1657 = vpow.pop %v1656
    %v1658 = vadd.f32 %v1657, 1.0
    %v1659 = vrcp.pop %v1658
    %v1660 = vmul.f32 1.0, %v1659
    %1661 = vrot.lane.b32.xlu0 %v1652, 64
    %v1662 = vpop.permute.xlu0 %1661
    %v1664 = vmul.f32 %v1660, %v1662
    %1666 = vrot.lane.b32.xlu0 %v1664, 64
    %v1667 = vpop.permute.xlu0 %1666
    %v1669 = vadd.f32 %v418, %v1667
    %v1670 = vtanh.pop %v1669
    %v1671 = vsub.f32 1.0, %v1660
    %1673 = vrot.lane.b32.xlu0 %v1670, 96
    %v1674 = vpop.permute.xlu0 %1673
    %v1676 = vmul.f32 %v1671, %v1674
    %v1677 = vrot.slane %v1470, 6
    %v1679 = vmul.f32 %v1660, %v1677
    %v1680 = vadd.f32 %v1676, %v1679
    %v1682 = vrot.slane %v1575, 6
    %1683 = vrot.lane.b32.xlu0 %v1682, 96
    %v1684 = vpop.permute.xlu0 %1683
    %v1685 = vsel %vm538, %v1684, 0
    %1687 = vmatprep.subr.mxu0 0.0
    %1688 = vmatpush1.msra.mxu0 %v524
    %1689 = vmatprep.subr.mxu0 0.0
    %1690 = vmatpush1.msra.mxu0 %v525
    %1691 = vmatprep.subr.mxu0 0.0
    %1692 = vmatpush1.msra.mxu0 %v526
    %1693 = vmatprep.subr.mxu0 0.0
    %1694 = vmatpush1.msra.mxu0 %v527
    %1695 = vmatprep.subr.mxu0 0.0
    %1696 = vmatpush1.msra.mxu0 0.0
    %1697 = vmatprep.subr.mxu0 0.0
    %1698 = vmatpush1.msra.mxu0 0.0
    %1699 = vmatprep.subr.mxu0 0.0
    %1700 = vmatpush1.msra.mxu0 0.0
    %1701 = vmatprep.subr.mxu0 0.0
    %1702 = vmatpush1.msra.mxu0 0.0
    %1703 = vmatprep.subr.mxu0 0.0
    %1704 = vmatpush1.msra.mxu0 0.0
    %1705 = vmatprep.subr.mxu0 0.0
    %1706 = vmatpush1.msra.mxu0 0.0
    %1707 = vmatprep.subr.mxu0 0.0
    %1708 = vmatpush1.msra.mxu0 0.0
    %1709 = vmatprep.subr.mxu0 0.0
    %1710 = vmatpush1.msra.mxu0 0.0
    %1711 = vmatprep.subr.mxu0 0.0
    %1712 = vmatpush1.msra.mxu0 0.0
    %1713 = vmatprep.subr.mxu0 0.0
    %1714 = vmatpush1.msra.mxu0 0.0
    %1715 = vmatprep.subr.mxu0 0.0
    %1716 = vmatpush1.msra.mxu0 0.0
    %1717 = vmatprep.subr.mxu0 0.0
    %1718 = vmatpush1.msra.mxu0 0.0
    %1719 = vmatprep.subr.mxu0 0.0
    %1720 = vmatpush1.msra.mxu0 0.0
    %1721 = vmatprep.subr.mxu0 0.0
    %1722 = vmatpush1.msra.mxu0 0.0
    %1723 = vmatprep.subr.mxu0 0.0
    %1724 = vmatpush1.msra.mxu0 0.0
    %1725 = vmatprep.subr.mxu0 0.0
    %1726 = vmatpush1.msra.mxu0 0.0
    %1727 = vmatprep.subr.mxu0 0.0
    %1728 = vmatpush1.msra.mxu0 0.0
    %1729 = vmatprep.subr.mxu0 0.0
    %1730 = vmatpush1.msra.mxu0 0.0
    %1731 = vmatprep.subr.mxu0 0.0
    %1732 = vmatpush1.msra.mxu0 0.0
    %1733 = vmatprep.subr.mxu0 0.0
    %1734 = vmatpush1.msra.mxu0 0.0
    %1735 = vmatprep.subr.mxu0 0.0
    %1736 = vmatpush1.msra.mxu0 0.0
    %1737 = vmatprep.subr.mxu0 0.0
    %1738 = vmatpush1.msra.mxu0 0.0
    %1739 = vmatprep.subr.mxu0 0.0
    %1740 = vmatpush1.msra.mxu0 0.0
    %1741 = vmatprep.subr.mxu0 0.0
    %1742 = vmatpush1.msra.mxu0 0.0
    %1743 = vmatprep.subr.mxu0 0.0
    %1744 = vmatpush1.msra.mxu0 0.0
    %1745 = vmatprep.subr.mxu0 0.0
    %1746 = vmatpush1.msra.mxu0 0.0
    %1747 = vmatprep.subr.mxu0 0.0
    %1748 = vmatpush1.msra.mxu0 0.0
    %1749 = vmatprep.subr.mxu0 0.0
    %1750 = vmatpush1.msra.mxu0 0.0
    %1751 = vmatprep.mubr.f32.mxu0 0.0
    %1752 = vmatmul.mubr.f32.gmra.mrb[0].mxu0 %v1685
    %v1753 = vpop.f32.mrb[0].mxu0
    %v1754 = vadd.f32 %v537, %v1753
    %v1755 = vpop.f32.mrb[0].mxu0
    %1756 = vdwg.mxu0
    %v1758 = vrot.slane %v1754, 4
    %v1760 = vadd.f32 %v512, %v1758
    %v1761 = vxor.u32 %v1760, 2147483648
    %v1762 = vmul.f32 %v1761, 1.442695
    %v1763 = vpow.pop %v1762
    %v1764 = vadd.f32 %v1763, 1.0
    %v1765 = vrcp.pop %v1764
    %v1766 = vmul.f32 1.0, %v1765
    %1767 = vrot.lane.b32.xlu0 %v1758, 64
    %v1768 = vpop.permute.xlu0 %1767
    %v1770 = vmul.f32 %v1766, %v1768
    %1772 = vrot.lane.b32.xlu0 %v1770, 64
    %v1773 = vpop.permute.xlu0 %1772
    %v1775 = vadd.f32 %v512, %v1773
    %v1776 = vtanh.pop %v1775
    %v1777 = vsub.f32 1.0, %v1766
    %1779 = vrot.lane.b32.xlu0 %v1776, 96
    %v1780 = vpop.permute.xlu0 %1779
    %v1782 = vmul.f32 %v1777, %v1780
    %v1783 = vrot.slane %v1575, 2
    %v1785 = vmul.f32 %v1766, %v1783
    %v1786 = vadd.f32 %v1782, %v1785
    %v1788 = vrot.slane %v1680, 2
    %1789 = vrot.lane.b32.xlu0 %v1788, 96
    %v1790 = vpop.permute.xlu0 %1789
    %v1791 = vsel %vm538, %v1790, 0
    %1793 = vmatprep.subr.mxu0 0.0
    %1794 = vmatpush1.msra.mxu0 %v520
    %1795 = vmatprep.subr.mxu0 0.0
    %1796 = vmatpush1.msra.mxu0 %v521
    %1797 = vmatprep.subr.mxu0 0.0
    %1798 = vmatpush1.msra.mxu0 %v522
    %1799 = vmatprep.subr.mxu0 0.0
    %1800 = vmatpush1.msra.mxu0 %v523
    %1801 = vmatprep.subr.mxu0 0.0
    %1802 = vmatpush1.msra.mxu0 0.0
    %1803 = vmatprep.subr.mxu0 0.0
    %1804 = vmatpush1.msra.mxu0 0.0
    %1805 = vmatprep.subr.mxu0 0.0
    %1806 = vmatpush1.msra.mxu0 0.0
    %1807 = vmatprep.subr.mxu0 0.0
    %1808 = vmatpush1.msra.mxu0 0.0
    %1809 = vmatprep.subr.mxu0 0.0
    %1810 = vmatpush1.msra.mxu0 0.0
    %1811 = vmatprep.subr.mxu0 0.0
    %1812 = vmatpush1.msra.mxu0 0.0
    %1813 = vmatprep.subr.mxu0 0.0
    %1814 = vmatpush1.msra.mxu0 0.0
    %1815 = vmatprep.subr.mxu0 0.0
    %1816 = vmatpush1.msra.mxu0 0.0
    %1817 = vmatprep.subr.mxu0 0.0
    %1818 = vmatpush1.msra.mxu0 0.0
    %1819 = vmatprep.subr.mxu0 0.0
    %1820 = vmatpush1.msra.mxu0 0.0
    %1821 = vmatprep.subr.mxu0 0.0
    %1822 = vmatpush1.msra.mxu0 0.0
    %1823 = vmatprep.subr.mxu0 0.0
    %1824 = vmatpush1.msra.mxu0 0.0
    %1825 = vmatprep.subr.mxu0 0.0
    %1826 = vmatpush1.msra.mxu0 0.0
    %1827 = vmatprep.subr.mxu0 0.0
    %1828 = vmatpush1.msra.mxu0 0.0
    %1829 = vmatprep.subr.mxu0 0.0
    %1830 = vmatpush1.msra.mxu0 0.0
    %1831 = vmatprep.subr.mxu0 0.0
    %1832 = vmatpush1.msra.mxu0 0.0
    %1833 = vmatprep.subr.mxu0 0.0
    %1834 = vmatpush1.msra.mxu0 0.0
    %1835 = vmatprep.subr.mxu0 0.0
    %1836 = vmatpush1.msra.mxu0 0.0
    %1837 = vmatprep.subr.mxu0 0.0
    %1838 = vmatpush1.msra.mxu0 0.0
    %1839 = vmatprep.subr.mxu0 0.0
    %1840 = vmatpush1.msra.mxu0 0.0
    %1841 = vmatprep.subr.mxu0 0.0
    %1842 = vmatpush1.msra.mxu0 0.0
    %1843 = vmatprep.subr.mxu0 0.0
    %1844 = vmatpush1.msra.mxu0 0.0
    %1845 = vmatprep.subr.mxu0 0.0
    %1846 = vmatpush1.msra.mxu0 0.0
    %1847 = vmatprep.subr.mxu0 0.0
    %1848 = vmatpush1.msra.mxu0 0.0
    %1849 = vmatprep.subr.mxu0 0.0
    %1850 = vmatpush1.msra.mxu0 0.0
    %1851 = vmatprep.subr.mxu0 0.0
    %1852 = vmatpush1.msra.mxu0 0.0
    %1853 = vmatprep.subr.mxu0 0.0
    %1854 = vmatpush1.msra.mxu0 0.0
    %1855 = vmatprep.subr.mxu0 0.0
    %1856 = vmatpush1.msra.mxu0 0.0
    %1857 = vmatprep.mubr.f32.mxu0 0.0
    %1858 = vmatmul.mubr.f32.gmra.mrb[0].mxu0 %v1791
    %v1859 = vpop.f32.mrb[0].mxu0
    %v1860 = vadd.f32 %v532, %v1859
    %v1861 = vpop.f32.mrb[0].mxu0
    %1862 = vdwg.mxu0
    %v1864 = vrot.slane %v1860, 4
    %v1866 = vadd.f32 %v418, %v1864
    %v1867 = vxor.u32 %v1866, 2147483648
    %v1868 = vmul.f32 %v1867, 1.442695
    %v1869 = vpow.pop %v1868
    %v1870 = vadd.f32 %v1869, 1.0
    %v1871 = vrcp.pop %v1870
    %v1872 = vmul.f32 1.0, %v1871
    %1873 = vrot.lane.b32.xlu0 %v1864, 64
    %v1874 = vpop.permute.xlu0 %1873
    %v1876 = vmul.f32 %v1872, %v1874
    %1878 = vrot.lane.b32.xlu0 %v1876, 64
    %v1879 = vpop.permute.xlu0 %1878
    %v1881 = vadd.f32 %v418, %v1879
    %v1882 = vtanh.pop %v1881
    %v1883 = vsub.f32 1.0, %v1872
    %1885 = vrot.lane.b32.xlu0 %v1882, 96
    %v1886 = vpop.permute.xlu0 %1885
    %v1888 = vmul.f32 %v1883, %v1886
    %v1889 = vrot.slane %v1680, 6
    %v1891 = vmul.f32 %v1872, %v1889
    %v1892 = vadd.f32 %v1888, %v1891
    %v1894 = vrot.slane %v1786, 4
    %1895 = vrot.lane.b32.xlu0 %v1894, 96
    %v1896 = vpop.permute.xlu0 %1895
    %v1897 = vsel %vm538, %v1896, 0
    %1899 = vmatprep.subr.mxu0 0.0
    %1900 = vmatpush1.msra.mxu0 %v524
    %1901 = vmatprep.subr.mxu0 0.0
    %1902 = vmatpush1.msra.mxu0 %v525
    %1903 = vmatprep.subr.mxu0 0.0
    %1904 = vmatpush1.msra.mxu0 %v526
    %1905 = vmatprep.subr.mxu0 0.0
    %1906 = vmatpush1.msra.mxu0 %v527
    %1907 = vmatprep.subr.mxu0 0.0
    %1908 = vmatpush1.msra.mxu0 0.0
    %1909 = vmatprep.subr.mxu0 0.0
    %1910 = vmatpush1.msra.mxu0 0.0
    %1911 = vmatprep.subr.mxu0 0.0
    %1912 = vmatpush1.msra.mxu0 0.0
    %1913 = vmatprep.subr.mxu0 0.0
    %1914 = vmatpush1.msra.mxu0 0.0
    %1915 = vmatprep.subr.mxu0 0.0
    %1916 = vmatpush1.msra.mxu0 0.0
    %1917 = vmatprep.subr.mxu0 0.0
    %1918 = vmatpush1.msra.mxu0 0.0
    %1919 = vmatprep.subr.mxu0 0.0
    %1920 = vmatpush1.msra.mxu0 0.0
    %1921 = vmatprep.subr.mxu0 0.0
    %1922 = vmatpush1.msra.mxu0 0.0
    %1923 = vmatprep.subr.mxu0 0.0
    %1924 = vmatpush1.msra.mxu0 0.0
    %1925 = vmatprep.subr.mxu0 0.0
    %1926 = vmatpush1.msra.mxu0 0.0
    %1927 = vmatprep.subr.mxu0 0.0
    %1928 = vmatpush1.msra.mxu0 0.0
    %1929 = vmatprep.subr.mxu0 0.0
    %1930 = vmatpush1.msra.mxu0 0.0
    %1931 = vmatprep.subr.mxu0 0.0
    %1932 = vmatpush1.msra.mxu0 0.0
    %1933 = vmatprep.subr.mxu0 0.0
    %1934 = vmatpush1.msra.mxu0 0.0
    %1935 = vmatprep.subr.mxu0 0.0
    %1936 = vmatpush1.msra.mxu0 0.0
    %1937 = vmatprep.subr.mxu0 0.0
    %1938 = vmatpush1.msra.mxu0 0.0
    %1939 = vmatprep.subr.mxu0 0.0
    %1940 = vmatpush1.msra.mxu0 0.0
    %1941 = vmatprep.subr.mxu0 0.0
    %1942 = vmatpush1.msra.mxu0 0.0
    %1943 = vmatprep.subr.mxu0 0.0
    %1944 = vmatpush1.msra.mxu0 0.0
    %1945 = vmatprep.subr.mxu0 0.0
    %1946 = vmatpush1.msra.mxu0 0.0
    %1947 = vmatprep.subr.mxu0 0.0
    %1948 = vmatpush1.msra.mxu0 0.0
    %1949 = vmatprep.subr.mxu0 0.0
    %1950 = vmatpush1.msra.mxu0 0.0
    %1951 = vmatprep.subr.mxu0 0.0
    %1952 = vmatpush1.msra.mxu0 0.0
    %1953 = vmatprep.subr.mxu0 0.0
    %1954 = vmatpush1.msra.mxu0 0.0
    %1955 = vmatprep.subr.mxu0 0.0
    %1956 = vmatpush1.msra.mxu0 0.0
    %1957 = vmatprep.subr.mxu0 0.0
    %1958 = vmatpush1.msra.mxu0 0.0
    %1959 = vmatprep.subr.mxu0 0.0
    %1960 = vmatpush1.msra.mxu0 0.0
    %1961 = vmatprep.subr.mxu0 0.0
    %1962 = vmatpush1.msra.mxu0 0.0
    %1963 = vmatprep.mubr.f32.mxu0 0.0
    %1964 = vmatmul.mubr.f32.gmra.mrb[0].mxu0 %v1897
    %v1965 = vpop.f32.mrb[0].mxu0
    %v1966 = vadd.f32 %v537, %v1965
    %v1967 = vpop.f32.mrb[0].mxu0
    %1968 = vdwg.mxu0
    %v1970 = vrot.slane %v1966, 6
    %v1972 = vadd.f32 %v512, %v1970
    %v1973 = vxor.u32 %v1972, 2147483648
    %v1974 = vmul.f32 %v1973, 1.442695
    %v1975 = vpow.pop %v1974
    %v1976 = vadd.f32 %v1975, 1.0
    %v1977 = vrcp.pop %v1976
    %v1978 = vmul.f32 1.0, %v1977
    %1979 = vrot.lane.b32.xlu0 %v1970, 64
    %v1980 = vpop.permute.xlu0 %1979
    %v1982 = vmul.f32 %v1978, %v1980
    %1984 = vrot.lane.b32.xlu0 %v1982, 64
    %v1985 = vpop.permute.xlu0 %1984
    %v1987 = vadd.f32 %v512, %v1985
    %v1988 = vtanh.pop %v1987
    %v1989 = vsub.f32 1.0, %v1978
    %1991 = vrot.lane.b32.xlu0 %v1988, 96
    %v1992 = vpop.permute.xlu0 %1991
    %v1994 = vmul.f32 %v1989, %v1992
    %v1995 = vrot.slane %v1786, 2
    %v1997 = vmul.f32 %v1978, %v1995
    %v1998 = vadd.f32 %v1994, %v1997
    %v2000 = vrot.slane %v1892, 4
    %2001 = vrot.lane.b32.xlu0 %v2000, 96
    %v2002 = vpop.permute.xlu0 %2001
    %v2003 = vsel %vm538, %v2002, 0
    %2005 = vmatprep.subr.mxu0 0.0
    %2006 = vmatpush1.msra.mxu0 %v520
    %2007 = vmatprep.subr.mxu0 0.0
    %2008 = vmatpush1.msra.mxu0 %v521
    %2009 = vmatprep.subr.mxu0 0.0
    %2010 = vmatpush1.msra.mxu0 %v522
    %2011 = vmatprep.subr.mxu0 0.0
    %2012 = vmatpush1.msra.mxu0 %v523
    %2013 = vmatprep.subr.mxu0 0.0
    %2014 = vmatpush1.msra.mxu0 0.0
    %2015 = vmatprep.subr.mxu0 0.0
    %2016 = vmatpush1.msra.mxu0 0.0
    %2017 = vmatprep.subr.mxu0 0.0
    %2018 = vmatpush1.msra.mxu0 0.0
    %2019 = vmatprep.subr.mxu0 0.0
    %2020 = vmatpush1.msra.mxu0 0.0
    %2021 = vmatprep.subr.mxu0 0.0
    %2022 = vmatpush1.msra.mxu0 0.0
    %2023 = vmatprep.subr.mxu0 0.0
    %2024 = vmatpush1.msra.mxu0 0.0
    %2025 = vmatprep.subr.mxu0 0.0
    %2026 = vmatpush1.msra.mxu0 0.0
    %2027 = vmatprep.subr.mxu0 0.0
    %2028 = vmatpush1.msra.mxu0 0.0
    %2029 = vmatprep.subr.mxu0 0.0
    %2030 = vmatpush1.msra.mxu0 0.0
    %2031 = vmatprep.subr.mxu0 0.0
    %2032 = vmatpush1.msra.mxu0 0.0
    %2033 = vmatprep.subr.mxu0 0.0
    %2034 = vmatpush1.msra.mxu0 0.0
    %2035 = vmatprep.subr.mxu0 0.0
    %2036 = vmatpush1.msra.mxu0 0.0
    %2037 = vmatprep.subr.mxu0 0.0
    %2038 = vmatpush1.msra.mxu0 0.0
    %2039 = vmatprep.subr.mxu0 0.0
    %2040 = vmatpush1.msra.mxu0 0.0
    %2041 = vmatprep.subr.mxu0 0.0
    %2042 = vmatpush1.msra.mxu0 0.0
    %2043 = vmatprep.subr.mxu0 0.0
    %2044 = vmatpush1.msra.mxu0 0.0
    %2045 = vmatprep.subr.mxu0 0.0
    %2046 = vmatpush1.msra.mxu0 0.0
    %2047 = vmatprep.subr.mxu0 0.0
    %2048 = vmatpush1.msra.mxu0 0.0
    %2049 = vmatprep.subr.mxu0 0.0
    %2050 = vmatpush1.msra.mxu0 0.0
    %2051 = vmatprep.subr.mxu0 0.0
    %2052 = vmatpush1.msra.mxu0 0.0
    %2053 = vmatprep.subr.mxu0 0.0
    %2054 = vmatpush1.msra.mxu0 0.0
    %2055 = vmatprep.subr.mxu0 0.0
    %2056 = vmatpush1.msra.mxu0 0.0
    %2057 = vmatprep.subr.mxu0 0.0
    %2058 = vmatpush1.msra.mxu0 0.0
    %2059 = vmatprep.subr.mxu0 0.0
    %2060 = vmatpush1.msra.mxu0 0.0
    %2061 = vmatprep.subr.mxu0 0.0
    %2062 = vmatpush1.msra.mxu0 0.0
    %2063 = vmatprep.subr.mxu0 0.0
    %2064 = vmatpush1.msra.mxu0 0.0
    %2065 = vmatprep.subr.mxu0 0.0
    %2066 = vmatpush1.msra.mxu0 0.0
    %2067 = vmatprep.subr.mxu0 0.0
    %2068 = vmatpush1.msra.mxu0 0.0
    %2069 = vmatprep.mubr.f32.mxu0 0.0
    %2070 = vmatmul.mubr.f32.gmra.mrb[0].mxu0 %v2003
    %v2071 = vpop.f32.mrb[0].mxu0
    %v2072 = vadd.f32 %v532, %v2071
    %v2073 = vpop.f32.mrb[0].mxu0
    %2074 = vdwg.mxu0
    %v2076 = vrot.slane %v2072, 2
    %v2078 = vadd.f32 %v418, %v2076
    %v2079 = vxor.u32 %v2078, 2147483648
    %v2080 = vmul.f32 %v2079, 1.442695
    %v2081 = vpow.pop %v2080
    %v2082 = vadd.f32 %v2081, 1.0
    %v2083 = vrcp.pop %v2082
    %v2084 = vmul.f32 1.0, %v2083
    %2085 = vrot.lane.b32.xlu0 %v2076, 64
    %v2086 = vpop.permute.xlu0 %2085
    %v2088 = vmul.f32 %v2084, %v2086
    %2090 = vrot.lane.b32.xlu0 %v2088, 64
    %v2091 = vpop.permute.xlu0 %2090
    %v2093 = vadd.f32 %v418, %v2091
    %v2094 = vtanh.pop %v2093
    %v2095 = vsub.f32 1.0, %v2084
    %2097 = vrot.lane.b32.xlu0 %v2094, 96
    %v2098 = vpop.permute.xlu0 %2097
    %v2100 = vmul.f32 %v2095, %v2098
    %v2101 = vrot.slane %v1892, 6
    %v2103 = vmul.f32 %v2084, %v2101
    %v2104 = vadd.f32 %v2100, %v2103
    %v2106 = vrot.slane %v1998, 2
    %2107 = vrot.lane.b32.xlu0 %v2106, 96
    %v2108 = vpop.permute.xlu0 %2107
    %v2109 = vsel %vm538, %v2108, 0
    %2111 = vmatprep.subr.mxu0 0.0
    %2112 = vmatpush1.msra.mxu0 %v524
    %2113 = vmatprep.subr.mxu0 0.0
    %2114 = vmatpush1.msra.mxu0 %v525
    %2115 = vmatprep.subr.mxu0 0.0
    %2116 = vmatpush1.msra.mxu0 %v526
    %2117 = vmatprep.subr.mxu0 0.0
    %2118 = vmatpush1.msra.mxu0 %v527
    %2119 = vmatprep.subr.mxu0 0.0
    %2120 = vmatpush1.msra.mxu0 0.0
    %2121 = vmatprep.subr.mxu0 0.0
    %2122 = vmatpush1.msra.mxu0 0.0
    %2123 = vmatprep.subr.mxu0 0.0
    %2124 = vmatpush1.msra.mxu0 0.0
    %2125 = vmatprep.subr.mxu0 0.0
    %2126 = vmatpush1.msra.mxu0 0.0
    %2127 = vmatprep.subr.mxu0 0.0
    %2128 = vmatpush1.msra.mxu0 0.0
    %2129 = vmatprep.subr.mxu0 0.0
    %2130 = vmatpush1.msra.mxu0 0.0
    %2131 = vmatprep.subr.mxu0 0.0
    %2132 = vmatpush1.msra.mxu0 0.0
    %2133 = vmatprep.subr.mxu0 0.0
    %2134 = vmatpush1.msra.mxu0 0.0
    %2135 = vmatprep.subr.mxu0 0.0
    %2136 = vmatpush1.msra.mxu0 0.0
    %2137 = vmatprep.subr.mxu0 0.0
    %2138 = vmatpush1.msra.mxu0 0.0
    %2139 = vmatprep.subr.mxu0 0.0
    %2140 = vmatpush1.msra.mxu0 0.0
    %2141 = vmatprep.subr.mxu0 0.0
    %2142 = vmatpush1.msra.mxu0 0.0
    %2143 = vmatprep.subr.mxu0 0.0
    %2144 = vmatpush1.msra.mxu0 0.0
    %2145 = vmatprep.subr.mxu0 0.0
    %2146 = vmatpush1.msra.mxu0 0.0
    %2147 = vmatprep.subr.mxu0 0.0
    %2148 = vmatpush1.msra.mxu0 0.0
    %2149 = vmatprep.subr.mxu0 0.0
    %2150 = vmatpush1.msra.mxu0 0.0
    %2151 = vmatprep.subr.mxu0 0.0
    %2152 = vmatpush1.msra.mxu0 0.0
    %2153 = vmatprep.subr.mxu0 0.0
    %2154 = vmatpush1.msra.mxu0 0.0
    %2155 = vmatprep.subr.mxu0 0.0
    %2156 = vmatpush1.msra.mxu0 0.0
    %2157 = vmatprep.subr.mxu0 0.0
    %2158 = vmatpush1.msra.mxu0 0.0
    %2159 = vmatprep.subr.mxu0 0.0
    %2160 = vmatpush1.msra.mxu0 0.0
    %2161 = vmatprep.subr.mxu0 0.0
    %2162 = vmatpush1.msra.mxu0 0.0
    %2163 = vmatprep.subr.mxu0 0.0
    %2164 = vmatpush1.msra.mxu0 0.0
    %2165 = vmatprep.subr.mxu0 0.0
    %2166 = vmatpush1.msra.mxu0 0.0
    %2167 = vmatprep.subr.mxu0 0.0
    %2168 = vmatpush1.msra.mxu0 0.0
    %2169 = vmatprep.subr.mxu0 0.0
    %2170 = vmatpush1.msra.mxu0 0.0
    %2171 = vmatprep.subr.mxu0 0.0
    %2172 = vmatpush1.msra.mxu0 0.0
    %2173 = vmatprep.subr.mxu0 0.0
    %2174 = vmatpush1.msra.mxu0 0.0
    %2175 = vmatprep.mubr.f32.mxu0 0.0
    %2176 = vmatmul.mubr.f32.gmra.mrb[0].mxu0 %v2109
    %v2177 = vpop.f32.mrb[0].mxu0
    %v2178 = vadd.f32 %v537, %v2177
    %v2179 = vpop.f32.mrb[0].mxu0
    %2180 = vdwg.mxu0
    %v2181 = vadd.f32 %v512, %v2178
    %v2182 = vxor.u32 %v2181, 2147483648
    %v2183 = vmul.f32 %v2182, 1.442695
    %v2184 = vpow.pop %v2183
    %v2185 = vadd.f32 %v2184, 1.0
    %v2186 = vrcp.pop %v2185
    %v2187 = vmul.f32 1.0, %v2186
    %2189 = vrot.lane.b32.xlu0 %v2178, 64
    %v2190 = vpop.permute.xlu0 %2189
    %v2192 = vmul.f32 %v2187, %v2190
    %2194 = vrot.lane.b32.xlu0 %v2192, 64
    %v2195 = vpop.permute.xlu0 %2194
    %v2197 = vadd.f32 %v512, %v2195
    %v2198 = vtanh.pop %v2197
    %v2199 = vsub.f32 1.0, %v2187
    %2201 = vrot.lane.b32.xlu0 %v2198, 96
    %v2202 = vpop.permute.xlu0 %2201
    %v2204 = vmul.f32 %v2199, %v2202
    %v2206 = vmul.f32 %v2187, %v2106
    %v2207 = vadd.f32 %v2204, %v2206
    %v2209 = vrot.slane %v2104, 6
    %2210 = vrot.lane.b32.xlu0 %v2209, 96
    %v2211 = vpop.permute.xlu0 %2210
    %v2212 = vsel %vm538, %v2211, 0
    %2214 = vmatprep.subr.mxu0 0.0
    %2215 = vmatpush1.msra.mxu0 %v520
    %2216 = vmatprep.subr.mxu0 0.0
    %2217 = vmatpush1.msra.mxu0 %v521
    %2218 = vmatprep.subr.mxu0 0.0
    %2219 = vmatpush1.msra.mxu0 %v522
    %2220 = vmatprep.subr.mxu0 0.0
    %2221 = vmatpush1.msra.mxu0 %v523
    %2222 = vmatprep.subr.mxu0 0.0
    %2223 = vmatpush1.msra.mxu0 0.0
    %2224 = vmatprep.subr.mxu0 0.0
    %2225 = vmatpush1.msra.mxu0 0.0
    %2226 = vmatprep.subr.mxu0 0.0
    %2227 = vmatpush1.msra.mxu0 0.0
    %2228 = vmatprep.subr.mxu0 0.0
    %2229 = vmatpush1.msra.mxu0 0.0
    %2230 = vmatprep.subr.mxu0 0.0
    %2231 = vmatpush1.msra.mxu0 0.0
    %2232 = vmatprep.subr.mxu0 0.0
    %2233 = vmatpush1.msra.mxu0 0.0
    %2234 = vmatprep.subr.mxu0 0.0
    %2235 = vmatpush1.msra.mxu0 0.0
    %2236 = vmatprep.subr.mxu0 0.0
    %2237 = vmatpush1.msra.mxu0 0.0
    %2238 = vmatprep.subr.mxu0 0.0
    %2239 = vmatpush1.msra.mxu0 0.0
    %2240 = vmatprep.subr.mxu0 0.0
    %2241 = vmatpush1.msra.mxu0 0.0
    %2242 = vmatprep.subr.mxu0 0.0
    %2243 = vmatpush1.msra.mxu0 0.0
    %2244 = vmatprep.subr.mxu0 0.0
    %2245 = vmatpush1.msra.mxu0 0.0
    %2246 = vmatprep.subr.mxu0 0.0
    %2247 = vmatpush1.msra.mxu0 0.0
    %2248 = vmatprep.subr.mxu0 0.0
    %2249 = vmatpush1.msra.mxu0 0.0
    %2250 = vmatprep.subr.mxu0 0.0
    %2251 = vmatpush1.msra.mxu0 0.0
    %2252 = vmatprep.subr.mxu0 0.0
    %2253 = vmatpush1.msra.mxu0 0.0
    %2254 = vmatprep.subr.mxu0 0.0
    %2255 = vmatpush1.msra.mxu0 0.0
    %2256 = vmatprep.subr.mxu0 0.0
    %2257 = vmatpush1.msra.mxu0 0.0
    %2258 = vmatprep.subr.mxu0 0.0
    %2259 = vmatpush1.msra.mxu0 0.0
    %2260 = vmatprep.subr.mxu0 0.0
    %2261 = vmatpush1.msra.mxu0 0.0
    %2262 = vmatprep.subr.mxu0 0.0
    %2263 = vmatpush1.msra.mxu0 0.0
    %2264 = vmatprep.subr.mxu0 0.0
    %2265 = vmatpush1.msra.mxu0 0.0
    %2266 = vmatprep.subr.mxu0 0.0
    %2267 = vmatpush1.msra.mxu0 0.0
    %2268 = vmatprep.subr.mxu0 0.0
    %2269 = vmatpush1.msra.mxu0 0.0
    %2270 = vmatprep.subr.mxu0 0.0
    %2271 = vmatpush1.msra.mxu0 0.0
    %2272 = vmatprep.subr.mxu0 0.0
    %2273 = vmatpush1.msra.mxu0 0.0
    %2274 = vmatprep.subr.mxu0 0.0
    %2275 = vmatpush1.msra.mxu0 0.0
    %2276 = vmatprep.subr.mxu0 0.0
    %2277 = vmatpush1.msra.mxu0 0.0
    %2278 = vmatprep.mubr.f32.mxu0 0.0
    %2279 = vmatmul.mubr.f32.gmra.mrb[0].mxu0 %v2212
    %v2280 = vpop.f32.mrb[0].mxu0
    %v2281 = vadd.f32 %v532, %v2280
    %v2282 = vpop.f32.mrb[0].mxu0
    %2283 = vdwg.mxu0
    %v2284 = vadd.f32 %v423, %v2281
    %v2285 = vxor.u32 %v2284, 2147483648
    %v2286 = vmul.f32 %v2285, 1.442695
    %v2287 = vpow.pop %v2286
    %v2288 = vadd.f32 %v2287, 1.0
    %v2289 = vrcp.pop %v2288
    %v2290 = vmul.f32 1.0, %v2289
    %2292 = vrot.lane.b32.xlu0 %v2281, 64
    %v2293 = vpop.permute.xlu0 %2292
    %v2295 = vmul.f32 %v2290, %v2293
    %2297 = vrot.lane.b32.xlu0 %v2295, 64
    %v2298 = vpop.permute.xlu0 %2297
    %v2300 = vadd.f32 %v423, %v2298
    %v2301 = vtanh.pop %v2300
    %v2302 = vsub.f32 1.0, %v2290
    %2304 = vrot.lane.b32.xlu0 %v2301, 96
    %v2305 = vpop.permute.xlu0 %2304
    %v2307 = vmul.f32 %v2302, %v2305
    %v2309 = vmul.f32 %v2290, %v2209
    %v2310 = vadd.f32 %v2307, %v2309
    %2312 = vrot.lane.b32.xlu0 %v2207, 96
    %v2313 = vpop.permute.xlu0 %2312
    %v2314 = vsel %vm538, %v2313, 0
    %2316 = vmatprep.subr.mxu0 0.0
    %2317 = vmatpush1.msra.mxu0 %v524
    %2318 = vmatprep.subr.mxu0 0.0
    %2319 = vmatpush1.msra.mxu0 %v525
    %2320 = vmatprep.subr.mxu0 0.0
    %2321 = vmatpush1.msra.mxu0 %v526
    %2322 = vmatprep.subr.mxu0 0.0
    %2323 = vmatpush1.msra.mxu0 %v527
    %2324 = vmatprep.subr.mxu0 0.0
    %2325 = vmatpush1.msra.mxu0 0.0
    %2326 = vmatprep.subr.mxu0 0.0
    %2327 = vmatpush1.msra.mxu0 0.0
    %2328 = vmatprep.subr.mxu0 0.0
    %2329 = vmatpush1.msra.mxu0 0.0
    %2330 = vmatprep.subr.mxu0 0.0
    %2331 = vmatpush1.msra.mxu0 0.0
    %2332 = vmatprep.subr.mxu0 0.0
    %2333 = vmatpush1.msra.mxu0 0.0
    %2334 = vmatprep.subr.mxu0 0.0
    %2335 = vmatpush1.msra.mxu0 0.0
    %2336 = vmatprep.subr.mxu0 0.0
    %2337 = vmatpush1.msra.mxu0 0.0
    %2338 = vmatprep.subr.mxu0 0.0
    %2339 = vmatpush1.msra.mxu0 0.0
    %2340 = vmatprep.subr.mxu0 0.0
    %2341 = vmatpush1.msra.mxu0 0.0
    %2342 = vmatprep.subr.mxu0 0.0
    %2343 = vmatpush1.msra.mxu0 0.0
    %2344 = vmatprep.subr.mxu0 0.0
    %2345 = vmatpush1.msra.mxu0 0.0
    %2346 = vmatprep.subr.mxu0 0.0
    %2347 = vmatpush1.msra.mxu0 0.0
    %2348 = vmatprep.subr.mxu0 0.0
    %2349 = vmatpush1.msra.mxu0 0.0
    %2350 = vmatprep.subr.mxu0 0.0
    %2351 = vmatpush1.msra.mxu0 0.0
    %2352 = vmatprep.subr.mxu0 0.0
    %2353 = vmatpush1.msra.mxu0 0.0
    %2354 = vmatprep.subr.mxu0 0.0
    %2355 = vmatpush1.msra.mxu0 0.0
    %2356 = vmatprep.subr.mxu0 0.0
    %2357 = vmatpush1.msra.mxu0 0.0
    %2358 = vmatprep.subr.mxu0 0.0
    %2359 = vmatpush1.msra.mxu0 0.0
    %2360 = vmatprep.subr.mxu0 0.0
    %2361 = vmatpush1.msra.mxu0 0.0
    %2362 = vmatprep.subr.mxu0 0.0
    %2363 = vmatpush1.msra.mxu0 0.0
    %2364 = vmatprep.subr.mxu0 0.0
    %2365 = vmatpush1.msra.mxu0 0.0
    %2366 = vmatprep.subr.mxu0 0.0
    %2367 = vmatpush1.msra.mxu0 0.0
    %2368 = vmatprep.subr.mxu0 0.0
    %2369 = vmatpush1.msra.mxu0 0.0
    %2370 = vmatprep.subr.mxu0 0.0
    %2371 = vmatpush1.msra.mxu0 0.0
    %2372 = vmatprep.subr.mxu0 0.0
    %2373 = vmatpush1.msra.mxu0 0.0
    %2374 = vmatprep.subr.mxu0 0.0
    %2375 = vmatpush1.msra.mxu0 0.0
    %2376 = vmatprep.subr.mxu0 0.0
    %2377 = vmatpush1.msra.mxu0 0.0
    %2378 = vmatprep.subr.mxu0 0.0
    %2379 = vmatpush1.msra.mxu0 0.0
    %2380 = vmatprep.mubr.f32.mxu0 0.0
    %2381 = vmatmul.mubr.f32.gmra.mrb[0].mxu0 %v2314
    %v2382 = vpop.f32.mrb[0].mxu0
    %v2383 = vadd.f32 %v537, %v2382
    %v2384 = vpop.f32.mrb[0].mxu0
    %2385 = vdwg.mxu0
    %v2387 = vrot.slane %v2383, 2
    %v2389 = vadd.f32 %v507, %v2387
    %v2390 = vxor.u32 %v2389, 2147483648
    %v2391 = vmul.f32 %v2390, 1.442695
    %v2392 = vpow.pop %v2391
    %v2393 = vadd.f32 %v2392, 1.0
    %v2394 = vrcp.pop %v2393
    %v2395 = vmul.f32 1.0, %v2394
    %2396 = vrot.lane.b32.xlu0 %v2387, 64
    %v2397 = vpop.permute.xlu0 %2396
    %v2399 = vmul.f32 %v2395, %v2397
    %2401 = vrot.lane.b32.xlu0 %v2399, 64
    %v2402 = vpop.permute.xlu0 %2401
    %v2404 = vadd.f32 %v507, %v2402
    %v2405 = vtanh.pop %v2404
    %v2406 = vsub.f32 1.0, %v2395
    %2408 = vrot.lane.b32.xlu0 %v2405, 96
    %v2409 = vpop.permute.xlu0 %2408
    %v2411 = vmul.f32 %v2406, %v2409
    %v2412 = vrot.slane %v2207, 2
    %v2414 = vmul.f32 %v2395, %v2412
    %v2415 = vadd.f32 %v2411, %v2414
    %2417 = vrot.lane.b32.xlu0 %v2310, 96
    %v2418 = vpop.permute.xlu0 %2417
    %v2419 = vsel %vm538, %v2418, 0
    %2421 = vmatprep.subr.mxu0 0.0
    %2422 = vmatpush1.msra.mxu0 %v520
    %2423 = vmatprep.subr.mxu0 0.0
    %2424 = vmatpush1.msra.mxu0 %v521
    %2425 = vmatprep.subr.mxu0 0.0
    %2426 = vmatpush1.msra.mxu0 %v522
    %2427 = vmatprep.subr.mxu0 0.0
    %2428 = vmatpush1.msra.mxu0 %v523
    %2429 = vmatprep.subr.mxu0 0.0
    %2430 = vmatpush1.msra.mxu0 0.0
    %2431 = vmatprep.subr.mxu0 0.0
    %2432 = vmatpush1.msra.mxu0 0.0
    %2433 = vmatprep.subr.mxu0 0.0
    %2434 = vmatpush1.msra.mxu0 0.0
    %2435 = vmatprep.subr.mxu0 0.0
    %2436 = vmatpush1.msra.mxu0 0.0
    %2437 = vmatprep.subr.mxu0 0.0
    %2438 = vmatpush1.msra.mxu0 0.0
    %2439 = vmatprep.subr.mxu0 0.0
    %2440 = vmatpush1.msra.mxu0 0.0
    %2441 = vmatprep.subr.mxu0 0.0
    %2442 = vmatpush1.msra.mxu0 0.0
    %2443 = vmatprep.subr.mxu0 0.0
    %2444 = vmatpush1.msra.mxu0 0.0
    %2445 = vmatprep.subr.mxu0 0.0
    %2446 = vmatpush1.msra.mxu0 0.0
    %2447 = vmatprep.subr.mxu0 0.0
    %2448 = vmatpush1.msra.mxu0 0.0
    %2449 = vmatprep.subr.mxu0 0.0
    %2450 = vmatpush1.msra.mxu0 0.0
    %2451 = vmatprep.subr.mxu0 0.0
    %2452 = vmatpush1.msra.mxu0 0.0
    %2453 = vmatprep.subr.mxu0 0.0
    %2454 = vmatpush1.msra.mxu0 0.0
    %2455 = vmatprep.subr.mxu0 0.0
    %2456 = vmatpush1.msra.mxu0 0.0
    %2457 = vmatprep.subr.mxu0 0.0
    %2458 = vmatpush1.msra.mxu0 0.0
    %2459 = vmatprep.subr.mxu0 0.0
    %2460 = vmatpush1.msra.mxu0 0.0
    %2461 = vmatprep.subr.mxu0 0.0
    %2462 = vmatpush1.msra.mxu0 0.0
    %2463 = vmatprep.subr.mxu0 0.0
    %2464 = vmatpush1.msra.mxu0 0.0
    %2465 = vmatprep.subr.mxu0 0.0
    %2466 = vmatpush1.msra.mxu0 0.0
    %2467 = vmatprep.subr.mxu0 0.0
    %2468 = vmatpush1.msra.mxu0 0.0
    %2469 = vmatprep.subr.mxu0 0.0
    %2470 = vmatpush1.msra.mxu0 0.0
    %2471 = vmatprep.subr.mxu0 0.0
    %2472 = vmatpush1.msra.mxu0 0.0
    %2473 = vmatprep.subr.mxu0 0.0
    %2474 = vmatpush1.msra.mxu0 0.0
    %2475 = vmatprep.subr.mxu0 0.0
    %2476 = vmatpush1.msra.mxu0 0.0
    %2477 = vmatprep.subr.mxu0 0.0
    %2478 = vmatpush1.msra.mxu0 0.0
    %2479 = vmatprep.subr.mxu0 0.0
    %2480 = vmatpush1.msra.mxu0 0.0
    %2481 = vmatprep.subr.mxu0 0.0
    %2482 = vmatpush1.msra.mxu0 0.0
    %2483 = vmatprep.subr.mxu0 0.0
    %2484 = vmatpush1.msra.mxu0 0.0
    %2485 = vmatprep.mubr.f32.mxu0 0.0
    %2486 = vmatmul.mubr.f32.gmra.mrb[0].mxu0 %v2419
    %v2487 = vpop.f32.mrb[0].mxu0
    %v2488 = vadd.f32 %v532, %v2487
    %v2489 = vpop.f32.mrb[0].mxu0
    %2490 = vdwg.mxu0
    %v2492 = vrot.slane %v2488, 6
    %v2494 = vadd.f32 %v423, %v2492
    %v2495 = vxor.u32 %v2494, 2147483648
    %v2496 = vmul.f32 %v2495, 1.442695
    %v2497 = vpow.pop %v2496
    %v2498 = vadd.f32 %v2497, 1.0
    %v2499 = vrcp.pop %v2498
    %v2500 = vmul.f32 1.0, %v2499
    %2501 = vrot.lane.b32.xlu0 %v2492, 64
    %v2502 = vpop.permute.xlu0 %2501
    %v2504 = vmul.f32 %v2500, %v2502
    %2506 = vrot.lane.b32.xlu0 %v2504, 64
    %v2507 = vpop.permute.xlu0 %2506
    %v2509 = vadd.f32 %v423, %v2507
    %v2510 = vtanh.pop %v2509
    %v2511 = vsub.f32 1.0, %v2500
    %2513 = vrot.lane.b32.xlu0 %v2510, 96
    %v2514 = vpop.permute.xlu0 %2513
    %v2516 = vmul.f32 %v2511, %v2514
    %v2517 = vrot.slane %v2310, 6
    %v2519 = vmul.f32 %v2500, %v2517
    %v2520 = vadd.f32 %v2516, %v2519
    %v2522 = vrot.slane %v2415, 6
    %2523 = vrot.lane.b32.xlu0 %v2522, 96
    %v2524 = vpop.permute.xlu0 %2523
    %v2525 = vsel %vm538, %v2524, 0
    %2527 = vmatprep.subr.mxu0 0.0
    %2528 = vmatpush1.msra.mxu0 %v524
    %2529 = vmatprep.subr.mxu0 0.0
    %2530 = vmatpush1.msra.mxu0 %v525
    %2531 = vmatprep.subr.mxu0 0.0
    %2532 = vmatpush1.msra.mxu0 %v526
    %2533 = vmatprep.subr.mxu0 0.0
    %2534 = vmatpush1.msra.mxu0 %v527
    %2535 = vmatprep.subr.mxu0 0.0
    %2536 = vmatpush1.msra.mxu0 0.0
    %2537 = vmatprep.subr.mxu0 0.0
    %2538 = vmatpush1.msra.mxu0 0.0
    %2539 = vmatprep.subr.mxu0 0.0
    %2540 = vmatpush1.msra.mxu0 0.0
    %2541 = vmatprep.subr.mxu0 0.0
    %2542 = vmatpush1.msra.mxu0 0.0
    %2543 = vmatprep.subr.mxu0 0.0
    %2544 = vmatpush1.msra.mxu0 0.0
    %2545 = vmatprep.subr.mxu0 0.0
    %2546 = vmatpush1.msra.mxu0 0.0
    %2547 = vmatprep.subr.mxu0 0.0
    %2548 = vmatpush1.msra.mxu0 0.0
    %2549 = vmatprep.subr.mxu0 0.0
    %2550 = vmatpush1.msra.mxu0 0.0
    %2551 = vmatprep.subr.mxu0 0.0
    %2552 = vmatpush1.msra.mxu0 0.0
    %2553 = vmatprep.subr.mxu0 0.0
    %2554 = vmatpush1.msra.mxu0 0.0
    %2555 = vmatprep.subr.mxu0 0.0
    %2556 = vmatpush1.msra.mxu0 0.0
    %2557 = vmatprep.subr.mxu0 0.0
    %2558 = vmatpush1.msra.mxu0 0.0
    %2559 = vmatprep.subr.mxu0 0.0
    %2560 = vmatpush1.msra.mxu0 0.0
    %2561 = vmatprep.subr.mxu0 0.0
    %2562 = vmatpush1.msra.mxu0 0.0
    %2563 = vmatprep.subr.mxu0 0.0
    %2564 = vmatpush1.msra.mxu0 0.0
    %2565 = vmatprep.subr.mxu0 0.0
    %2566 = vmatpush1.msra.mxu0 0.0
    %2567 = vmatprep.subr.mxu0 0.0
    %2568 = vmatpush1.msra.mxu0 0.0
    %2569 = vmatprep.subr.mxu0 0.0
    %2570 = vmatpush1.msra.mxu0 0.0
    %2571 = vmatprep.subr.mxu0 0.0
    %2572 = vmatpush1.msra.mxu0 0.0
    %2573 = vmatprep.subr.mxu0 0.0
    %2574 = vmatpush1.msra.mxu0 0.0
    %2575 = vmatprep.subr.mxu0 0.0
    %2576 = vmatpush1.msra.mxu0 0.0
    %2577 = vmatprep.subr.mxu0 0.0
    %2578 = vmatpush1.msra.mxu0 0.0
    %2579 = vmatprep.subr.mxu0 0.0
    %2580 = vmatpush1.msra.mxu0 0.0
    %2581 = vmatprep.subr.mxu0 0.0
    %2582 = vmatpush1.msra.mxu0 0.0
    %2583 = vmatprep.subr.mxu0 0.0
    %2584 = vmatpush1.msra.mxu0 0.0
    %2585 = vmatprep.subr.mxu0 0.0
    %2586 = vmatpush1.msra.mxu0 0.0
    %2587 = vmatprep.subr.mxu0 0.0
    %2588 = vmatpush1.msra.mxu0 0.0
    %2589 = vmatprep.subr.mxu0 0.0
    %2590 = vmatpush1.msra.mxu0 0.0
    %2591 = vmatprep.mubr.f32.mxu0 0.0
    %2592 = vmatmul.mubr.f32.gmra.mrb[0].mxu0 %v2525
    %v2593 = vpop.f32.mrb[0].mxu0
    %v2594 = vadd.f32 %v537, %v2593
    %v2595 = vpop.f32.mrb[0].mxu0
    %2596 = vdwg.mxu0
    %v2598 = vrot.slane %v2594, 4
    %v2600 = vadd.f32 %v507, %v2598
    %v2601 = vxor.u32 %v2600, 2147483648
    %v2602 = vmul.f32 %v2601, 1.442695
    %v2603 = vpow.pop %v2602
    %v2604 = vadd.f32 %v2603, 1.0
    %v2605 = vrcp.pop %v2604
    %v2606 = vmul.f32 1.0, %v2605
    %2607 = vrot.lane.b32.xlu0 %v2598, 64
    %v2608 = vpop.permute.xlu0 %2607
    %v2610 = vmul.f32 %v2606, %v2608
    %2612 = vrot.lane.b32.xlu0 %v2610, 64
    %v2613 = vpop.permute.xlu0 %2612
    %v2615 = vadd.f32 %v507, %v2613
    %v2616 = vtanh.pop %v2615
    %v2617 = vsub.f32 1.0, %v2606
    %2619 = vrot.lane.b32.xlu0 %v2616, 96
    %v2620 = vpop.permute.xlu0 %2619
    %v2622 = vmul.f32 %v2617, %v2620
    %v2623 = vrot.slane %v2415, 2
    %v2625 = vmul.f32 %v2606, %v2623
    %v2626 = vadd.f32 %v2622, %v2625
    %v2628 = vrot.slane %v2520, 2
    %2629 = vrot.lane.b32.xlu0 %v2628, 96
    %v2630 = vpop.permute.xlu0 %2629
    %v2631 = vsel %vm538, %v2630, 0
    %2633 = vmatprep.subr.mxu0 0.0
    %2634 = vmatpush1.msra.mxu0 %v520
    %2635 = vmatprep.subr.mxu0 0.0
    %2636 = vmatpush1.msra.mxu0 %v521
    %2637 = vmatprep.subr.mxu0 0.0
    %2638 = vmatpush1.msra.mxu0 %v522
    %2639 = vmatprep.subr.mxu0 0.0
    %2640 = vmatpush1.msra.mxu0 %v523
    %2641 = vmatprep.subr.mxu0 0.0
    %2642 = vmatpush1.msra.mxu0 0.0
    %2643 = vmatprep.subr.mxu0 0.0
    %2644 = vmatpush1.msra.mxu0 0.0
    %2645 = vmatprep.subr.mxu0 0.0
    %2646 = vmatpush1.msra.mxu0 0.0
    %2647 = vmatprep.subr.mxu0 0.0
    %2648 = vmatpush1.msra.mxu0 0.0
    %2649 = vmatprep.subr.mxu0 0.0
    %2650 = vmatpush1.msra.mxu0 0.0
    %2651 = vmatprep.subr.mxu0 0.0
    %2652 = vmatpush1.msra.mxu0 0.0
    %2653 = vmatprep.subr.mxu0 0.0
    %2654 = vmatpush1.msra.mxu0 0.0
    %2655 = vmatprep.subr.mxu0 0.0
    %2656 = vmatpush1.msra.mxu0 0.0
    %2657 = vmatprep.subr.mxu0 0.0
    %2658 = vmatpush1.msra.mxu0 0.0
    %2659 = vmatprep.subr.mxu0 0.0
    %2660 = vmatpush1.msra.mxu0 0.0
    %2661 = vmatprep.subr.mxu0 0.0
    %2662 = vmatpush1.msra.mxu0 0.0
    %2663 = vmatprep.subr.mxu0 0.0
    %2664 = vmatpush1.msra.mxu0 0.0
    %2665 = vmatprep.subr.mxu0 0.0
    %2666 = vmatpush1.msra.mxu0 0.0
    %2667 = vmatprep.subr.mxu0 0.0
    %2668 = vmatpush1.msra.mxu0 0.0
    %2669 = vmatprep.subr.mxu0 0.0
    %2670 = vmatpush1.msra.mxu0 0.0
    %2671 = vmatprep.subr.mxu0 0.0
    %2672 = vmatpush1.msra.mxu0 0.0
    %2673 = vmatprep.subr.mxu0 0.0
    %2674 = vmatpush1.msra.mxu0 0.0
    %2675 = vmatprep.subr.mxu0 0.0
    %2676 = vmatpush1.msra.mxu0 0.0
    %2677 = vmatprep.subr.mxu0 0.0
    %2678 = vmatpush1.msra.mxu0 0.0
    %2679 = vmatprep.subr.mxu0 0.0
    %2680 = vmatpush1.msra.mxu0 0.0
    %2681 = vmatprep.subr.mxu0 0.0
    %2682 = vmatpush1.msra.mxu0 0.0
    %2683 = vmatprep.subr.mxu0 0.0
    %2684 = vmatpush1.msra.mxu0 0.0
    %2685 = vmatprep.subr.mxu0 0.0
    %2686 = vmatpush1.msra.mxu0 0.0
    %2687 = vmatprep.subr.mxu0 0.0
    %2688 = vmatpush1.msra.mxu0 0.0
    %2689 = vmatprep.subr.mxu0 0.0
    %2690 = vmatpush1.msra.mxu0 0.0
    %2691 = vmatprep.subr.mxu0 0.0
    %2692 = vmatpush1.msra.mxu0 0.0
    %2693 = vmatprep.subr.mxu0 0.0
    %2694 = vmatpush1.msra.mxu0 0.0
    %2695 = vmatprep.subr.mxu0 0.0
    %2696 = vmatpush1.msra.mxu0 0.0
    %2697 = vmatprep.mubr.f32.mxu0 0.0
    %2698 = vmatmul.mubr.f32.gmra.mrb[0].mxu0 %v2631
    %v2699 = vpop.f32.mrb[0].mxu0
    %v2700 = vadd.f32 %v532, %v2699
    %v2701 = vpop.f32.mrb[0].mxu0
    %2702 = vdwg.mxu0
    %v2704 = vrot.slane %v2700, 4
    %v2706 = vadd.f32 %v423, %v2704
    %v2707 = vxor.u32 %v2706, 2147483648
    %v2708 = vmul.f32 %v2707, 1.442695
    %v2709 = vpow.pop %v2708
    %v2710 = vadd.f32 %v2709, 1.0
    %v2711 = vrcp.pop %v2710
    %v2712 = vmul.f32 1.0, %v2711
    %2713 = vrot.lane.b32.xlu0 %v2704, 64
    %v2714 = vpop.permute.xlu0 %2713
    %v2716 = vmul.f32 %v2712, %v2714
    %2718 = vrot.lane.b32.xlu0 %v2716, 64
    %v2719 = vpop.permute.xlu0 %2718
    %v2721 = vadd.f32 %v423, %v2719
    %v2722 = vtanh.pop %v2721
    %v2723 = vsub.f32 1.0, %v2712
    %2725 = vrot.lane.b32.xlu0 %v2722, 96
    %v2726 = vpop.permute.xlu0 %2725
    %v2728 = vmul.f32 %v2723, %v2726
    %v2729 = vrot.slane %v2520, 6
    %v2731 = vmul.f32 %v2712, %v2729
    %v2732 = vadd.f32 %v2728, %v2731
    %v2734 = vrot.slane %v2626, 4
    %2735 = vrot.lane.b32.xlu0 %v2734, 96
    %v2736 = vpop.permute.xlu0 %2735
    %v2737 = vsel %vm538, %v2736, 0
    %2739 = vmatprep.subr.mxu0 0.0
    %2740 = vmatpush1.msra.mxu0 %v524
    %2741 = vmatprep.subr.mxu0 0.0
    %2742 = vmatpush1.msra.mxu0 %v525
    %2743 = vmatprep.subr.mxu0 0.0
    %2744 = vmatpush1.msra.mxu0 %v526
    %2745 = vmatprep.subr.mxu0 0.0
    %2746 = vmatpush1.msra.mxu0 %v527
    %2747 = vmatprep.subr.mxu0 0.0
    %2748 = vmatpush1.msra.mxu0 0.0
    %2749 = vmatprep.subr.mxu0 0.0
    %2750 = vmatpush1.msra.mxu0 0.0
    %2751 = vmatprep.subr.mxu0 0.0
    %2752 = vmatpush1.msra.mxu0 0.0
    %2753 = vmatprep.subr.mxu0 0.0
    %2754 = vmatpush1.msra.mxu0 0.0
    %2755 = vmatprep.subr.mxu0 0.0
    %2756 = vmatpush1.msra.mxu0 0.0
    %2757 = vmatprep.subr.mxu0 0.0
    %2758 = vmatpush1.msra.mxu0 0.0
    %2759 = vmatprep.subr.mxu0 0.0
    %2760 = vmatpush1.msra.mxu0 0.0
    %2761 = vmatprep.subr.mxu0 0.0
    %2762 = vmatpush1.msra.mxu0 0.0
    %2763 = vmatprep.subr.mxu0 0.0
    %2764 = vmatpush1.msra.mxu0 0.0
    %2765 = vmatprep.subr.mxu0 0.0
    %2766 = vmatpush1.msra.mxu0 0.0
    %2767 = vmatprep.subr.mxu0 0.0
    %2768 = vmatpush1.msra.mxu0 0.0
    %2769 = vmatprep.subr.mxu0 0.0
    %2770 = vmatpush1.msra.mxu0 0.0
    %2771 = vmatprep.subr.mxu0 0.0
    %2772 = vmatpush1.msra.mxu0 0.0
    %2773 = vmatprep.subr.mxu0 0.0
    %2774 = vmatpush1.msra.mxu0 0.0
    %2775 = vmatprep.subr.mxu0 0.0
    %2776 = vmatpush1.msra.mxu0 0.0
    %2777 = vmatprep.subr.mxu0 0.0
    %2778 = vmatpush1.msra.mxu0 0.0
    %2779 = vmatprep.subr.mxu0 0.0
    %2780 = vmatpush1.msra.mxu0 0.0
    %2781 = vmatprep.subr.mxu0 0.0
    %2782 = vmatpush1.msra.mxu0 0.0
    %2783 = vmatprep.subr.mxu0 0.0
    %2784 = vmatpush1.msra.mxu0 0.0
    %2785 = vmatprep.subr.mxu0 0.0
    %2786 = vmatpush1.msra.mxu0 0.0
    %2787 = vmatprep.subr.mxu0 0.0
    %2788 = vmatpush1.msra.mxu0 0.0
    %2789 = vmatprep.subr.mxu0 0.0
    %2790 = vmatpush1.msra.mxu0 0.0
    %2791 = vmatprep.subr.mxu0 0.0
    %2792 = vmatpush1.msra.mxu0 0.0
    %2793 = vmatprep.subr.mxu0 0.0
    %2794 = vmatpush1.msra.mxu0 0.0
    %2795 = vmatprep.subr.mxu0 0.0
    %2796 = vmatpush1.msra.mxu0 0.0
    %2797 = vmatprep.subr.mxu0 0.0
    %2798 = vmatpush1.msra.mxu0 0.0
    %2799 = vmatprep.subr.mxu0 0.0
    %2800 = vmatpush1.msra.mxu0 0.0
    %2801 = vmatprep.subr.mxu0 0.0
    %2802 = vmatpush1.msra.mxu0 0.0
    %2803 = vmatprep.mubr.f32.mxu0 0.0
    %2804 = vmatmul.mubr.f32.gmra.mrb[0].mxu0 %v2737
    %v2805 = vpop.f32.mrb[0].mxu0
    %v2806 = vadd.f32 %v537, %v2805
    %v2807 = vpop.f32.mrb[0].mxu0
    %2808 = vdwg.mxu0
    %v2810 = vrot.slane %v2806, 6
    %v2812 = vadd.f32 %v507, %v2810
    %v2813 = vxor.u32 %v2812, 2147483648
    %v2814 = vmul.f32 %v2813, 1.442695
    %v2815 = vpow.pop %v2814
    %v2816 = vadd.f32 %v2815, 1.0
    %v2817 = vrcp.pop %v2816
    %v2818 = vmul.f32 1.0, %v2817
    %2819 = vrot.lane.b32.xlu0 %v2810, 64
    %v2820 = vpop.permute.xlu0 %2819
    %v2822 = vmul.f32 %v2818, %v2820
    %2824 = vrot.lane.b32.xlu0 %v2822, 64
    %v2825 = vpop.permute.xlu0 %2824
    %v2827 = vadd.f32 %v507, %v2825
    %v2828 = vtanh.pop %v2827
    %v2829 = vsub.f32 1.0, %v2818
    %2831 = vrot.lane.b32.xlu0 %v2828, 96
    %v2832 = vpop.permute.xlu0 %2831
    %v2834 = vmul.f32 %v2829, %v2832
    %v2835 = vrot.slane %v2626, 2
    %v2837 = vmul.f32 %v2818, %v2835
    %v2838 = vadd.f32 %v2834, %v2837
    %v2840 = vrot.slane %v2732, 4
    %2841 = vrot.lane.b32.xlu0 %v2840, 96
    %v2842 = vpop.permute.xlu0 %2841
    %v2843 = vsel %vm538, %v2842, 0
    %2845 = vmatprep.subr.mxu0 0.0
    %2846 = vmatpush1.msra.mxu0 %v520
    %2847 = vmatprep.subr.mxu0 0.0
    %2848 = vmatpush1.msra.mxu0 %v521
    %2849 = vmatprep.subr.mxu0 0.0
    %2850 = vmatpush1.msra.mxu0 %v522
    %2851 = vmatprep.subr.mxu0 0.0
    %2852 = vmatpush1.msra.mxu0 %v523
    %2853 = vmatprep.subr.mxu0 0.0
    %2854 = vmatpush1.msra.mxu0 0.0
    %2855 = vmatprep.subr.mxu0 0.0
    %2856 = vmatpush1.msra.mxu0 0.0
    %2857 = vmatprep.subr.mxu0 0.0
    %2858 = vmatpush1.msra.mxu0 0.0
    %2859 = vmatprep.subr.mxu0 0.0
    %2860 = vmatpush1.msra.mxu0 0.0
    %2861 = vmatprep.subr.mxu0 0.0
    %2862 = vmatpush1.msra.mxu0 0.0
    %2863 = vmatprep.subr.mxu0 0.0
    %2864 = vmatpush1.msra.mxu0 0.0
    %2865 = vmatprep.subr.mxu0 0.0
    %2866 = vmatpush1.msra.mxu0 0.0
    %2867 = vmatprep.subr.mxu0 0.0
    %2868 = vmatpush1.msra.mxu0 0.0
    %2869 = vmatprep.subr.mxu0 0.0
    %2870 = vmatpush1.msra.mxu0 0.0
    %2871 = vmatprep.subr.mxu0 0.0
    %2872 = vmatpush1.msra.mxu0 0.0
    %2873 = vmatprep.subr.mxu0 0.0
    %2874 = vmatpush1.msra.mxu0 0.0
    %2875 = vmatprep.subr.mxu0 0.0
    %2876 = vmatpush1.msra.mxu0 0.0
    %2877 = vmatprep.subr.mxu0 0.0
    %2878 = vmatpush1.msra.mxu0 0.0
    %2879 = vmatprep.subr.mxu0 0.0
    %2880 = vmatpush1.msra.mxu0 0.0
    %2881 = vmatprep.subr.mxu0 0.0
    %2882 = vmatpush1.msra.mxu0 0.0
    %2883 = vmatprep.subr.mxu0 0.0
    %2884 = vmatpush1.msra.mxu0 0.0
    %2885 = vmatprep.subr.mxu0 0.0
    %2886 = vmatpush1.msra.mxu0 0.0
    %2887 = vmatprep.subr.mxu0 0.0
    %2888 = vmatpush1.msra.mxu0 0.0
    %2889 = vmatprep.subr.mxu0 0.0
    %2890 = vmatpush1.msra.mxu0 0.0
    %2891 = vmatprep.subr.mxu0 0.0
    %2892 = vmatpush1.msra.mxu0 0.0
    %2893 = vmatprep.subr.mxu0 0.0
    %2894 = vmatpush1.msra.mxu0 0.0
    %2895 = vmatprep.subr.mxu0 0.0
    %2896 = vmatpush1.msra.mxu0 0.0
    %2897 = vmatprep.subr.mxu0 0.0
    %2898 = vmatpush1.msra.mxu0 0.0
    %2899 = vmatprep.subr.mxu0 0.0
    %2900 = vmatpush1.msra.mxu0 0.0
    %2901 = vmatprep.subr.mxu0 0.0
    %2902 = vmatpush1.msra.mxu0 0.0
    %2903 = vmatprep.subr.mxu0 0.0
    %2904 = vmatpush1.msra.mxu0 0.0
    %2905 = vmatprep.subr.mxu0 0.0
    %2906 = vmatpush1.msra.mxu0 0.0
    %2907 = vmatprep.subr.mxu0 0.0
    %2908 = vmatpush1.msra.mxu0 0.0
    %2909 = vmatprep.mubr.f32.mxu0 0.0
    %2910 = vmatmul.mubr.f32.gmra.mrb[0].mxu0 %v2843
    %v2911 = vpop.f32.mrb[0].mxu0
    %v2912 = vadd.f32 %v532, %v2911
    %v2913 = vpop.f32.mrb[0].mxu0
    %2914 = vdwg.mxu0
    %v2916 = vrot.slane %v2912, 2
    %v2918 = vadd.f32 %v423, %v2916
    %v2919 = vxor.u32 %v2918, 2147483648
    %v2920 = vmul.f32 %v2919, 1.442695
    %v2921 = vpow.pop %v2920
    %v2922 = vadd.f32 %v2921, 1.0
    %v2923 = vrcp.pop %v2922
    %v2924 = vmul.f32 1.0, %v2923
    %2925 = vrot.lane.b32.xlu0 %v2916, 64
    %v2926 = vpop.permute.xlu0 %2925
    %v2928 = vmul.f32 %v2924, %v2926
    %2930 = vrot.lane.b32.xlu0 %v2928, 64
    %v2931 = vpop.permute.xlu0 %2930
    %v2933 = vadd.f32 %v423, %v2931
    %v2934 = vtanh.pop %v2933
    %v2935 = vsub.f32 1.0, %v2924
    %2937 = vrot.lane.b32.xlu0 %v2934, 96
    %v2938 = vpop.permute.xlu0 %2937
    %v2940 = vmul.f32 %v2935, %v2938
    %v2941 = vrot.slane %v2732, 6
    %v2943 = vmul.f32 %v2924, %v2941
    %v2944 = vadd.f32 %v2940, %v2943
    %v2946 = vrot.slane %v2838, 2
    %2947 = vrot.lane.b32.xlu0 %v2946, 96
    %v2948 = vpop.permute.xlu0 %2947
    %v2949 = vsel %vm538, %v2948, 0
    %2951 = vmatprep.subr.mxu0 0.0
    %2952 = vmatpush1.msra.mxu0 %v524
    %2953 = vmatprep.subr.mxu0 0.0
    %2954 = vmatpush1.msra.mxu0 %v525
    %2955 = vmatprep.subr.mxu0 0.0
    %2956 = vmatpush1.msra.mxu0 %v526
    %2957 = vmatprep.subr.mxu0 0.0
    %2958 = vmatpush1.msra.mxu0 %v527
    %2959 = vmatprep.subr.mxu0 0.0
    %2960 = vmatpush1.msra.mxu0 0.0
    %2961 = vmatprep.subr.mxu0 0.0
    %2962 = vmatpush1.msra.mxu0 0.0
    %2963 = vmatprep.subr.mxu0 0.0
    %2964 = vmatpush1.msra.mxu0 0.0
    %2965 = vmatprep.subr.mxu0 0.0
    %2966 = vmatpush1.msra.mxu0 0.0
    %2967 = vmatprep.subr.mxu0 0.0
    %2968 = vmatpush1.msra.mxu0 0.0
    %2969 = vmatprep.subr.mxu0 0.0
    %2970 = vmatpush1.msra.mxu0 0.0
    %2971 = vmatprep.subr.mxu0 0.0
    %2972 = vmatpush1.msra.mxu0 0.0
    %2973 = vmatprep.subr.mxu0 0.0
    %2974 = vmatpush1.msra.mxu0 0.0
    %2975 = vmatprep.subr.mxu0 0.0
    %2976 = vmatpush1.msra.mxu0 0.0
    %2977 = vmatprep.subr.mxu0 0.0
    %2978 = vmatpush1.msra.mxu0 0.0
    %2979 = vmatprep.subr.mxu0 0.0
    %2980 = vmatpush1.msra.mxu0 0.0
    %2981 = vmatprep.subr.mxu0 0.0
    %2982 = vmatpush1.msra.mxu0 0.0
    %2983 = vmatprep.subr.mxu0 0.0
    %2984 = vmatpush1.msra.mxu0 0.0
    %2985 = vmatprep.subr.mxu0 0.0
    %2986 = vmatpush1.msra.mxu0 0.0
    %2987 = vmatprep.subr.mxu0 0.0
    %2988 = vmatpush1.msra.mxu0 0.0
    %2989 = vmatprep.subr.mxu0 0.0
    %2990 = vmatpush1.msra.mxu0 0.0
    %2991 = vmatprep.subr.mxu0 0.0
    %2992 = vmatpush1.msra.mxu0 0.0
    %2993 = vmatprep.subr.mxu0 0.0
    %2994 = vmatpush1.msra.mxu0 0.0
    %2995 = vmatprep.subr.mxu0 0.0
    %2996 = vmatpush1.msra.mxu0 0.0
    %2997 = vmatprep.subr.mxu0 0.0
    %2998 = vmatpush1.msra.mxu0 0.0
    %2999 = vmatprep.subr.mxu0 0.0
    %3000 = vmatpush1.msra.mxu0 0.0
    %3001 = vmatprep.subr.mxu0 0.0
    %3002 = vmatpush1.msra.mxu0 0.0
    %3003 = vmatprep.subr.mxu0 0.0
    %3004 = vmatpush1.msra.mxu0 0.0
    %3005 = vmatprep.subr.mxu0 0.0
    %3006 = vmatpush1.msra.mxu0 0.0
    %3007 = vmatprep.subr.mxu0 0.0
    %3008 = vmatpush1.msra.mxu0 0.0
    %3009 = vmatprep.subr.mxu0 0.0
    %3010 = vmatpush1.msra.mxu0 0.0
    %3011 = vmatprep.subr.mxu0 0.0
    %3012 = vmatpush1.msra.mxu0 0.0
    %3013 = vmatprep.subr.mxu0 0.0
    %3014 = vmatpush1.msra.mxu0 0.0
    %3015 = vmatprep.mubr.f32.mxu0 0.0
    %3016 = vmatmul.mubr.f32.gmra.mrb[0].mxu0 %v2949
    %v3017 = vpop.f32.mrb[0].mxu0
    %v3018 = vadd.f32 %v537, %v3017
    %v3019 = vpop.f32.mrb[0].mxu0
    %3020 = vdwg.mxu0
    %v3021 = vadd.f32 %v507, %v3018
    %v3022 = vxor.u32 %v3021, 2147483648
    %v3023 = vmul.f32 %v3022, 1.442695
    %v3024 = vpow.pop %v3023
    %v3025 = vadd.f32 %v3024, 1.0
    %v3026 = vrcp.pop %v3025
    %v3027 = vmul.f32 1.0, %v3026
    %3029 = vrot.lane.b32.xlu0 %v3018, 64
    %v3030 = vpop.permute.xlu0 %3029
    %v3032 = vmul.f32 %v3027, %v3030
    %3034 = vrot.lane.b32.xlu0 %v3032, 64
    %v3035 = vpop.permute.xlu0 %3034
    %v3037 = vadd.f32 %v507, %v3035
    %v3038 = vtanh.pop %v3037
    %v3039 = vsub.f32 1.0, %v3027
    %3041 = vrot.lane.b32.xlu0 %v3038, 96
    %v3042 = vpop.permute.xlu0 %3041
    %v3044 = vmul.f32 %v3039, %v3042
    %v3046 = vmul.f32 %v3027, %v2946
    %v3047 = vadd.f32 %v3044, %v3046
    %v3049 = vrot.slane %v2944, 6
    %3050 = vrot.lane.b32.xlu0 %v3049, 96
    %v3051 = vpop.permute.xlu0 %3050
    %v3052 = vsel %vm538, %v3051, 0
    %3054 = vmatprep.subr.mxu0 0.0
    %3055 = vmatpush1.msra.mxu0 %v520
    %3056 = vmatprep.subr.mxu0 0.0
    %3057 = vmatpush1.msra.mxu0 %v521
    %3058 = vmatprep.subr.mxu0 0.0
    %3059 = vmatpush1.msra.mxu0 %v522
    %3060 = vmatprep.subr.mxu0 0.0
    %3061 = vmatpush1.msra.mxu0 %v523
    %3062 = vmatprep.subr.mxu0 0.0
    %3063 = vmatpush1.msra.mxu0 0.0
    %3064 = vmatprep.subr.mxu0 0.0
    %3065 = vmatpush1.msra.mxu0 0.0
    %3066 = vmatprep.subr.mxu0 0.0
    %3067 = vmatpush1.msra.mxu0 0.0
    %3068 = vmatprep.subr.mxu0 0.0
    %3069 = vmatpush1.msra.mxu0 0.0
    %3070 = vmatprep.subr.mxu0 0.0
    %3071 = vmatpush1.msra.mxu0 0.0
    %3072 = vmatprep.subr.mxu0 0.0
    %3073 = vmatpush1.msra.mxu0 0.0
    %3074 = vmatprep.subr.mxu0 0.0
    %3075 = vmatpush1.msra.mxu0 0.0
    %3076 = vmatprep.subr.mxu0 0.0
    %3077 = vmatpush1.msra.mxu0 0.0
    %3078 = vmatprep.subr.mxu0 0.0
    %3079 = vmatpush1.msra.mxu0 0.0
    %3080 = vmatprep.subr.mxu0 0.0
    %3081 = vmatpush1.msra.mxu0 0.0
    %3082 = vmatprep.subr.mxu0 0.0
    %3083 = vmatpush1.msra.mxu0 0.0
    %3084 = vmatprep.subr.mxu0 0.0
    %3085 = vmatpush1.msra.mxu0 0.0
    %3086 = vmatprep.subr.mxu0 0.0
    %3087 = vmatpush1.msra.mxu0 0.0
    %3088 = vmatprep.subr.mxu0 0.0
    %3089 = vmatpush1.msra.mxu0 0.0
    %3090 = vmatprep.subr.mxu0 0.0
    %3091 = vmatpush1.msra.mxu0 0.0
    %3092 = vmatprep.subr.mxu0 0.0
    %3093 = vmatpush1.msra.mxu0 0.0
    %3094 = vmatprep.subr.mxu0 0.0
    %3095 = vmatpush1.msra.mxu0 0.0
    %3096 = vmatprep.subr.mxu0 0.0
    %3097 = vmatpush1.msra.mxu0 0.0
    %3098 = vmatprep.subr.mxu0 0.0
    %3099 = vmatpush1.msra.mxu0 0.0
    %3100 = vmatprep.subr.mxu0 0.0
    %3101 = vmatpush1.msra.mxu0 0.0
    %3102 = vmatprep.subr.mxu0 0.0
    %3103 = vmatpush1.msra.mxu0 0.0
    %3104 = vmatprep.subr.mxu0 0.0
    %3105 = vmatpush1.msra.mxu0 0.0
    %3106 = vmatprep.subr.mxu0 0.0
    %3107 = vmatpush1.msra.mxu0 0.0
    %3108 = vmatprep.subr.mxu0 0.0
    %3109 = vmatpush1.msra.mxu0 0.0
    %3110 = vmatprep.subr.mxu0 0.0
    %3111 = vmatpush1.msra.mxu0 0.0
    %3112 = vmatprep.subr.mxu0 0.0
    %3113 = vmatpush1.msra.mxu0 0.0
    %3114 = vmatprep.subr.mxu0 0.0
    %3115 = vmatpush1.msra.mxu0 0.0
    %3116 = vmatprep.subr.mxu0 0.0
    %3117 = vmatpush1.msra.mxu0 0.0
    %3118 = vmatprep.mubr.f32.mxu0 0.0
    %3119 = vmatmul.mubr.f32.gmra.mrb[0].mxu0 %v3052
    %v3120 = vpop.f32.mrb[0].mxu0
    %v3121 = vadd.f32 %v532, %v3120
    %v3122 = vpop.f32.mrb[0].mxu0
    %3123 = vdwg.mxu0
    %v3124 = vadd.f32 %v428, %v3121
    %v3125 = vxor.u32 %v3124, 2147483648
    %v3126 = vmul.f32 %v3125, 1.442695
    %v3127 = vpow.pop %v3126
    %v3128 = vadd.f32 %v3127, 1.0
    %v3129 = vrcp.pop %v3128
    %v3130 = vmul.f32 1.0, %v3129
    %3132 = vrot.lane.b32.xlu0 %v3121, 64
    %v3133 = vpop.permute.xlu0 %3132
    %v3135 = vmul.f32 %v3130, %v3133
    %3137 = vrot.lane.b32.xlu0 %v3135, 64
    %v3138 = vpop.permute.xlu0 %3137
    %v3140 = vadd.f32 %v428, %v3138
    %v3141 = vtanh.pop %v3140
    %v3142 = vsub.f32 1.0, %v3130
    %3144 = vrot.lane.b32.xlu0 %v3141, 96
    %v3145 = vpop.permute.xlu0 %3144
    %v3147 = vmul.f32 %v3142, %v3145
    %v3149 = vmul.f32 %v3130, %v3049
    %v3150 = vadd.f32 %v3147, %v3149
    %3152 = vrot.lane.b32.xlu0 %v3047, 96
    %v3153 = vpop.permute.xlu0 %3152
    %v3154 = vsel %vm538, %v3153, 0
    %3156 = vmatprep.subr.mxu0 0.0
    %3157 = vmatpush1.msra.mxu0 %v524
    %3158 = vmatprep.subr.mxu0 0.0
    %3159 = vmatpush1.msra.mxu0 %v525
    %3160 = vmatprep.subr.mxu0 0.0
    %3161 = vmatpush1.msra.mxu0 %v526
    %3162 = vmatprep.subr.mxu0 0.0
    %3163 = vmatpush1.msra.mxu0 %v527
    %3164 = vmatprep.subr.mxu0 0.0
    %3165 = vmatpush1.msra.mxu0 0.0
    %3166 = vmatprep.subr.mxu0 0.0
    %3167 = vmatpush1.msra.mxu0 0.0
    %3168 = vmatprep.subr.mxu0 0.0
    %3169 = vmatpush1.msra.mxu0 0.0
    %3170 = vmatprep.subr.mxu0 0.0
    %3171 = vmatpush1.msra.mxu0 0.0
    %3172 = vmatprep.subr.mxu0 0.0
    %3173 = vmatpush1.msra.mxu0 0.0
    %3174 = vmatprep.subr.mxu0 0.0
    %3175 = vmatpush1.msra.mxu0 0.0
    %3176 = vmatprep.subr.mxu0 0.0
    %3177 = vmatpush1.msra.mxu0 0.0
    %3178 = vmatprep.subr.mxu0 0.0
    %3179 = vmatpush1.msra.mxu0 0.0
    %3180 = vmatprep.subr.mxu0 0.0
    %3181 = vmatpush1.msra.mxu0 0.0
    %3182 = vmatprep.subr.mxu0 0.0
    %3183 = vmatpush1.msra.mxu0 0.0
    %3184 = vmatprep.subr.mxu0 0.0
    %3185 = vmatpush1.msra.mxu0 0.0
    %3186 = vmatprep.subr.mxu0 0.0
    %3187 = vmatpush1.msra.mxu0 0.0
    %3188 = vmatprep.subr.mxu0 0.0
    %3189 = vmatpush1.msra.mxu0 0.0
    %3190 = vmatprep.subr.mxu0 0.0
    %3191 = vmatpush1.msra.mxu0 0.0
    %3192 = vmatprep.subr.mxu0 0.0
    %3193 = vmatpush1.msra.mxu0 0.0
    %3194 = vmatprep.subr.mxu0 0.0
    %3195 = vmatpush1.msra.mxu0 0.0
    %3196 = vmatprep.subr.mxu0 0.0
    %3197 = vmatpush1.msra.mxu0 0.0
    %3198 = vmatprep.subr.mxu0 0.0
    %3199 = vmatpush1.msra.mxu0 0.0
    %3200 = vmatprep.subr.mxu0 0.0
    %3201 = vmatpush1.msra.mxu0 0.0
    %3202 = vmatprep.subr.mxu0 0.0
    %3203 = vmatpush1.msra.mxu0 0.0
    %3204 = vmatprep.subr.mxu0 0.0
    %3205 = vmatpush1.msra.mxu0 0.0
    %3206 = vmatprep.subr.mxu0 0.0
    %3207 = vmatpush1.msra.mxu0 0.0
    %3208 = vmatprep.subr.mxu0 0.0
    %3209 = vmatpush1.msra.mxu0 0.0
    %3210 = vmatprep.subr.mxu0 0.0
    %3211 = vmatpush1.msra.mxu0 0.0
    %3212 = vmatprep.subr.mxu0 0.0
    %3213 = vmatpush1.msra.mxu0 0.0
    %3214 = vmatprep.subr.mxu0 0.0
    %3215 = vmatpush1.msra.mxu0 0.0
    %3216 = vmatprep.subr.mxu0 0.0
    %3217 = vmatpush1.msra.mxu0 0.0
    %3218 = vmatprep.subr.mxu0 0.0
    %3219 = vmatpush1.msra.mxu0 0.0
    %3220 = vmatprep.mubr.f32.mxu0 0.0
    %3221 = vmatmul.mubr.f32.gmra.mrb[0].mxu0 %v3154
    %v3222 = vpop.f32.mrb[0].mxu0
    %v3223 = vadd.f32 %v537, %v3222
    %v3224 = vpop.f32.mrb[0].mxu0
    %3225 = vdwg.mxu0
    %v3227 = vrot.slane %v3223, 2
    %v3229 = vadd.f32 %v502, %v3227
    %v3230 = vxor.u32 %v3229, 2147483648
    %v3231 = vmul.f32 %v3230, 1.442695
    %v3232 = vpow.pop %v3231
    %v3233 = vadd.f32 %v3232, 1.0
    %v3234 = vrcp.pop %v3233
    %v3235 = vmul.f32 1.0, %v3234
    %3236 = vrot.lane.b32.xlu0 %v3227, 64
    %v3237 = vpop.permute.xlu0 %3236
    %v3239 = vmul.f32 %v3235, %v3237
    %3241 = vrot.lane.b32.xlu0 %v3239, 64
    %v3242 = vpop.permute.xlu0 %3241
    %v3244 = vadd.f32 %v502, %v3242
    %v3245 = vtanh.pop %v3244
    %v3246 = vsub.f32 1.0, %v3235
    %3248 = vrot.lane.b32.xlu0 %v3245, 96
    %v3249 = vpop.permute.xlu0 %3248
    %v3251 = vmul.f32 %v3246, %v3249
    %v3252 = vrot.slane %v3047, 2
    %v3254 = vmul.f32 %v3235, %v3252
    %v3255 = vadd.f32 %v3251, %v3254
    %3257 = vrot.lane.b32.xlu0 %v3150, 96
    %v3258 = vpop.permute.xlu0 %3257
    %v3259 = vsel %vm538, %v3258, 0
    %3261 = vmatprep.subr.mxu0 0.0
    %3262 = vmatpush1.msra.mxu0 %v520
    %3263 = vmatprep.subr.mxu0 0.0
    %3264 = vmatpush1.msra.mxu0 %v521
    %3265 = vmatprep.subr.mxu0 0.0
    %3266 = vmatpush1.msra.mxu0 %v522
    %3267 = vmatprep.subr.mxu0 0.0
    %3268 = vmatpush1.msra.mxu0 %v523
    %3269 = vmatprep.subr.mxu0 0.0
    %3270 = vmatpush1.msra.mxu0 0.0
    %3271 = vmatprep.subr.mxu0 0.0
    %3272 = vmatpush1.msra.mxu0 0.0
    %3273 = vmatprep.subr.mxu0 0.0
    %3274 = vmatpush1.msra.mxu0 0.0
    %3275 = vmatprep.subr.mxu0 0.0
    %3276 = vmatpush1.msra.mxu0 0.0
    %3277 = vmatprep.subr.mxu0 0.0
    %3278 = vmatpush1.msra.mxu0 0.0
    %3279 = vmatprep.subr.mxu0 0.0
    %3280 = vmatpush1.msra.mxu0 0.0
    %3281 = vmatprep.subr.mxu0 0.0
    %3282 = vmatpush1.msra.mxu0 0.0
    %3283 = vmatprep.subr.mxu0 0.0
    %3284 = vmatpush1.msra.mxu0 0.0
    %3285 = vmatprep.subr.mxu0 0.0
    %3286 = vmatpush1.msra.mxu0 0.0
    %3287 = vmatprep.subr.mxu0 0.0
    %3288 = vmatpush1.msra.mxu0 0.0
    %3289 = vmatprep.subr.mxu0 0.0
    %3290 = vmatpush1.msra.mxu0 0.0
    %3291 = vmatprep.subr.mxu0 0.0
    %3292 = vmatpush1.msra.mxu0 0.0
    %3293 = vmatprep.subr.mxu0 0.0
    %3294 = vmatpush1.msra.mxu0 0.0
    %3295 = vmatprep.subr.mxu0 0.0
    %3296 = vmatpush1.msra.mxu0 0.0
    %3297 = vmatprep.subr.mxu0 0.0
    %3298 = vmatpush1.msra.mxu0 0.0
    %3299 = vmatprep.subr.mxu0 0.0
    %3300 = vmatpush1.msra.mxu0 0.0
    %3301 = vmatprep.subr.mxu0 0.0
    %3302 = vmatpush1.msra.mxu0 0.0
    %3303 = vmatprep.subr.mxu0 0.0
    %3304 = vmatpush1.msra.mxu0 0.0
    %3305 = vmatprep.subr.mxu0 0.0
    %3306 = vmatpush1.msra.mxu0 0.0
    %3307 = vmatprep.subr.mxu0 0.0
    %3308 = vmatpush1.msra.mxu0 0.0
    %3309 = vmatprep.subr.mxu0 0.0
    %3310 = vmatpush1.msra.mxu0 0.0
    %3311 = vmatprep.subr.mxu0 0.0
    %3312 = vmatpush1.msra.mxu0 0.0
    %3313 = vmatprep.subr.mxu0 0.0
    %3314 = vmatpush1.msra.mxu0 0.0
    %3315 = vmatprep.subr.mxu0 0.0
    %3316 = vmatpush1.msra.mxu0 0.0
    %3317 = vmatprep.subr.mxu0 0.0
    %3318 = vmatpush1.msra.mxu0 0.0
    %3319 = vmatprep.subr.mxu0 0.0
    %3320 = vmatpush1.msra.mxu0 0.0
    %3321 = vmatprep.subr.mxu0 0.0
    %3322 = vmatpush1.msra.mxu0 0.0
    %3323 = vmatprep.subr.mxu0 0.0
    %3324 = vmatpush1.msra.mxu0 0.0
    %3325 = vmatprep.mubr.f32.mxu0 0.0
    %3326 = vmatmul.mubr.f32.gmra.mrb[0].mxu0 %v3259
    %v3327 = vpop.f32.mrb[0].mxu0
    %v3328 = vadd.f32 %v532, %v3327
    %v3329 = vpop.f32.mrb[0].mxu0
    %3330 = vdwg.mxu0
    %v3332 = vrot.slane %v3328, 6
    %v3334 = vadd.f32 %v428, %v3332
    %v3335 = vxor.u32 %v3334, 2147483648
    %v3336 = vmul.f32 %v3335, 1.442695
    %v3337 = vpow.pop %v3336
    %v3338 = vadd.f32 %v3337, 1.0
    %v3339 = vrcp.pop %v3338
    %v3340 = vmul.f32 1.0, %v3339
    %3341 = vrot.lane.b32.xlu0 %v3332, 64
    %v3342 = vpop.permute.xlu0 %3341
    %v3344 = vmul.f32 %v3340, %v3342
    %3346 = vrot.lane.b32.xlu0 %v3344, 64
    %v3347 = vpop.permute.xlu0 %3346
    %v3349 = vadd.f32 %v428, %v3347
    %v3350 = vtanh.pop %v3349
    %v3351 = vsub.f32 1.0, %v3340
    %3353 = vrot.lane.b32.xlu0 %v3350, 96
    %v3354 = vpop.permute.xlu0 %3353
    %v3356 = vmul.f32 %v3351, %v3354
    %v3357 = vrot.slane %v3150, 6
    %v3359 = vmul.f32 %v3340, %v3357
    %v3360 = vadd.f32 %v3356, %v3359
    %v3362 = vrot.slane %v3255, 6
    %3363 = vrot.lane.b32.xlu0 %v3362, 96
    %v3364 = vpop.permute.xlu0 %3363
    %v3365 = vsel %vm538, %v3364, 0
    %3367 = vmatprep.subr.mxu0 0.0
    %3368 = vmatpush1.msra.mxu0 %v524
    %3369 = vmatprep.subr.mxu0 0.0
    %3370 = vmatpush1.msra.mxu0 %v525
    %3371 = vmatprep.subr.mxu0 0.0
    %3372 = vmatpush1.msra.mxu0 %v526
    %3373 = vmatprep.subr.mxu0 0.0
    %3374 = vmatpush1.msra.mxu0 %v527
    %3375 = vmatprep.subr.mxu0 0.0
    %3376 = vmatpush1.msra.mxu0 0.0
    %3377 = vmatprep.subr.mxu0 0.0
    %3378 = vmatpush1.msra.mxu0 0.0
    %3379 = vmatprep.subr.mxu0 0.0
    %3380 = vmatpush1.msra.mxu0 0.0
    %3381 = vmatprep.subr.mxu0 0.0
    %3382 = vmatpush1.msra.mxu0 0.0
    %3383 = vmatprep.subr.mxu0 0.0
    %3384 = vmatpush1.msra.mxu0 0.0
    %3385 = vmatprep.subr.mxu0 0.0
    %3386 = vmatpush1.msra.mxu0 0.0
    %3387 = vmatprep.subr.mxu0 0.0
    %3388 = vmatpush1.msra.mxu0 0.0
    %3389 = vmatprep.subr.mxu0 0.0
    %3390 = vmatpush1.msra.mxu0 0.0
    %3391 = vmatprep.subr.mxu0 0.0
    %3392 = vmatpush1.msra.mxu0 0.0
    %3393 = vmatprep.subr.mxu0 0.0
    %3394 = vmatpush1.msra.mxu0 0.0
    %3395 = vmatprep.subr.mxu0 0.0
    %3396 = vmatpush1.msra.mxu0 0.0
    %3397 = vmatprep.subr.mxu0 0.0
    %3398 = vmatpush1.msra.mxu0 0.0
    %3399 = vmatprep.subr.mxu0 0.0
    %3400 = vmatpush1.msra.mxu0 0.0
    %3401 = vmatprep.subr.mxu0 0.0
    %3402 = vmatpush1.msra.mxu0 0.0
    %3403 = vmatprep.subr.mxu0 0.0
    %3404 = vmatpush1.msra.mxu0 0.0
    %3405 = vmatprep.subr.mxu0 0.0
    %3406 = vmatpush1.msra.mxu0 0.0
    %3407 = vmatprep.subr.mxu0 0.0
    %3408 = vmatpush1.msra.mxu0 0.0
    %3409 = vmatprep.subr.mxu0 0.0
    %3410 = vmatpush1.msra.mxu0 0.0
    %3411 = vmatprep.subr.mxu0 0.0
    %3412 = vmatpush1.msra.mxu0 0.0
    %3413 = vmatprep.subr.mxu0 0.0
    %3414 = vmatpush1.msra.mxu0 0.0
    %3415 = vmatprep.subr.mxu0 0.0
    %3416 = vmatpush1.msra.mxu0 0.0
    %3417 = vmatprep.subr.mxu0 0.0
    %3418 = vmatpush1.msra.mxu0 0.0
    %3419 = vmatprep.subr.mxu0 0.0
    %3420 = vmatpush1.msra.mxu0 0.0
    %3421 = vmatprep.subr.mxu0 0.0
    %3422 = vmatpush1.msra.mxu0 0.0
    %3423 = vmatprep.subr.mxu0 0.0
    %3424 = vmatpush1.msra.mxu0 0.0
    %3425 = vmatprep.subr.mxu0 0.0
    %3426 = vmatpush1.msra.mxu0 0.0
    %3427 = vmatprep.subr.mxu0 0.0
    %3428 = vmatpush1.msra.mxu0 0.0
    %3429 = vmatprep.subr.mxu0 0.0
    %3430 = vmatpush1.msra.mxu0 0.0
    %3431 = vmatprep.mubr.f32.mxu0 0.0
    %3432 = vmatmul.mubr.f32.gmra.mrb[0].mxu0 %v3365
    %v3433 = vpop.f32.mrb[0].mxu0
    %v3434 = vadd.f32 %v537, %v3433
    %v3435 = vpop.f32.mrb[0].mxu0
    %3436 = vdwg.mxu0
    %v3438 = vrot.slane %v3434, 4
    %v3440 = vadd.f32 %v502, %v3438
    %v3441 = vxor.u32 %v3440, 2147483648
    %v3442 = vmul.f32 %v3441, 1.442695
    %v3443 = vpow.pop %v3442
    %v3444 = vadd.f32 %v3443, 1.0
    %v3445 = vrcp.pop %v3444
    %v3446 = vmul.f32 1.0, %v3445
    %3447 = vrot.lane.b32.xlu0 %v3438, 64
    %v3448 = vpop.permute.xlu0 %3447
    %v3450 = vmul.f32 %v3446, %v3448
    %3452 = vrot.lane.b32.xlu0 %v3450, 64
    %v3453 = vpop.permute.xlu0 %3452
    %v3455 = vadd.f32 %v502, %v3453
    %v3456 = vtanh.pop %v3455
    %v3457 = vsub.f32 1.0, %v3446
    %3459 = vrot.lane.b32.xlu0 %v3456, 96
    %v3460 = vpop.permute.xlu0 %3459
    %v3462 = vmul.f32 %v3457, %v3460
    %v3463 = vrot.slane %v3255, 2
    %v3465 = vmul.f32 %v3446, %v3463
    %v3466 = vadd.f32 %v3462, %v3465
    %v3468 = vrot.slane %v3360, 2
    %3469 = vrot.lane.b32.xlu0 %v3468, 96
    %v3470 = vpop.permute.xlu0 %3469
    %v3471 = vsel %vm538, %v3470, 0
    %3473 = vmatprep.subr.mxu0 0.0
    %3474 = vmatpush1.msra.mxu0 %v520
    %3475 = vmatprep.subr.mxu0 0.0
    %3476 = vmatpush1.msra.mxu0 %v521
    %3477 = vmatprep.subr.mxu0 0.0
    %3478 = vmatpush1.msra.mxu0 %v522
    %3479 = vmatprep.subr.mxu0 0.0
    %3480 = vmatpush1.msra.mxu0 %v523
    %3481 = vmatprep.subr.mxu0 0.0
    %3482 = vmatpush1.msra.mxu0 0.0
    %3483 = vmatprep.subr.mxu0 0.0
    %3484 = vmatpush1.msra.mxu0 0.0
    %3485 = vmatprep.subr.mxu0 0.0
    %3486 = vmatpush1.msra.mxu0 0.0
    %3487 = vmatprep.subr.mxu0 0.0
    %3488 = vmatpush1.msra.mxu0 0.0
    %3489 = vmatprep.subr.mxu0 0.0
    %3490 = vmatpush1.msra.mxu0 0.0
    %3491 = vmatprep.subr.mxu0 0.0
    %3492 = vmatpush1.msra.mxu0 0.0
    %3493 = vmatprep.subr.mxu0 0.0
    %3494 = vmatpush1.msra.mxu0 0.0
    %3495 = vmatprep.subr.mxu0 0.0
    %3496 = vmatpush1.msra.mxu0 0.0
    %3497 = vmatprep.subr.mxu0 0.0
    %3498 = vmatpush1.msra.mxu0 0.0
    %3499 = vmatprep.subr.mxu0 0.0
    %3500 = vmatpush1.msra.mxu0 0.0
    %3501 = vmatprep.subr.mxu0 0.0
    %3502 = vmatpush1.msra.mxu0 0.0
    %3503 = vmatprep.subr.mxu0 0.0
    %3504 = vmatpush1.msra.mxu0 0.0
    %3505 = vmatprep.subr.mxu0 0.0
    %3506 = vmatpush1.msra.mxu0 0.0
    %3507 = vmatprep.subr.mxu0 0.0
    %3508 = vmatpush1.msra.mxu0 0.0
    %3509 = vmatprep.subr.mxu0 0.0
    %3510 = vmatpush1.msra.mxu0 0.0
    %3511 = vmatprep.subr.mxu0 0.0
    %3512 = vmatpush1.msra.mxu0 0.0
    %3513 = vmatprep.subr.mxu0 0.0
    %3514 = vmatpush1.msra.mxu0 0.0
    %3515 = vmatprep.subr.mxu0 0.0
    %3516 = vmatpush1.msra.mxu0 0.0
    %3517 = vmatprep.subr.mxu0 0.0
    %3518 = vmatpush1.msra.mxu0 0.0
    %3519 = vmatprep.subr.mxu0 0.0
    %3520 = vmatpush1.msra.mxu0 0.0
    %3521 = vmatprep.subr.mxu0 0.0
    %3522 = vmatpush1.msra.mxu0 0.0
    %3523 = vmatprep.subr.mxu0 0.0
    %3524 = vmatpush1.msra.mxu0 0.0
    %3525 = vmatprep.subr.mxu0 0.0
    %3526 = vmatpush1.msra.mxu0 0.0
    %3527 = vmatprep.subr.mxu0 0.0
    %3528 = vmatpush1.msra.mxu0 0.0
    %3529 = vmatprep.subr.mxu0 0.0
    %3530 = vmatpush1.msra.mxu0 0.0
    %3531 = vmatprep.subr.mxu0 0.0
    %3532 = vmatpush1.msra.mxu0 0.0
    %3533 = vmatprep.subr.mxu0 0.0
    %3534 = vmatpush1.msra.mxu0 0.0
    %3535 = vmatprep.subr.mxu0 0.0
    %3536 = vmatpush1.msra.mxu0 0.0
    %3537 = vmatprep.mubr.f32.mxu0 0.0
    %3538 = vmatmul.mubr.f32.gmra.mrb[0].mxu0 %v3471
    %v3539 = vpop.f32.mrb[0].mxu0
    %v3540 = vadd.f32 %v532, %v3539
    %v3541 = vpop.f32.mrb[0].mxu0
    %3542 = vdwg.mxu0
    %v3544 = vrot.slane %v3540, 4
    %v3546 = vadd.f32 %v428, %v3544
    %v3547 = vxor.u32 %v3546, 2147483648
    %v3548 = vmul.f32 %v3547, 1.442695
    %v3549 = vpow.pop %v3548
    %v3550 = vadd.f32 %v3549, 1.0
    %v3551 = vrcp.pop %v3550
    %v3552 = vmul.f32 1.0, %v3551
    %3553 = vrot.lane.b32.xlu0 %v3544, 64
    %v3554 = vpop.permute.xlu0 %3553
    %v3556 = vmul.f32 %v3552, %v3554
    %3558 = vrot.lane.b32.xlu0 %v3556, 64
    %v3559 = vpop.permute.xlu0 %3558
    %v3561 = vadd.f32 %v428, %v3559
    %v3562 = vtanh.pop %v3561
    %v3563 = vsub.f32 1.0, %v3552
    %3565 = vrot.lane.b32.xlu0 %v3562, 96
    %v3566 = vpop.permute.xlu0 %3565
    %v3568 = vmul.f32 %v3563, %v3566
    %v3569 = vrot.slane %v3360, 6
    %v3571 = vmul.f32 %v3552, %v3569
    %v3572 = vadd.f32 %v3568, %v3571
    %v3574 = vrot.slane %v3466, 4
    %3575 = vrot.lane.b32.xlu0 %v3574, 96
    %v3576 = vpop.permute.xlu0 %3575
    %v3577 = vsel %vm538, %v3576, 0
    %3579 = vmatprep.subr.mxu0 0.0
    %3580 = vmatpush1.msra.mxu0 %v524
    %3581 = vmatprep.subr.mxu0 0.0
    %3582 = vmatpush1.msra.mxu0 %v525
    %3583 = vmatprep.subr.mxu0 0.0
    %3584 = vmatpush1.msra.mxu0 %v526
    %3585 = vmatprep.subr.mxu0 0.0
    %3586 = vmatpush1.msra.mxu0 %v527
    %3587 = vmatprep.subr.mxu0 0.0
    %3588 = vmatpush1.msra.mxu0 0.0
    %3589 = vmatprep.subr.mxu0 0.0
    %3590 = vmatpush1.msra.mxu0 0.0
    %3591 = vmatprep.subr.mxu0 0.0
    %3592 = vmatpush1.msra.mxu0 0.0
    %3593 = vmatprep.subr.mxu0 0.0
    %3594 = vmatpush1.msra.mxu0 0.0
    %3595 = vmatprep.subr.mxu0 0.0
    %3596 = vmatpush1.msra.mxu0 0.0
    %3597 = vmatprep.subr.mxu0 0.0
    %3598 = vmatpush1.msra.mxu0 0.0
    %3599 = vmatprep.subr.mxu0 0.0
    %3600 = vmatpush1.msra.mxu0 0.0
    %3601 = vmatprep.subr.mxu0 0.0
    %3602 = vmatpush1.msra.mxu0 0.0
    %3603 = vmatprep.subr.mxu0 0.0
    %3604 = vmatpush1.msra.mxu0 0.0
    %3605 = vmatprep.subr.mxu0 0.0
    %3606 = vmatpush1.msra.mxu0 0.0
    %3607 = vmatprep.subr.mxu0 0.0
    %3608 = vmatpush1.msra.mxu0 0.0
    %3609 = vmatprep.subr.mxu0 0.0
    %3610 = vmatpush1.msra.mxu0 0.0
    %3611 = vmatprep.subr.mxu0 0.0
    %3612 = vmatpush1.msra.mxu0 0.0
    %3613 = vmatprep.subr.mxu0 0.0
    %3614 = vmatpush1.msra.mxu0 0.0
    %3615 = vmatprep.subr.mxu0 0.0
    %3616 = vmatpush1.msra.mxu0 0.0
    %3617 = vmatprep.subr.mxu0 0.0
    %3618 = vmatpush1.msra.mxu0 0.0
    %3619 = vmatprep.subr.mxu0 0.0
    %3620 = vmatpush1.msra.mxu0 0.0
    %3621 = vmatprep.subr.mxu0 0.0
    %3622 = vmatpush1.msra.mxu0 0.0
    %3623 = vmatprep.subr.mxu0 0.0
    %3624 = vmatpush1.msra.mxu0 0.0
    %3625 = vmatprep.subr.mxu0 0.0
    %3626 = vmatpush1.msra.mxu0 0.0
    %3627 = vmatprep.subr.mxu0 0.0
    %3628 = vmatpush1.msra.mxu0 0.0
    %3629 = vmatprep.subr.mxu0 0.0
    %3630 = vmatpush1.msra.mxu0 0.0
    %3631 = vmatprep.subr.mxu0 0.0
    %3632 = vmatpush1.msra.mxu0 0.0
    %3633 = vmatprep.subr.mxu0 0.0
    %3634 = vmatpush1.msra.mxu0 0.0
    %3635 = vmatprep.subr.mxu0 0.0
    %3636 = vmatpush1.msra.mxu0 0.0
    %3637 = vmatprep.subr.mxu0 0.0
    %3638 = vmatpush1.msra.mxu0 0.0
    %3639 = vmatprep.subr.mxu0 0.0
    %3640 = vmatpush1.msra.mxu0 0.0
    %3641 = vmatprep.subr.mxu0 0.0
    %3642 = vmatpush1.msra.mxu0 0.0
    %3643 = vmatprep.mubr.f32.mxu0 0.0
    %3644 = vmatmul.mubr.f32.gmra.mrb[0].mxu0 %v3577
    %v3645 = vpop.f32.mrb[0].mxu0
    %v3646 = vadd.f32 %v537, %v3645
    %v3647 = vpop.f32.mrb[0].mxu0
    %3648 = vdwg.mxu0
    %v3650 = vrot.slane %v3646, 6
    %v3652 = vadd.f32 %v502, %v3650
    %v3653 = vxor.u32 %v3652, 2147483648
    %v3654 = vmul.f32 %v3653, 1.442695
    %v3655 = vpow.pop %v3654
    %v3656 = vadd.f32 %v3655, 1.0
    %v3657 = vrcp.pop %v3656
    %v3658 = vmul.f32 1.0, %v3657
    %3659 = vrot.lane.b32.xlu0 %v3650, 64
    %v3660 = vpop.permute.xlu0 %3659
    %v3662 = vmul.f32 %v3658, %v3660
    %3664 = vrot.lane.b32.xlu0 %v3662, 64
    %v3665 = vpop.permute.xlu0 %3664
    %v3667 = vadd.f32 %v502, %v3665
    %v3668 = vtanh.pop %v3667
    %v3669 = vsub.f32 1.0, %v3658
    %3671 = vrot.lane.b32.xlu0 %v3668, 96
    %v3672 = vpop.permute.xlu0 %3671
    %v3674 = vmul.f32 %v3669, %v3672
    %v3675 = vrot.slane %v3466, 2
    %v3677 = vmul.f32 %v3658, %v3675
    %v3678 = vadd.f32 %v3674, %v3677
    %v3680 = vrot.slane %v3572, 4
    %3681 = vrot.lane.b32.xlu0 %v3680, 96
    %v3682 = vpop.permute.xlu0 %3681
    %v3683 = vsel %vm538, %v3682, 0
    %3685 = vmatprep.subr.mxu0 0.0
    %3686 = vmatpush1.msra.mxu0 %v520
    %3687 = vmatprep.subr.mxu0 0.0
    %3688 = vmatpush1.msra.mxu0 %v521
    %3689 = vmatprep.subr.mxu0 0.0
    %3690 = vmatpush1.msra.mxu0 %v522
    %3691 = vmatprep.subr.mxu0 0.0
    %3692 = vmatpush1.msra.mxu0 %v523
    %3693 = vmatprep.subr.mxu0 0.0
    %3694 = vmatpush1.msra.mxu0 0.0
    %3695 = vmatprep.subr.mxu0 0.0
    %3696 = vmatpush1.msra.mxu0 0.0
    %3697 = vmatprep.subr.mxu0 0.0
    %3698 = vmatpush1.msra.mxu0 0.0
    %3699 = vmatprep.subr.mxu0 0.0
    %3700 = vmatpush1.msra.mxu0 0.0
    %3701 = vmatprep.subr.mxu0 0.0
    %3702 = vmatpush1.msra.mxu0 0.0
    %3703 = vmatprep.subr.mxu0 0.0
    %3704 = vmatpush1.msra.mxu0 0.0
    %3705 = vmatprep.subr.mxu0 0.0
    %3706 = vmatpush1.msra.mxu0 0.0
    %3707 = vmatprep.subr.mxu0 0.0
    %3708 = vmatpush1.msra.mxu0 0.0
    %3709 = vmatprep.subr.mxu0 0.0
    %3710 = vmatpush1.msra.mxu0 0.0
    %3711 = vmatprep.subr.mxu0 0.0
    %3712 = vmatpush1.msra.mxu0 0.0
    %3713 = vmatprep.subr.mxu0 0.0
    %3714 = vmatpush1.msra.mxu0 0.0
    %3715 = vmatprep.subr.mxu0 0.0
    %3716 = vmatpush1.msra.mxu0 0.0
    %3717 = vmatprep.subr.mxu0 0.0
    %3718 = vmatpush1.msra.mxu0 0.0
    %3719 = vmatprep.subr.mxu0 0.0
    %3720 = vmatpush1.msra.mxu0 0.0
    %3721 = vmatprep.subr.mxu0 0.0
    %3722 = vmatpush1.msra.mxu0 0.0
    %3723 = vmatprep.subr.mxu0 0.0
    %3724 = vmatpush1.msra.mxu0 0.0
    %3725 = vmatprep.subr.mxu0 0.0
    %3726 = vmatpush1.msra.mxu0 0.0
    %3727 = vmatprep.subr.mxu0 0.0
    %3728 = vmatpush1.msra.mxu0 0.0
    %3729 = vmatprep.subr.mxu0 0.0
    %3730 = vmatpush1.msra.mxu0 0.0
    %3731 = vmatprep.subr.mxu0 0.0
    %3732 = vmatpush1.msra.mxu0 0.0
    %3733 = vmatprep.subr.mxu0 0.0
    %3734 = vmatpush1.msra.mxu0 0.0
    %3735 = vmatprep.subr.mxu0 0.0
    %3736 = vmatpush1.msra.mxu0 0.0
    %3737 = vmatprep.subr.mxu0 0.0
    %3738 = vmatpush1.msra.mxu0 0.0
    %3739 = vmatprep.subr.mxu0 0.0
    %3740 = vmatpush1.msra.mxu0 0.0
    %3741 = vmatprep.subr.mxu0 0.0
    %3742 = vmatpush1.msra.mxu0 0.0
    %3743 = vmatprep.subr.mxu0 0.0
    %3744 = vmatpush1.msra.mxu0 0.0
    %3745 = vmatprep.subr.mxu0 0.0
    %3746 = vmatpush1.msra.mxu0 0.0
    %3747 = vmatprep.subr.mxu0 0.0
    %3748 = vmatpush1.msra.mxu0 0.0
    %3749 = vmatprep.mubr.f32.mxu0 0.0
    %3750 = vmatmul.mubr.f32.gmra.mrb[0].mxu0 %v3683
    %v3751 = vpop.f32.mrb[0].mxu0
    %v3752 = vadd.f32 %v532, %v3751
    %v3753 = vpop.f32.mrb[0].mxu0
    %3754 = vdwg.mxu0
    %v3756 = vrot.slane %v3752, 2
    %v3758 = vadd.f32 %v428, %v3756
    %v3759 = vxor.u32 %v3758, 2147483648
    %v3760 = vmul.f32 %v3759, 1.442695
    %v3761 = vpow.pop %v3760
    %v3762 = vadd.f32 %v3761, 1.0
    %v3763 = vrcp.pop %v3762
    %v3764 = vmul.f32 1.0, %v3763
    %3765 = vrot.lane.b32.xlu0 %v3756, 64
    %v3766 = vpop.permute.xlu0 %3765
    %v3768 = vmul.f32 %v3764, %v3766
    %3770 = vrot.lane.b32.xlu0 %v3768, 64
    %v3771 = vpop.permute.xlu0 %3770
    %v3773 = vadd.f32 %v428, %v3771
    %v3774 = vtanh.pop %v3773
    %v3775 = vsub.f32 1.0, %v3764
    %3777 = vrot.lane.b32.xlu0 %v3774, 96
    %v3778 = vpop.permute.xlu0 %3777
    %v3780 = vmul.f32 %v3775, %v3778
    %v3781 = vrot.slane %v3572, 6
    %v3783 = vmul.f32 %v3764, %v3781
    %v3784 = vadd.f32 %v3780, %v3783
    %v3786 = vrot.slane %v3678, 2
    %3787 = vrot.lane.b32.xlu0 %v3786, 96
    %v3788 = vpop.permute.xlu0 %3787
    %v3789 = vsel %vm538, %v3788, 0
    %3791 = vmatprep.subr.mxu0 0.0
    %3792 = vmatpush1.msra.mxu0 %v524
    %3793 = vmatprep.subr.mxu0 0.0
    %3794 = vmatpush1.msra.mxu0 %v525
    %3795 = vmatprep.subr.mxu0 0.0
    %3796 = vmatpush1.msra.mxu0 %v526
    %3797 = vmatprep.subr.mxu0 0.0
    %3798 = vmatpush1.msra.mxu0 %v527
    %3799 = vmatprep.subr.mxu0 0.0
    %3800 = vmatpush1.msra.mxu0 0.0
    %3801 = vmatprep.subr.mxu0 0.0
    %3802 = vmatpush1.msra.mxu0 0.0
    %3803 = vmatprep.subr.mxu0 0.0
    %3804 = vmatpush1.msra.mxu0 0.0
    %3805 = vmatprep.subr.mxu0 0.0
    %3806 = vmatpush1.msra.mxu0 0.0
    %3807 = vmatprep.subr.mxu0 0.0
    %3808 = vmatpush1.msra.mxu0 0.0
    %3809 = vmatprep.subr.mxu0 0.0
    %3810 = vmatpush1.msra.mxu0 0.0
    %3811 = vmatprep.subr.mxu0 0.0
    %3812 = vmatpush1.msra.mxu0 0.0
    %3813 = vmatprep.subr.mxu0 0.0
    %3814 = vmatpush1.msra.mxu0 0.0
    %3815 = vmatprep.subr.mxu0 0.0
    %3816 = vmatpush1.msra.mxu0 0.0
    %3817 = vmatprep.subr.mxu0 0.0
    %3818 = vmatpush1.msra.mxu0 0.0
    %3819 = vmatprep.subr.mxu0 0.0
    %3820 = vmatpush1.msra.mxu0 0.0
    %3821 = vmatprep.subr.mxu0 0.0
    %3822 = vmatpush1.msra.mxu0 0.0
    %3823 = vmatprep.subr.mxu0 0.0
    %3824 = vmatpush1.msra.mxu0 0.0
    %3825 = vmatprep.subr.mxu0 0.0
    %3826 = vmatpush1.msra.mxu0 0.0
    %3827 = vmatprep.subr.mxu0 0.0
    %3828 = vmatpush1.msra.mxu0 0.0
    %3829 = vmatprep.subr.mxu0 0.0
    %3830 = vmatpush1.msra.mxu0 0.0
    %3831 = vmatprep.subr.mxu0 0.0
    %3832 = vmatpush1.msra.mxu0 0.0
    %3833 = vmatprep.subr.mxu0 0.0
    %3834 = vmatpush1.msra.mxu0 0.0
    %3835 = vmatprep.subr.mxu0 0.0
    %3836 = vmatpush1.msra.mxu0 0.0
    %3837 = vmatprep.subr.mxu0 0.0
    %3838 = vmatpush1.msra.mxu0 0.0
    %3839 = vmatprep.subr.mxu0 0.0
    %3840 = vmatpush1.msra.mxu0 0.0
    %3841 = vmatprep.subr.mxu0 0.0
    %3842 = vmatpush1.msra.mxu0 0.0
    %3843 = vmatprep.subr.mxu0 0.0
    %3844 = vmatpush1.msra.mxu0 0.0
    %3845 = vmatprep.subr.mxu0 0.0
    %3846 = vmatpush1.msra.mxu0 0.0
    %3847 = vmatprep.subr.mxu0 0.0
    %3848 = vmatpush1.msra.mxu0 0.0
    %3849 = vmatprep.subr.mxu0 0.0
    %3850 = vmatpush1.msra.mxu0 0.0
    %3851 = vmatprep.subr.mxu0 0.0
    %3852 = vmatpush1.msra.mxu0 0.0
    %3853 = vmatprep.subr.mxu0 0.0
    %3854 = vmatpush1.msra.mxu0 0.0
    %3855 = vmatprep.mubr.f32.mxu0 0.0
    %3856 = vmatmul.mubr.f32.gmra.mrb[0].mxu0 %v3789
    %v3857 = vpop.f32.mrb[0].mxu0
    %v3858 = vadd.f32 %v537, %v3857
    %v3859 = vpop.f32.mrb[0].mxu0
    %3860 = vdwg.mxu0
    %v3861 = vadd.f32 %v502, %v3858
    %v3862 = vxor.u32 %v3861, 2147483648
    %v3863 = vmul.f32 %v3862, 1.442695
    %v3864 = vpow.pop %v3863
    %v3865 = vadd.f32 %v3864, 1.0
    %v3866 = vrcp.pop %v3865
    %v3867 = vmul.f32 1.0, %v3866
    %3869 = vrot.lane.b32.xlu0 %v3858, 64
    %v3870 = vpop.permute.xlu0 %3869
    %v3872 = vmul.f32 %v3867, %v3870
    %3874 = vrot.lane.b32.xlu0 %v3872, 64
    %v3875 = vpop.permute.xlu0 %3874
    %v3877 = vadd.f32 %v502, %v3875
    %v3878 = vtanh.pop %v3877
    %v3879 = vsub.f32 1.0, %v3867
    %3881 = vrot.lane.b32.xlu0 %v3878, 96
    %v3882 = vpop.permute.xlu0 %3881
    %v3884 = vmul.f32 %v3879, %v3882
    %v3886 = vmul.f32 %v3867, %v3786
    %v3887 = vadd.f32 %v3884, %v3886
    %v3888 = vld [vmem:[%s0 + $0xb0] sm:$0xff]
    %v3889 = vld [vmem:[%s0 + $0xb8] sm:$0xff]
    %v3890 = vld [vmem:[%s0 + $0xc0] sm:$0xff]
    %v3891 = vld [vmem:[%s0 + $0xc8] sm:$0xff]
    %v3892 = vld [vmem:[%s0 + $0xd0] sm:$0xff]
    %v3893 = vld [vmem:[%s0 + $0xd8] sm:$0xff]
    %v3894 = vld [vmem:[%s0 + $0xe0] sm:$0xff]
    %v3895 = vld [vmem:[%s0 + $0xe8] sm:$0xff]
    %v3896 = vld [vmem:[%s0 + $0x6c] sm:$0x1]
    %3898 = vrot.lane.b32.xlu0 %v3887, 96
    %v3899 = vpop.permute.xlu0 %3898
    %v3900 = vsel %vm538, %v3899, 0
    %3902 = vmatprep.subr.mxu0 0.0
    %3903 = vmatpush1.msra.mxu0 %v3892
    %3904 = vmatprep.subr.mxu0 0.0
    %3905 = vmatpush1.msra.mxu0 %v3893
    %3906 = vmatprep.subr.mxu0 0.0
    %3907 = vmatpush1.msra.mxu0 %v3894
    %3908 = vmatprep.subr.mxu0 0.0
    %3909 = vmatpush1.msra.mxu0 %v3895
    %3910 = vmatprep.subr.mxu0 0.0
    %3911 = vmatpush1.msra.mxu0 0.0
    %3912 = vmatprep.subr.mxu0 0.0
    %3913 = vmatpush1.msra.mxu0 0.0
    %3914 = vmatprep.subr.mxu0 0.0
    %3915 = vmatpush1.msra.mxu0 0.0
    %3916 = vmatprep.subr.mxu0 0.0
    %3917 = vmatpush1.msra.mxu0 0.0
    %3918 = vmatprep.subr.mxu0 0.0
    %3919 = vmatpush1.msra.mxu0 0.0
    %3920 = vmatprep.subr.mxu0 0.0
    %3921 = vmatpush1.msra.mxu0 0.0
    %3922 = vmatprep.subr.mxu0 0.0
    %3923 = vmatpush1.msra.mxu0 0.0
    %3924 = vmatprep.subr.mxu0 0.0
    %3925 = vmatpush1.msra.mxu0 0.0
    %3926 = vmatprep.subr.mxu0 0.0
    %3927 = vmatpush1.msra.mxu0 0.0
    %3928 = vmatprep.subr.mxu0 0.0
    %3929 = vmatpush1.msra.mxu0 0.0
    %3930 = vmatprep.subr.mxu0 0.0
    %3931 = vmatpush1.msra.mxu0 0.0
    %3932 = vmatprep.subr.mxu0 0.0
    %3933 = vmatpush1.msra.mxu0 0.0
    %3934 = vmatprep.subr.mxu0 0.0
    %3935 = vmatpush1.msra.mxu0 0.0
    %3936 = vmatprep.subr.mxu0 0.0
    %3937 = vmatpush1.msra.mxu0 0.0
    %3938 = vmatprep.subr.mxu0 0.0
    %3939 = vmatpush1.msra.mxu0 0.0
    %3940 = vmatprep.subr.mxu0 0.0
    %3941 = vmatpush1.msra.mxu0 0.0
    %3942 = vmatprep.subr.mxu0 0.0
    %3943 = vmatpush1.msra.mxu0 0.0
    %3944 = vmatprep.subr.mxu0 0.0
    %3945 = vmatpush1.msra.mxu0 0.0
    %3946 = vmatprep.subr.mxu0 0.0
    %3947 = vmatpush1.msra.mxu0 0.0
    %3948 = vmatprep.subr.mxu0 0.0
    %3949 = vmatpush1.msra.mxu0 0.0
    %3950 = vmatprep.subr.mxu0 0.0
    %3951 = vmatpush1.msra.mxu0 0.0
    %3952 = vmatprep.subr.mxu0 0.0
    %3953 = vmatpush1.msra.mxu0 0.0
    %3954 = vmatprep.subr.mxu0 0.0
    %3955 = vmatpush1.msra.mxu0 0.0
    %3956 = vmatprep.subr.mxu0 0.0
    %3957 = vmatpush1.msra.mxu0 0.0
    %3958 = vmatprep.subr.mxu0 0.0
    %3959 = vmatpush1.msra.mxu0 0.0
    %3960 = vmatprep.subr.mxu0 0.0
    %3961 = vmatpush1.msra.mxu0 0.0
    %3962 = vmatprep.subr.mxu0 0.0
    %3963 = vmatpush1.msra.mxu0 0.0
    %3964 = vmatprep.subr.mxu0 0.0
    %3965 = vmatpush1.msra.mxu0 0.0
    %3966 = vmatprep.mubr.f32.mxu0 0.0
    %3967 = vmatmul.mubr.f32.gmra.mrb[0].mxu0 %v3900
    %v3968 = vpop.f32.mrb[0].mxu0
    %v3969 = vadd.f32 0.0, %v3968
    %v3970 = vpop.f32.mrb[0].mxu0
    %3971 = vdwg.mxu0
    %v3973 = vrot.slane %v3784, 6
    %3974 = vrot.lane.b32.xlu0 %v3973, 96
    %v3975 = vpop.permute.xlu0 %3974
    %v3976 = vsel %vm538, %v3975, 0
    %3978 = vmatprep.subr.mxu0 0.0
    %3979 = vmatpush1.msra.mxu0 %v3888
    %3980 = vmatprep.subr.mxu0 0.0
    %3981 = vmatpush1.msra.mxu0 %v3889
    %3982 = vmatprep.subr.mxu0 0.0
    %3983 = vmatpush1.msra.mxu0 %v3890
    %3984 = vmatprep.subr.mxu0 0.0
    %3985 = vmatpush1.msra.mxu0 %v3891
    %3986 = vmatprep.subr.mxu0 0.0
    %3987 = vmatpush1.msra.mxu0 0.0
    %3988 = vmatprep.subr.mxu0 0.0
    %3989 = vmatpush1.msra.mxu0 0.0
    %3990 = vmatprep.subr.mxu0 0.0
    %3991 = vmatpush1.msra.mxu0 0.0
    %3992 = vmatprep.subr.mxu0 0.0
    %3993 = vmatpush1.msra.mxu0 0.0
    %3994 = vmatprep.subr.mxu0 0.0
    %3995 = vmatpush1.msra.mxu0 0.0
    %3996 = vmatprep.subr.mxu0 0.0
    %3997 = vmatpush1.msra.mxu0 0.0
    %3998 = vmatprep.subr.mxu0 0.0
    %3999 = vmatpush1.msra.mxu0 0.0
    %4000 = vmatprep.subr.mxu0 0.0
    %4001 = vmatpush1.msra.mxu0 0.0
    %4002 = vmatprep.subr.mxu0 0.0
    %4003 = vmatpush1.msra.mxu0 0.0
    %4004 = vmatprep.subr.mxu0 0.0
    %4005 = vmatpush1.msra.mxu0 0.0
    %4006 = vmatprep.subr.mxu0 0.0
    %4007 = vmatpush1.msra.mxu0 0.0
    %4008 = vmatprep.subr.mxu0 0.0
    %4009 = vmatpush1.msra.mxu0 0.0
    %4010 = vmatprep.subr.mxu0 0.0
    %4011 = vmatpush1.msra.mxu0 0.0
    %4012 = vmatprep.subr.mxu0 0.0
    %4013 = vmatpush1.msra.mxu0 0.0
    %4014 = vmatprep.subr.mxu0 0.0
    %4015 = vmatpush1.msra.mxu0 0.0
    %4016 = vmatprep.subr.mxu0 0.0
    %4017 = vmatpush1.msra.mxu0 0.0
    %4018 = vmatprep.subr.mxu0 0.0
    %4019 = vmatpush1.msra.mxu0 0.0
    %4020 = vmatprep.subr.mxu0 0.0
    %4021 = vmatpush1.msra.mxu0 0.0
    %4022 = vmatprep.subr.mxu0 0.0
    %4023 = vmatpush1.msra.mxu0 0.0
    %4024 = vmatprep.subr.mxu0 0.0
    %4025 = vmatpush1.msra.mxu0 0.0
    %4026 = vmatprep.subr.mxu0 0.0
    %4027 = vmatpush1.msra.mxu0 0.0
    %4028 = vmatprep.subr.mxu0 0.0
    %4029 = vmatpush1.msra.mxu0 0.0
    %4030 = vmatprep.subr.mxu0 0.0
    %4031 = vmatpush1.msra.mxu0 0.0
    %4032 = vmatprep.subr.mxu0 0.0
    %4033 = vmatpush1.msra.mxu0 0.0
    %4034 = vmatprep.subr.mxu0 0.0
    %4035 = vmatpush1.msra.mxu0 0.0
    %4036 = vmatprep.subr.mxu0 0.0
    %4037 = vmatpush1.msra.mxu0 0.0
    %4038 = vmatprep.subr.mxu0 0.0
    %4039 = vmatpush1.msra.mxu0 0.0
    %4040 = vmatprep.subr.mxu0 0.0
    %4041 = vmatpush1.msra.mxu0 0.0
    %4042 = vmatprep.mubr.f32.mxu0 0.0
    %4043 = vmatmul.mubr.f32.gmra.mrb[0].mxu0 %v3976
    %v4044 = vpop.f32.mrb[0].mxu0
    %v4045 = vadd.f32 %v3969, %v4044
    %v4046 = vpop.f32.mrb[0].mxu0
    %4047 = vdwg.mxu0
    %v4048 = vlaneseq
    %v4049 = vshrl.u32 %v4048, 7
    %v4050 = vsub.s32 0, %v4049
    %v4051 = vrot.slane %v3896, %v4050
    %v4052 = vadd.f32 %v4045, %v4051
    %vm4053 = vcmask 33792
    %4054 = vst.msk [vmem:[#allocation2] sm:$0x3] %vm4053, %v4052
    // Predicated region
    $region6: #{crnn_forward.1} parent=1 // pred_check
      _
    $region7: #{crnn_forward.1} parent=1 // pred_check_branch
      %4056 = sbr.rel (0) target = $region9
    $region8: #{crnn_forward.1} parent=1 // pred_region
      %s4058 = ssub.s32 32, 32
      %4059 = vsyncadd [#allocation3], %s4058
      %s4061 = sshll.u32 [#allocation2], 4
      %s4062 = int_to_ptr.vmem [resolvable:$true] %s4061
      %4064 = dma.vmem_to_hbm [thread:$0]  %s4062, 32, %s1, [#allocation3]
    $region9: #{crnn_forward.1} parent=1 // pred_fallthru
      _
    // Predicated region
    $region10: #{crnn_forward.1} parent=1 // pred_check
      _
    $region11: #{crnn_forward.1} parent=1 // pred_check_branch
      %4066 = sbr.rel (0) target = $region13
    $region12: #{crnn_forward.1} parent=1 // pred_region
      %4067 = dma.done [#allocation3], 32
    $region13: #{crnn_forward.1} parent=1 // pred_fallthru
      _
    %4068 = vsyncpa [#allocation3], 1

</llo_original>
